<compile_context>
chip_gen: v6e
topology: v6e:2x2x1
jax: 0.10.0
libtpu: 0.0.40
codegen_flags: <defaults>
</compile_context>

<pallas_src>
import jax
import jax.numpy as jnp
from jax import lax
from jax.experimental import pallas as pl
from jax.experimental.pallas import tpu as pltpu


# ----------------------------------------------------------------------------- #
# Fused LSTM recurrence for one layer: grid = (direction, time_chunk).
# All NB branches of a direction are processed (interleaved) in one grid step.
# Gate order inside the packed weights is (i, f, o, g)  [PyTorch is (i, f, g, o)].
# ----------------------------------------------------------------------------- #
def _lstm_group_kernel(xg_ref, whh_ref, o_ref, h_sc, c_sc):
    # xg_ref : [Tc, NB, B, 4H]  (stream dtype, e.g. bf16)  = x @ W_ih + (b_ih + b_hh)
    # whh_ref: [NB, H, 4H]      (f32)
    # o_ref  : [Tc, NB, B, H]   (stream dtype)
    # h_sc/c_sc: [NB, B, H] f32 scratch, carried across the time-chunk grid axis.
    tcl = xg_ref.shape[0]
    hdim = whh_ref.shape[1]

    @pl.when(pl.program_id(1) == 0)
    def _():
        h_sc[...] = jnp.zeros_like(h_sc)
        c_sc[...] = jnp.zeros_like(c_sc)

    whh = whh_ref[...]  # hoisted: resident in vregs/VMEM across the whole chunk loop

    def run_chunk(time_index):
        def step(t, carry):
            h, c = carry
            tt = time_index(t)
            # bf16 stream -> f32 before arithmetic (v5e VPU has no bf16).
            gates = (xg_ref[tt].astype(jnp.float32)
                     + jnp.einsum('nbh,nhf->nbf', h, whh,
                                  preferred_element_type=jnp.float32))   # [NB, B, 4H]
            # Packed gate order (i, f, o, g): one sigmoid slab + one tanh slab.
            sig = jax.nn.sigmoid(gates[..., :3 * hdim])
            g_g = jnp.tanh(gates[..., 3 * hdim:])
            i_g = sig[..., 0 * hdim:1 * hdim]
            f_g = sig[..., 1 * hdim:2 * hdim]
            o_g = sig[..., 2 * hdim:3 * hdim]
            c_new = f_g * c + i_g * g_g
            h_new = o_g * jnp.tanh(c_new)
            o_ref[tt] = h_new.astype(o_ref.dtype)
            return (h_new, c_new)

        # h/c carried as loop values (vregs); scratch touched only at chunk boundaries.
        h_fin, c_fin = lax.fori_loop(0, tcl, step, (h_sc[...], c_sc[...]),
                                     unroll=min(tcl, 8))
        h_sc[...] = h_fin
        c_sc[...] = c_fin

    # Direction is a grid axis, so each branch below is statically structured
    # (no per-step jnp.where select on the serial critical path).
    @pl.when(pl.program_id(0) == 0)
    def _():
        run_chunk(lambda t: t)

    @pl.when(pl.program_id(0) == 1)
    def _():
        run_chunk(lambda t: tcl - 1 - t)


def _pick_time_chunk(t, nb, b, h4, itemsize, budget_bytes=2 << 20):
    """Largest divisor of T whose xg chunk (nb * chunk * b * 4H) fits budget_bytes.

    Budget is sized so double-buffered xg + y chunks stay well inside v7x's scoped
    32 MiB (64 MiB physical); v5e/v6e have more headroom at the same setting.
    """
    per_step = max(1, nb * b * h4 * itemsize)
    max_chunk = max(1, budget_bytes // per_step)
    best = 1
    for cand in range(1, t + 1):
        if t % cand == 0 and cand <= max_chunk:
            best = cand
    return best


def lstm_layer_fused(xg, w_hh, *, time_chunk=None):
    """Run one bidirectional layer's recurrence for all branches.

    xg  : [2, T, NB, B, 4H]  (stream dtype) precomputed input projection (+bias)
    w_hh: [2, NB, H, 4H]     (f32)
    returns y: [2, T, NB, B, H] (stream dtype)
    """
    ndir, t, nb, b, h4 = xg.shape
    hdim = h4 // 4
    if time_chunk is None:
        time_chunk = _pick_time_chunk(t, nb, b, h4, xg.dtype.itemsize)
    assert t % time_chunk == 0, (t, time_chunk)
    n_chunks = t // time_chunk

    # Reverse direction (d=1) consumes time chunks last-to-first.
    def _tc_eff(d, tc):
        return tc + d * (n_chunks - 1 - 2 * tc)

    def xg_map(d, tc):
        return (d, _tc_eff(d, tc), 0, 0, 0)

    def whh_map(d, tc):
        return (d, 0, 0, 0)

    def out_map(d, tc):
        return (d, _tc_eff(d, tc), 0, 0, 0)

    itemsize = xg.dtype.itemsize
    flops = ndir * nb * t * (2 * b * hdim * h4 + 12 * b * hdim)
    transcendentals = ndir * nb * t * b * 5 * hdim
    bytes_accessed = (xg.size * itemsize
                      + w_hh.size * w_hh.dtype.itemsize
                      + ndir * t * nb * b * hdim * itemsize)

    # TODO(synk): if the DMA is still exposed at production sizes, bump the xg stream to
    # pipeline_mode=pl.Buffered(3) (budget the extra buffer against v7x's 64 MiB VMEM).
    # TODO(synk): for layers > 0, fuse the input projection in here (stream y chunks and
    # keep W_ih resident) instead of materializing the 4x-larger xg in HBM.
    return pl.pallas_call(
        _lstm_group_kernel,
        out_shape=jax.ShapeDtypeStruct((ndir, t, nb, b, hdim), xg.dtype),
        grid_spec=pltpu.PrefetchScalarGridSpec(
            num_scalar_prefetch=0,
            grid=(ndir, n_chunks),
            in_specs=[
                pl.BlockSpec((None, time_chunk, nb, b, h4), xg_map),
                pl.BlockSpec((None, nb, hdim, h4), whh_map),
            ],
            out_specs=pl.BlockSpec((None, time_chunk, nb, b, hdim), out_map),
            scratch_shapes=[pltpu.VMEM((nb, b, hdim), jnp.float32),
                            pltpu.VMEM((nb, b, hdim), jnp.float32)],
        ),
        compiler_params=pltpu.CompilerParams(
            dimension_semantics=("parallel", "arbitrary"),
            vmem_limit_bytes=32 * 1024 * 1024,
        ),
        cost_estimate=pl.CostEstimate(flops=flops, transcendentals=transcendentals,
                                      bytes_accessed=bytes_accessed),
    )(xg, w_hh)


# ----------------------------------------------------------------------------- #
# Parameter packing (PyTorch layout -> dir-major, gate order (i,f,o,g))
# ----------------------------------------------------------------------------- #
def _reorder_ifgo_to_ifog(w):
    """Reorder the last (4H) axis from PyTorch's (i,f,g,o) to (i,f,o,g)."""
    h = w.shape[-1] // 4
    return jnp.concatenate([w[..., :2 * h], w[..., 3 * h:], w[..., 2 * h:3 * h]], axis=-1)


def pack_params(branch_params):
    """Per layer: (w_ih [2,NB,Din,4H], w_hh [2,NB,H,4H], bias [2,NB,4H])."""
    num_layers = len(branch_params[0])
    nb = len(branch_params)
    packed = []
    for li in range(num_layers):
        w_ih = jnp.stack([jnp.stack([_reorder_ifgo_to_ifog(branch_params[b][li][d][0].T)
                                     for b in range(nb)]) for d in range(2)])
        w_hh = jnp.stack([jnp.stack([_reorder_ifgo_to_ifog(branch_params[b][li][d][1].T)
                                     for b in range(nb)]) for d in range(2)])
        bias = jnp.stack([jnp.stack([_reorder_ifgo_to_ifog(branch_params[b][li][d][2]
                                                           + branch_params[b][li][d][3])
                                     for b in range(nb)]) for d in range(2)])
        packed.append((w_ih, w_hh, bias))
    return packed


# ----------------------------------------------------------------------------- #
# _CrossNet forward
# ----------------------------------------------------------------------------- #
def crossnet_forward(inputs, packed_layers, *, stream_dtype=jnp.bfloat16, time_chunk=None):
    """inputs: list of [B, T, num_hidden]; returns [B, T, 2*num_hidden]."""
    nb = len(inputs)
    b, t, d = inputs[0].shape

    # cross_1: mean over branch inputs.  Per review: at these reduction sizes a
    # pallas_call launch costs more than the reduction, so use XLA's fused mean and
    # keep the heavy compute in the fused LSTM kernel.
    cross_1 = jnp.mean(jnp.stack(inputs), axis=0)                      # [B, T, D]

    # Stacked bidirectional LSTM branches; per layer one pallas_call over (dir, T-chunk).
    # TODO(synk): dropout=0.4 between stacked layers applies only in training mode.
    y = None                                                            # [2, T, NB, B, H]
    for li, (w_ih, w_hh, bias) in enumerate(packed_layers):
        h4 = w_hh.shape[-1]
        hdim = h4 // 4
        if li == 0:
            # Input projection hoisted out of the recurrence: one batched MXU matmul
            # over all timesteps / branches / directions (also moves to time-major).
            xg = jnp.einsum('btd,yndf->ytnbf', cross_1, w_ih,
                            preferred_element_type=jnp.float32)
        else:
            # Consume the previous layer's fwd / rev halves directly (no concat / flip).
            yf = y[0].astype(jnp.float32)
            yr = y[1].astype(jnp.float32)
            xg = (jnp.einsum('tnbh,ynhf->ytnbf', yf, w_ih[:, :, :hdim, :],
                             preferred_element_type=jnp.float32)
                  + jnp.einsum('tnbh,ynhf->ytnbf', yr, w_ih[:, :, hdim:, :],
                               preferred_element_type=jnp.float32))
        xg = (xg + bias[:, None, :, None, :]).astype(stream_dtype)      # bf16 HBM stream
        y = lstm_layer_fused(xg, w_hh, time_chunk=time_chunk)

    # cross_2: mean over branches, fwd/rev concatenated along features -> [B, T, 2H].
    m = jnp.mean(y.astype(jnp.float32), axis=2)                         # [2, T, B, H]
    cross_2 = jnp.transpose(jnp.concatenate([m[0], m[1]], axis=-1), (1, 0, 2))
    return jnp.concatenate([cross_1, cross_2.astype(cross_1.dtype)], axis=-1)


def init_params(key, num_branches, num_hidden, num_layers):
    """Deterministic PyTorch-style uniform(-1/sqrt(H), 1/sqrt(H)) init (nested layout)."""
    lstm_hidden = num_hidden // 2
    bound = 1.0 / (lstm_hidden ** 0.5)
    params = []
    for _ in range(num_branches):
        layers = []
        for _layer in range(num_layers):
            d_in = num_hidden  # layer 0 input = num_hidden; later layers get 2*H = num_hidden
            dirs = []
            for _ in range(2):  # forward, reverse
                key, k1, k2, k3, k4 = jax.random.split(key, 5)
                w_ih = jax.random.uniform(k1, (4 * lstm_hidden, d_in), jnp.float32, -bound, bound)
                w_hh = jax.random.uniform(k2, (4 * lstm_hidden, lstm_hidden), jnp.float32, -bound, bound)
                b_ih = jax.random.uniform(k3, (4 * lstm_hidden,), jnp.float32, -bound, bound)
                b_hh = jax.random.uniform(k4, (4 * lstm_hidden,), jnp.float32, -bound, bound)
                dirs.append((w_ih, w_hh, b_ih, b_hh))
            layers.append(tuple(dirs))
        params.append(layers)
    return params


# ----------------------------------------------------------------------------- #
# Pure-JAX reference (sanity check of the fused Pallas path; PyTorch gate order).
# ----------------------------------------------------------------------------- #
def _ref_lstm_dir(x_tbd, w_ih, w_hh, b_ih, b_hh):
    H = w_hh.shape[1]
    bias = b_ih + b_hh

    def step(carry, x_t):
        h, c = carry
        gates = x_t @ w_ih.T + h @ w_hh.T + bias
        i = jax.nn.sigmoid(gates[:, 0 * H:1 * H])
        f = jax.nn.sigmoid(gates[:, 1 * H:2 * H])
        g = jnp.tanh(gates[:, 2 * H:3 * H])
        o = jax.nn.sigmoid(gates[:, 3 * H:4 * H])
        c = f * c + i * g
        h = o * jnp.tanh(c)
        return (h, c), h

    b = x_tbd.shape[1]
    init = (jnp.zeros((b, H), jnp.float32), jnp.zeros((b, H), jnp.float32))
    _, hs = lax.scan(step, init, x_tbd)
    return hs


def _ref_forward(inputs, branch_params):
    cross_1 = jnp.mean(jnp.stack(inputs), axis=0)
    outs = []
    for layers in branch_params:
        x = cross_1
        for (fwd, rev) in layers:
            x_tbd = jnp.transpose(x, (1, 0, 2))
            hf = _ref_lstm_dir(x_tbd, *fwd)
            hr = _ref_lstm_dir(x_tbd[::-1], *rev)[::-1]
            x = jnp.transpose(jnp.concatenate([hf, hr], axis=-1), (1, 0, 2))
        outs.append(x)
    cross_2 = jnp.mean(jnp.stack(outs), axis=0)
    return jnp.concatenate([cross_1, cross_2], axis=-1)


if __name__ == "__main__":
    num_branches, num_hidden, num_layers = 3, 32, 2
    batch, seq = 2, 8

    key = jax.random.PRNGKey(0)
    key, kp = jax.random.split(key)
    params = init_params(kp, num_branches, num_hidden, num_layers)
    packed = pack_params(params)

    in_keys = jax.random.split(key, num_branches)
    inputs = [jax.random.normal(k, (batch, seq, num_hidden), jnp.float32) for k in in_keys]

    # time_chunk=4 (T=8 -> 2 chunks) also exercises the chunk-carry / reversed-chunk path.
    out = jax.block_until_ready(crossnet_forward(inputs, packed, time_chunk=4))
    assert out.shape == (batch, seq, 2 * num_hidden), out.shape

    ref = jax.block_until_ready(_ref_forward(inputs, params))
    err = float(jnp.max(jnp.abs(out - ref)))
    # bf16 xg / y HBM streams through 2 recurrent layers: allow a few 1e-2 absolute.
    assert err < 5e-2, err

    print("KERNEL_OK")
</pallas_src>

<mosaic_0001>
module attributes {stable_mosaic.version = 11 : i64} {
  func.func @_lstm_group_kernel(%arg0: i32, %arg1: i32, %arg2: memref<1x4x3x2x64xbf16, #tpu.memory_space<vmem>>, %arg3: memref<1x3x16x64xf32, #tpu.memory_space<vmem>>, %arg4: memref<1x4x3x2x16xbf16, #tpu.memory_space<vmem>>, %arg5: memref<3x2x16xf32, #tpu.memory_space<vmem>>, %arg6: memref<3x2x16xf32, #tpu.memory_space<vmem>>) attributes {dimension_semantics = [#tpu.dimension_semantics<parallel>, #tpu.dimension_semantics<arbitrary>], iteration_bounds = array<i64: 2, 2>, scalar_prefetch = 0 : i64, scratch_operands = 2 : i64, tpu.core_type = #tpu.core_type<tc>, window_params = [{transform_indices = @transform_0, window_bounds = array<i64: 1, 4, 3, 2, 64>}, {transform_indices = @transform_1, window_bounds = array<i64: 1, 3, 16, 64>}, {transform_indices = @transform_2, window_bounds = array<i64: 1, 4, 3, 2, 16>}]} {
    %c0_i32 = arith.constant 0 : i32
    %0 = arith.cmpi eq, %arg1, %c0_i32 : i32
    %1 = arith.extui %0 : i1 to i32
    %c0_i32_0 = arith.constant 0 : i32
    %2 = arith.cmpi ne, %1, %c0_i32_0 : i32
    scf.if %2 {
      %cst = arith.constant 0.000000e+00 : f32
      %11 = vector.broadcast %cst : f32 to vector<3x2x16xf32>
      %c0_7 = arith.constant 0 : index
      %c0_8 = arith.constant 0 : index
      %c0_9 = arith.constant 0 : index
      %12 = vector.load %arg5[%c0_7, %c0_8, %c0_9] : memref<3x2x16xf32, #tpu.memory_space<vmem>>, vector<3x2x16xf32>
      tpu.vector_store %arg5[%c0_7, %c0_8, %c0_9], %11 {strides = array<i32>} : memref<3x2x16xf32, #tpu.memory_space<vmem>>, vector<3x2x16xf32>,
      %cst_10 = arith.constant 0.000000e+00 : f32
      %13 = vector.broadcast %cst_10 : f32 to vector<3x2x16xf32>
      %c0_11 = arith.constant 0 : index
      %c0_12 = arith.constant 0 : index
      %c0_13 = arith.constant 0 : index
      %14 = vector.load %arg6[%c0_11, %c0_12, %c0_13] : memref<3x2x16xf32, #tpu.memory_space<vmem>>, vector<3x2x16xf32>
      tpu.vector_store %arg6[%c0_11, %c0_12, %c0_13], %13 {strides = array<i32>} : memref<3x2x16xf32, #tpu.memory_space<vmem>>, vector<3x2x16xf32>,
    } else {
    }
    %c0 = arith.constant 0 : index
    %c0_1 = arith.constant 0 : index
    %c0_2 = arith.constant 0 : index
    %c0_3 = arith.constant 0 : index
    %3 = vector.load %arg3[%c0, %c0_1, %c0_2, %c0_3] : memref<1x3x16x64xf32, #tpu.memory_space<vmem>>, vector<1x3x16x64xf32>
    %4 = vector.shape_cast %3 : vector<1x3x16x64xf32> to vector<3x16x64xf32>
    %c0_i32_4 = arith.constant 0 : i32
    %5 = arith.cmpi eq, %arg0, %c0_i32_4 : i32
    %6 = arith.extui %5 : i1 to i32
    %c0_i32_5 = arith.constant 0 : i32
    %7 = arith.cmpi ne, %6, %c0_i32_5 : i32
    scf.if %7 {
      %c0_7 = arith.constant 0 : index
      %c0_8 = arith.constant 0 : index
      %c0_9 = arith.constant 0 : index
      %11 = vector.load %arg5[%c0_7, %c0_8, %c0_9] : memref<3x2x16xf32, #tpu.memory_space<vmem>>, vector<3x2x16xf32>
      %c0_10 = arith.constant 0 : index
      %c0_11 = arith.constant 0 : index
      %c0_12 = arith.constant 0 : index
      %12 = vector.load %arg6[%c0_10, %c0_11, %c0_12] : memref<3x2x16xf32, #tpu.memory_space<vmem>>, vector<3x2x16xf32>
      %c0_i32_13 = arith.constant 0 : i32
      %c0_14 = arith.constant 0 : index
      %13 = arith.index_cast %c0_i32_13 : i32 to index
      %c0_15 = arith.constant 0 : index
      %c0_16 = arith.constant 0 : index
      %c0_17 = arith.constant 0 : index
      %14 = vector.load %arg2[%c0_14, %13, %c0_15, %c0_16, %c0_17] : memref<1x4x3x2x64xbf16, #tpu.memory_space<vmem>>, vector<1x1x3x2x64xbf16>
      %15 = vector.shape_cast %14 : vector<1x1x3x2x64xbf16> to vector<3x2x64xbf16>
      %16 = arith.extf %15 : vector<3x2x64xbf16> to vector<3x2x64xf32>
      "tpu.trace_start"() <{level = 10 : i32, message = "nbh,nhf->nbf"}> : () -> ()
      %cst = arith.constant dense<0.000000e+00> : vector<3x2x64xf32>
      %17 = tpu.matmul %11, %4, %cst {dimension_numbers = #tpu.dot_dimension_numbers<[2], [1], [1], [2], [0, 0, 0, 1, 1, 2], [0], [0]>} : vector<3x2x16xf32>, vector<3x16x64xf32>, vector<3x2x64xf32> -> vector<3x2x64xf32>
      "tpu.trace_stop"() : () -> ()
      %18 = arith.addf %16, %17 : vector<3x2x64xf32>
      %19 = vector.extract_strided_slice %18 {offsets = [0, 0, 0], sizes = [3, 2, 48], strides = [1, 1, 1]} : vector<3x2x64xf32> to vector<3x2x48xf32>
      %20 = arith.negf %19 : vector<3x2x48xf32>
      %21 = math.exp %20 : vector<3x2x48xf32>
      %cst_18 = arith.constant 1.000000e+00 : f32
      %22 = vector.broadcast %cst_18 : f32 to vector<3x2x48xf32>
      %23 = arith.addf %22, %21 : vector<3x2x48xf32>
      %24 = arith.divf %22, %23 : vector<3x2x48xf32>
      %25 = vector.extract_strided_slice %18 {offsets = [0, 0, 48], sizes = [3, 2, 16], strides = [1, 1, 1]} : vector<3x2x64xf32> to vector<3x2x16xf32>
      %26 = math.tanh %25 : vector<3x2x16xf32>
      %27 = vector.extract_strided_slice %24 {offsets = [0, 0, 0], sizes = [3, 2, 16], strides = [1, 1, 1]} : vector<3x2x48xf32> to vector<3x2x16xf32>
      %28 = vector.extract_strided_slice %24 {offsets = [0, 0, 16], sizes = [3, 2, 16], strides = [1, 1, 1]} : vector<3x2x48xf32> to vector<3x2x16xf32>
      %29 = vector.extract_strided_slice %24 {offsets = [0, 0, 32], sizes = [3, 2, 16], strides = [1, 1, 1]} : vector<3x2x48xf32> to vector<3x2x16xf32>
      %30 = arith.mulf %28, %12 : vector<3x2x16xf32>
      %31 = arith.mulf %27, %26 : vector<3x2x16xf32>
      %32 = arith.addf %30, %31 : vector<3x2x16xf32>
      %33 = math.tanh %32 : vector<3x2x16xf32>
      %34 = arith.mulf %29, %33 : vector<3x2x16xf32>
      %35 = arith.truncf %34 : vector<3x2x16xf32> to vector<3x2x16xbf16>
      %c0_19 = arith.constant 0 : index
      %36 = arith.index_cast %c0_i32_13 : i32 to index
      %c0_20 = arith.constant 0 : index
      %c0_21 = arith.constant 0 : index
      %c0_22 = arith.constant 0 : index
      %37 = vector.load %arg4[%c0_19, %36, %c0_20, %c0_21, %c0_22] : memref<1x4x3x2x16xbf16, #tpu.memory_space<vmem>>, vector<1x1x3x2x16xbf16>
      %38 = vector.shape_cast %37 : vector<1x1x3x2x16xbf16> to vector<3x2x16xbf16>
      %39 = vector.shape_cast %35 : vector<3x2x16xbf16> to vector<1x1x3x2x16xbf16>
      tpu.vector_store %arg4[%c0_19, %36, %c0_20, %c0_21, %c0_22], %39 {strides = array<i32>} : memref<1x4x3x2x16xbf16, #tpu.memory_space<vmem>>, vector<1x1x3x2x16xbf16>,
      %c1_i32_23 = arith.constant 1 : i32
      %c0_24 = arith.constant 0 : index
      %40 = arith.index_cast %c1_i32_23 : i32 to index
      %c0_25 = arith.constant 0 : index
      %c0_26 = arith.constant 0 : index
      %c0_27 = arith.constant 0 : index
      %41 = vector.load %arg2[%c0_24, %40, %c0_25, %c0_26, %c0_27] : memref<1x4x3x2x64xbf16, #tpu.memory_space<vmem>>, vector<1x1x3x2x64xbf16>
      %42 = vector.shape_cast %41 : vector<1x1x3x2x64xbf16> to vector<3x2x64xbf16>
      %43 = arith.extf %42 : vector<3x2x64xbf16> to vector<3x2x64xf32>
      "tpu.trace_start"() <{level = 10 : i32, message = "nbh,nhf->nbf"}> : () -> ()
      %cst_28 = arith.constant dense<0.000000e+00> : vector<3x2x64xf32>
      %44 = tpu.matmul %34, %4, %cst_28 {dimension_numbers = #tpu.dot_dimension_numbers<[2], [1], [1], [2], [0, 0, 0, 1, 1, 2], [0], [0]>} : vector<3x2x16xf32>, vector<3x16x64xf32>, vector<3x2x64xf32> -> vector<3x2x64xf32>
      "tpu.trace_stop"() : () -> ()
      %45 = arith.addf %43, %44 : vector<3x2x64xf32>
      %46 = vector.extract_strided_slice %45 {offsets = [0, 0, 0], sizes = [3, 2, 48], strides = [1, 1, 1]} : vector<3x2x64xf32> to vector<3x2x48xf32>
      %47 = arith.negf %46 : vector<3x2x48xf32>
      %48 = math.exp %47 : vector<3x2x48xf32>
      %cst_29 = arith.constant 1.000000e+00 : f32
      %49 = vector.broadcast %cst_29 : f32 to vector<3x2x48xf32>
      %50 = arith.addf %49, %48 : vector<3x2x48xf32>
      %51 = arith.divf %49, %50 : vector<3x2x48xf32>
      %52 = vector.extract_strided_slice %45 {offsets = [0, 0, 48], sizes = [3, 2, 16], strides = [1, 1, 1]} : vector<3x2x64xf32> to vector<3x2x16xf32>
      %53 = math.tanh %52 : vector<3x2x16xf32>
      %54 = vector.extract_strided_slice %51 {offsets = [0, 0, 0], sizes = [3, 2, 16], strides = [1, 1, 1]} : vector<3x2x48xf32> to vector<3x2x16xf32>
      %55 = vector.extract_strided_slice %51 {offsets = [0, 0, 16], sizes = [3, 2, 16], strides = [1, 1, 1]} : vector<3x2x48xf32> to vector<3x2x16xf32>
      %56 = vector.extract_strided_slice %51 {offsets = [0, 0, 32], sizes = [3, 2, 16], strides = [1, 1, 1]} : vector<3x2x48xf32> to vector<3x2x16xf32>
      %57 = arith.mulf %55, %32 : vector<3x2x16xf32>
      %58 = arith.mulf %54, %53 : vector<3x2x16xf32>
      %59 = arith.addf %57, %58 : vector<3x2x16xf32>
      %60 = math.tanh %59 : vector<3x2x16xf32>
      %61 = arith.mulf %56, %60 : vector<3x2x16xf32>
      %62 = arith.truncf %61 : vector<3x2x16xf32> to vector<3x2x16xbf16>
      %c0_30 = arith.constant 0 : index
      %63 = arith.index_cast %c1_i32_23 : i32 to index
      %c0_31 = arith.constant 0 : index
      %c0_32 = arith.constant 0 : index
      %c0_33 = arith.constant 0 : index
      %64 = vector.load %arg4[%c0_30, %63, %c0_31, %c0_32, %c0_33] : memref<1x4x3x2x16xbf16, #tpu.memory_space<vmem>>, vector<1x1x3x2x16xbf16>
      %65 = vector.shape_cast %64 : vector<1x1x3x2x16xbf16> to vector<3x2x16xbf16>
      %66 = vector.shape_cast %62 : vector<3x2x16xbf16> to vector<1x1x3x2x16xbf16>
      tpu.vector_store %arg4[%c0_30, %63, %c0_31, %c0_32, %c0_33], %66 {strides = array<i32>} : memref<1x4x3x2x16xbf16, #tpu.memory_space<vmem>>, vector<1x1x3x2x16xbf16>,
      %c2_i32 = arith.constant 2 : i32
      %c0_34 = arith.constant 0 : index
      %67 = arith.index_cast %c2_i32 : i32 to index
      %c0_35 = arith.constant 0 : index
      %c0_36 = arith.constant 0 : index
      %c0_37 = arith.constant 0 : index
      %68 = vector.load %arg2[%c0_34, %67, %c0_35, %c0_36, %c0_37] : memref<1x4x3x2x64xbf16, #tpu.memory_space<vmem>>, vector<1x1x3x2x64xbf16>
      %69 = vector.shape_cast %68 : vector<1x1x3x2x64xbf16> to vector<3x2x64xbf16>
      %70 = arith.extf %69 : vector<3x2x64xbf16> to vector<3x2x64xf32>
      "tpu.trace_start"() <{level = 10 : i32, message = "nbh,nhf->nbf"}> : () -> ()
      %cst_38 = arith.constant dense<0.000000e+00> : vector<3x2x64xf32>
      %71 = tpu.matmul %61, %4, %cst_38 {dimension_numbers = #tpu.dot_dimension_numbers<[2], [1], [1], [2], [0, 0, 0, 1, 1, 2], [0], [0]>} : vector<3x2x16xf32>, vector<3x16x64xf32>, vector<3x2x64xf32> -> vector<3x2x64xf32>
      "tpu.trace_stop"() : () -> ()
      %72 = arith.addf %70, %71 : vector<3x2x64xf32>
      %73 = vector.extract_strided_slice %72 {offsets = [0, 0, 0], sizes = [3, 2, 48], strides = [1, 1, 1]} : vector<3x2x64xf32> to vector<3x2x48xf32>
      %74 = arith.negf %73 : vector<3x2x48xf32>
      %75 = math.exp %74 : vector<3x2x48xf32>
      %cst_39 = arith.constant 1.000000e+00 : f32
      %76 = vector.broadcast %cst_39 : f32 to vector<3x2x48xf32>
      %77 = arith.addf %76, %75 : vector<3x2x48xf32>
      %78 = arith.divf %76, %77 : vector<3x2x48xf32>
      %79 = vector.extract_strided_slice %72 {offsets = [0, 0, 48], sizes = [3, 2, 16], strides = [1, 1, 1]} : vector<3x2x64xf32> to vector<3x2x16xf32>
      %80 = math.tanh %79 : vector<3x2x16xf32>
      %81 = vector.extract_strided_slice %78 {offsets = [0, 0, 0], sizes = [3, 2, 16], strides = [1, 1, 1]} : vector<3x2x48xf32> to vector<3x2x16xf32>
      %82 = vector.extract_strided_slice %78 {offsets = [0, 0, 16], sizes = [3, 2, 16], strides = [1, 1, 1]} : vector<3x2x48xf32> to vector<3x2x16xf32>
      %83 = vector.extract_strided_slice %78 {offsets = [0, 0, 32], sizes = [3, 2, 16], strides = [1, 1, 1]} : vector<3x2x48xf32> to vector<3x2x16xf32>
      %84 = arith.mulf %82, %59 : vector<3x2x16xf32>
      %85 = arith.mulf %81, %80 : vector<3x2x16xf32>
      %86 = arith.addf %84, %85 : vector<3x2x16xf32>
      %87 = math.tanh %86 : vector<3x2x16xf32>
      %88 = arith.mulf %83, %87 : vector<3x2x16xf32>
      %89 = arith.truncf %88 : vector<3x2x16xf32> to vector<3x2x16xbf16>
      %c0_40 = arith.constant 0 : index
      %90 = arith.index_cast %c2_i32 : i32 to index
      %c0_41 = arith.constant 0 : index
      %c0_42 = arith.constant 0 : index
      %c0_43 = arith.constant 0 : index
      %91 = vector.load %arg4[%c0_40, %90, %c0_41, %c0_42, %c0_43] : memref<1x4x3x2x16xbf16, #tpu.memory_space<vmem>>, vector<1x1x3x2x16xbf16>
      %92 = vector.shape_cast %91 : vector<1x1x3x2x16xbf16> to vector<3x2x16xbf16>
      %93 = vector.shape_cast %89 : vector<3x2x16xbf16> to vector<1x1x3x2x16xbf16>
      tpu.vector_store %arg4[%c0_40, %90, %c0_41, %c0_42, %c0_43], %93 {strides = array<i32>} : memref<1x4x3x2x16xbf16, #tpu.memory_space<vmem>>, vector<1x1x3x2x16xbf16>,
      %c3_i32 = arith.constant 3 : i32
      %c0_44 = arith.constant 0 : index
      %94 = arith.index_cast %c3_i32 : i32 to index
      %c0_45 = arith.constant 0 : index
      %c0_46 = arith.constant 0 : index
      %c0_47 = arith.constant 0 : index
      %95 = vector.load %arg2[%c0_44, %94, %c0_45, %c0_46, %c0_47] : memref<1x4x3x2x64xbf16, #tpu.memory_space<vmem>>, vector<1x1x3x2x64xbf16>
      %96 = vector.shape_cast %95 : vector<1x1x3x2x64xbf16> to vector<3x2x64xbf16>
      %97 = arith.extf %96 : vector<3x2x64xbf16> to vector<3x2x64xf32>
      "tpu.trace_start"() <{level = 10 : i32, message = "nbh,nhf->nbf"}> : () -> ()
      %cst_48 = arith.constant dense<0.000000e+00> : vector<3x2x64xf32>
      %98 = tpu.matmul %88, %4, %cst_48 {dimension_numbers = #tpu.dot_dimension_numbers<[2], [1], [1], [2], [0, 0, 0, 1, 1, 2], [0], [0]>} : vector<3x2x16xf32>, vector<3x16x64xf32>, vector<3x2x64xf32> -> vector<3x2x64xf32>
      "tpu.trace_stop"() : () -> ()
      %99 = arith.addf %97, %98 : vector<3x2x64xf32>
      %100 = vector.extract_strided_slice %99 {offsets = [0, 0, 0], sizes = [3, 2, 48], strides = [1, 1, 1]} : vector<3x2x64xf32> to vector<3x2x48xf32>
      %101 = arith.negf %100 : vector<3x2x48xf32>
      %102 = math.exp %101 : vector<3x2x48xf32>
      %cst_49 = arith.constant 1.000000e+00 : f32
      %103 = vector.broadcast %cst_49 : f32 to vector<3x2x48xf32>
      %104 = arith.addf %103, %102 : vector<3x2x48xf32>
      %105 = arith.divf %103, %104 : vector<3x2x48xf32>
      %106 = vector.extract_strided_slice %99 {offsets = [0, 0, 48], sizes = [3, 2, 16], strides = [1, 1, 1]} : vector<3x2x64xf32> to vector<3x2x16xf32>
      %107 = math.tanh %106 : vector<3x2x16xf32>
      %108 = vector.extract_strided_slice %105 {offsets = [0, 0, 0], sizes = [3, 2, 16], strides = [1, 1, 1]} : vector<3x2x48xf32> to vector<3x2x16xf32>
      %109 = vector.extract_strided_slice %105 {offsets = [0, 0, 16], sizes = [3, 2, 16], strides = [1, 1, 1]} : vector<3x2x48xf32> to vector<3x2x16xf32>
      %110 = vector.extract_strided_slice %105 {offsets = [0, 0, 32], sizes = [3, 2, 16], strides = [1, 1, 1]} : vector<3x2x48xf32> to vector<3x2x16xf32>
      %111 = arith.mulf %109, %86 : vector<3x2x16xf32>
      %112 = arith.mulf %108, %107 : vector<3x2x16xf32>
      %113 = arith.addf %111, %112 : vector<3x2x16xf32>
      %114 = math.tanh %113 : vector<3x2x16xf32>
      %115 = arith.mulf %110, %114 : vector<3x2x16xf32>
      %116 = arith.truncf %115 : vector<3x2x16xf32> to vector<3x2x16xbf16>
      %c0_50 = arith.constant 0 : index
      %117 = arith.index_cast %c3_i32 : i32 to index
      %c0_51 = arith.constant 0 : index
      %c0_52 = arith.constant 0 : index
      %c0_53 = arith.constant 0 : index
      %118 = vector.load %arg4[%c0_50, %117, %c0_51, %c0_52, %c0_53] : memref<1x4x3x2x16xbf16, #tpu.memory_space<vmem>>, vector<1x1x3x2x16xbf16>
      %119 = vector.shape_cast %118 : vector<1x1x3x2x16xbf16> to vector<3x2x16xbf16>
      %120 = vector.shape_cast %116 : vector<3x2x16xbf16> to vector<1x1x3x2x16xbf16>
      tpu.vector_store %arg4[%c0_50, %117, %c0_51, %c0_52, %c0_53], %120 {strides = array<i32>} : memref<1x4x3x2x16xbf16, #tpu.memory_space<vmem>>, vector<1x1x3x2x16xbf16>,
      %c4_i32 = arith.constant 4 : i32
      %c0_54 = arith.constant 0 : index
      %c0_55 = arith.constant 0 : index
      %c0_56 = arith.constant 0 : index
      %121 = vector.load %arg5[%c0_54, %c0_55, %c0_56] : memref<3x2x16xf32, #tpu.memory_space<vmem>>, vector<3x2x16xf32>
      tpu.vector_store %arg5[%c0_54, %c0_55, %c0_56], %115 {strides = array<i32>} : memref<3x2x16xf32, #tpu.memory_space<vmem>>, vector<3x2x16xf32>,
      %c0_57 = arith.constant 0 : index
      %c0_58 = arith.constant 0 : index
      %c0_59 = arith.constant 0 : index
      %122 = vector.load %arg6[%c0_57, %c0_58, %c0_59] : memref<3x2x16xf32, #tpu.memory_space<vmem>>, vector<3x2x16xf32>
      tpu.vector_store %arg6[%c0_57, %c0_58, %c0_59], %113 {strides = array<i32>} : memref<3x2x16xf32, #tpu.memory_space<vmem>>, vector<3x2x16xf32>,
    } else {
    }
    %c1_i32 = arith.constant 1 : i32
    %8 = arith.cmpi eq, %arg0, %c1_i32 : i32
    %9 = arith.extui %8 : i1 to i32
    %c0_i32_6 = arith.constant 0 : i32
    %10 = arith.cmpi ne, %9, %c0_i32_6 : i32
    scf.if %10 {
      %c0_7 = arith.constant 0 : index
      %c0_8 = arith.constant 0 : index
      %c0_9 = arith.constant 0 : index
      %11 = vector.load %arg5[%c0_7, %c0_8, %c0_9] : memref<3x2x16xf32, #tpu.memory_space<vmem>>, vector<3x2x16xf32>
      %c0_10 = arith.constant 0 : index
      %c0_11 = arith.constant 0 : index
      %c0_12 = arith.constant 0 : index
      %12 = vector.load %arg6[%c0_10, %c0_11, %c0_12] : memref<3x2x16xf32, #tpu.memory_space<vmem>>, vector<3x2x16xf32>
      %c0_i32_13 = arith.constant 0 : i32
      %c3_i32 = arith.constant 3 : i32
      %13 = arith.subi %c3_i32, %c0_i32_13 : i32
      %c0_14 = arith.constant 0 : index
      %14 = arith.index_cast %13 : i32 to index
      %c0_15 = arith.constant 0 : index
      %c0_16 = arith.constant 0 : index
      %c0_17 = arith.constant 0 : index
      %15 = vector.load %arg2[%c0_14, %14, %c0_15, %c0_16, %c0_17] : memref<1x4x3x2x64xbf16, #tpu.memory_space<vmem>>, vector<1x1x3x2x64xbf16>
      %16 = vector.shape_cast %15 : vector<1x1x3x2x64xbf16> to vector<3x2x64xbf16>
      %17 = arith.extf %16 : vector<3x2x64xbf16> to vector<3x2x64xf32>
      "tpu.trace_start"() <{level = 10 : i32, message = "nbh,nhf->nbf"}> : () -> ()
      %cst = arith.constant dense<0.000000e+00> : vector<3x2x64xf32>
      %18 = tpu.matmul %11, %4, %cst {dimension_numbers = #tpu.dot_dimension_numbers<[2], [1], [1], [2], [0, 0, 0, 1, 1, 2], [0], [0]>} : vector<3x2x16xf32>, vector<3x16x64xf32>, vector<3x2x64xf32> -> vector<3x2x64xf32>
      "tpu.trace_stop"() : () -> ()
      %19 = arith.addf %17, %18 : vector<3x2x64xf32>
      %20 = vector.extract_strided_slice %19 {offsets = [0, 0, 0], sizes = [3, 2, 48], strides = [1, 1, 1]} : vector<3x2x64xf32> to vector<3x2x48xf32>
      %21 = arith.negf %20 : vector<3x2x48xf32>
      %22 = math.exp %21 : vector<3x2x48xf32>
      %cst_18 = arith.constant 1.000000e+00 : f32
      %23 = vector.broadcast %cst_18 : f32 to vector<3x2x48xf32>
      %24 = arith.addf %23, %22 : vector<3x2x48xf32>
      %25 = arith.divf %23, %24 : vector<3x2x48xf32>
      %26 = vector.extract_strided_slice %19 {offsets = [0, 0, 48], sizes = [3, 2, 16], strides = [1, 1, 1]} : vector<3x2x64xf32> to vector<3x2x16xf32>
      %27 = math.tanh %26 : vector<3x2x16xf32>
      %28 = vector.extract_strided_slice %25 {offsets = [0, 0, 0], sizes = [3, 2, 16], strides = [1, 1, 1]} : vector<3x2x48xf32> to vector<3x2x16xf32>
      %29 = vector.extract_strided_slice %25 {offsets = [0, 0, 16], sizes = [3, 2, 16], strides = [1, 1, 1]} : vector<3x2x48xf32> to vector<3x2x16xf32>
      %30 = vector.extract_strided_slice %25 {offsets = [0, 0, 32], sizes = [3, 2, 16], strides = [1, 1, 1]} : vector<3x2x48xf32> to vector<3x2x16xf32>
      %31 = arith.mulf %29, %12 : vector<3x2x16xf32>
      %32 = arith.mulf %28, %27 : vector<3x2x16xf32>
      %33 = arith.addf %31, %32 : vector<3x2x16xf32>
      %34 = math.tanh %33 : vector<3x2x16xf32>
      %35 = arith.mulf %30, %34 : vector<3x2x16xf32>
      %36 = arith.truncf %35 : vector<3x2x16xf32> to vector<3x2x16xbf16>
      %c0_19 = arith.constant 0 : index
      %37 = arith.index_cast %13 : i32 to index
      %c0_20 = arith.constant 0 : index
      %c0_21 = arith.constant 0 : index
      %c0_22 = arith.constant 0 : index
      %38 = vector.load %arg4[%c0_19, %37, %c0_20, %c0_21, %c0_22] : memref<1x4x3x2x16xbf16, #tpu.memory_space<vmem>>, vector<1x1x3x2x16xbf16>
      %39 = vector.shape_cast %38 : vector<1x1x3x2x16xbf16> to vector<3x2x16xbf16>
      %40 = vector.shape_cast %36 : vector<3x2x16xbf16> to vector<1x1x3x2x16xbf16>
      tpu.vector_store %arg4[%c0_19, %37, %c0_20, %c0_21, %c0_22], %40 {strides = array<i32>} : memref<1x4x3x2x16xbf16, #tpu.memory_space<vmem>>, vector<1x1x3x2x16xbf16>,
      %c1_i32_23 = arith.constant 1 : i32
      %c3_i32_24 = arith.constant 3 : i32
      %41 = arith.subi %c3_i32_24, %c1_i32_23 : i32
      %c0_25 = arith.constant 0 : index
      %42 = arith.index_cast %41 : i32 to index
      %c0_26 = arith.constant 0 : index
      %c0_27 = arith.constant 0 : index
      %c0_28 = arith.constant 0 : index
      %43 = vector.load %arg2[%c0_25, %42, %c0_26, %c0_27, %c0_28] : memref<1x4x3x2x64xbf16, #tpu.memory_space<vmem>>, vector<1x1x3x2x64xbf16>
      %44 = vector.shape_cast %43 : vector<1x1x3x2x64xbf16> to vector<3x2x64xbf16>
      %45 = arith.extf %44 : vector<3x2x64xbf16> to vector<3x2x64xf32>
      "tpu.trace_start"() <{level = 10 : i32, message = "nbh,nhf->nbf"}> : () -> ()
      %cst_29 = arith.constant dense<0.000000e+00> : vector<3x2x64xf32>
      %46 = tpu.matmul %35, %4, %cst_29 {dimension_numbers = #tpu.dot_dimension_numbers<[2], [1], [1], [2], [0, 0, 0, 1, 1, 2], [0], [0]>} : vector<3x2x16xf32>, vector<3x16x64xf32>, vector<3x2x64xf32> -> vector<3x2x64xf32>
      "tpu.trace_stop"() : () -> ()
      %47 = arith.addf %45, %46 : vector<3x2x64xf32>
      %48 = vector.extract_strided_slice %47 {offsets = [0, 0, 0], sizes = [3, 2, 48], strides = [1, 1, 1]} : vector<3x2x64xf32> to vector<3x2x48xf32>
      %49 = arith.negf %48 : vector<3x2x48xf32>
      %50 = math.exp %49 : vector<3x2x48xf32>
      %cst_30 = arith.constant 1.000000e+00 : f32
      %51 = vector.broadcast %cst_30 : f32 to vector<3x2x48xf32>
      %52 = arith.addf %51, %50 : vector<3x2x48xf32>
      %53 = arith.divf %51, %52 : vector<3x2x48xf32>
      %54 = vector.extract_strided_slice %47 {offsets = [0, 0, 48], sizes = [3, 2, 16], strides = [1, 1, 1]} : vector<3x2x64xf32> to vector<3x2x16xf32>
      %55 = math.tanh %54 : vector<3x2x16xf32>
      %56 = vector.extract_strided_slice %53 {offsets = [0, 0, 0], sizes = [3, 2, 16], strides = [1, 1, 1]} : vector<3x2x48xf32> to vector<3x2x16xf32>
      %57 = vector.extract_strided_slice %53 {offsets = [0, 0, 16], sizes = [3, 2, 16], strides = [1, 1, 1]} : vector<3x2x48xf32> to vector<3x2x16xf32>
      %58 = vector.extract_strided_slice %53 {offsets = [0, 0, 32], sizes = [3, 2, 16], strides = [1, 1, 1]} : vector<3x2x48xf32> to vector<3x2x16xf32>
      %59 = arith.mulf %57, %33 : vector<3x2x16xf32>
      %60 = arith.mulf %56, %55 : vector<3x2x16xf32>
      %61 = arith.addf %59, %60 : vector<3x2x16xf32>
      %62 = math.tanh %61 : vector<3x2x16xf32>
      %63 = arith.mulf %58, %62 : vector<3x2x16xf32>
      %64 = arith.truncf %63 : vector<3x2x16xf32> to vector<3x2x16xbf16>
      %c0_31 = arith.constant 0 : index
      %65 = arith.index_cast %41 : i32 to index
      %c0_32 = arith.constant 0 : index
      %c0_33 = arith.constant 0 : index
      %c0_34 = arith.constant 0 : index
      %66 = vector.load %arg4[%c0_31, %65, %c0_32, %c0_33, %c0_34] : memref<1x4x3x2x16xbf16, #tpu.memory_space<vmem>>, vector<1x1x3x2x16xbf16>
      %67 = vector.shape_cast %66 : vector<1x1x3x2x16xbf16> to vector<3x2x16xbf16>
      %68 = vector.shape_cast %64 : vector<3x2x16xbf16> to vector<1x1x3x2x16xbf16>
      tpu.vector_store %arg4[%c0_31, %65, %c0_32, %c0_33, %c0_34], %68 {strides = array<i32>} : memref<1x4x3x2x16xbf16, #tpu.memory_space<vmem>>, vector<1x1x3x2x16xbf16>,
      %c2_i32 = arith.constant 2 : i32
      %c3_i32_35 = arith.constant 3 : i32
      %69 = arith.subi %c3_i32_35, %c2_i32 : i32
      %c0_36 = arith.constant 0 : index
      %70 = arith.index_cast %69 : i32 to index
      %c0_37 = arith.constant 0 : index
      %c0_38 = arith.constant 0 : index
      %c0_39 = arith.constant 0 : index
      %71 = vector.load %arg2[%c0_36, %70, %c0_37, %c0_38, %c0_39] : memref<1x4x3x2x64xbf16, #tpu.memory_space<vmem>>, vector<1x1x3x2x64xbf16>
      %72 = vector.shape_cast %71 : vector<1x1x3x2x64xbf16> to vector<3x2x64xbf16>
      %73 = arith.extf %72 : vector<3x2x64xbf16> to vector<3x2x64xf32>
      "tpu.trace_start"() <{level = 10 : i32, message = "nbh,nhf->nbf"}> : () -> ()
      %cst_40 = arith.constant dense<0.000000e+00> : vector<3x2x64xf32>
      %74 = tpu.matmul %63, %4, %cst_40 {dimension_numbers = #tpu.dot_dimension_numbers<[2], [1], [1], [2], [0, 0, 0, 1, 1, 2], [0], [0]>} : vector<3x2x16xf32>, vector<3x16x64xf32>, vector<3x2x64xf32> -> vector<3x2x64xf32>
      "tpu.trace_stop"() : () -> ()
      %75 = arith.addf %73, %74 : vector<3x2x64xf32>
      %76 = vector.extract_strided_slice %75 {offsets = [0, 0, 0], sizes = [3, 2, 48], strides = [1, 1, 1]} : vector<3x2x64xf32> to vector<3x2x48xf32>
      %77 = arith.negf %76 : vector<3x2x48xf32>
      %78 = math.exp %77 : vector<3x2x48xf32>
      %cst_41 = arith.constant 1.000000e+00 : f32
      %79 = vector.broadcast %cst_41 : f32 to vector<3x2x48xf32>
      %80 = arith.addf %79, %78 : vector<3x2x48xf32>
      %81 = arith.divf %79, %80 : vector<3x2x48xf32>
      %82 = vector.extract_strided_slice %75 {offsets = [0, 0, 48], sizes = [3, 2, 16], strides = [1, 1, 1]} : vector<3x2x64xf32> to vector<3x2x16xf32>
      %83 = math.tanh %82 : vector<3x2x16xf32>
      %84 = vector.extract_strided_slice %81 {offsets = [0, 0, 0], sizes = [3, 2, 16], strides = [1, 1, 1]} : vector<3x2x48xf32> to vector<3x2x16xf32>
      %85 = vector.extract_strided_slice %81 {offsets = [0, 0, 16], sizes = [3, 2, 16], strides = [1, 1, 1]} : vector<3x2x48xf32> to vector<3x2x16xf32>
      %86 = vector.extract_strided_slice %81 {offsets = [0, 0, 32], sizes = [3, 2, 16], strides = [1, 1, 1]} : vector<3x2x48xf32> to vector<3x2x16xf32>
      %87 = arith.mulf %85, %61 : vector<3x2x16xf32>
      %88 = arith.mulf %84, %83 : vector<3x2x16xf32>
      %89 = arith.addf %87, %88 : vector<3x2x16xf32>
      %90 = math.tanh %89 : vector<3x2x16xf32>
      %91 = arith.mulf %86, %90 : vector<3x2x16xf32>
      %92 = arith.truncf %91 : vector<3x2x16xf32> to vector<3x2x16xbf16>
      %c0_42 = arith.constant 0 : index
      %93 = arith.index_cast %69 : i32 to index
      %c0_43 = arith.constant 0 : index
      %c0_44 = arith.constant 0 : index
      %c0_45 = arith.constant 0 : index
      %94 = vector.load %arg4[%c0_42, %93, %c0_43, %c0_44, %c0_45] : memref<1x4x3x2x16xbf16, #tpu.memory_space<vmem>>, vector<1x1x3x2x16xbf16>
      %95 = vector.shape_cast %94 : vector<1x1x3x2x16xbf16> to vector<3x2x16xbf16>
      %96 = vector.shape_cast %92 : vector<3x2x16xbf16> to vector<1x1x3x2x16xbf16>
      tpu.vector_store %arg4[%c0_42, %93, %c0_43, %c0_44, %c0_45], %96 {strides = array<i32>} : memref<1x4x3x2x16xbf16, #tpu.memory_space<vmem>>, vector<1x1x3x2x16xbf16>,
      %c3_i32_46 = arith.constant 3 : i32
      %c3_i32_47 = arith.constant 3 : i32
      %97 = arith.subi %c3_i32_47, %c3_i32_46 : i32
      %c0_48 = arith.constant 0 : index
      %98 = arith.index_cast %97 : i32 to index
      %c0_49 = arith.constant 0 : index
      %c0_50 = arith.constant 0 : index
      %c0_51 = arith.constant 0 : index
      %99 = vector.load %arg2[%c0_48, %98, %c0_49, %c0_50, %c0_51] : memref<1x4x3x2x64xbf16, #tpu.memory_space<vmem>>, vector<1x1x3x2x64xbf16>
      %100 = vector.shape_cast %99 : vector<1x1x3x2x64xbf16> to vector<3x2x64xbf16>
      %101 = arith.extf %100 : vector<3x2x64xbf16> to vector<3x2x64xf32>
      "tpu.trace_start"() <{level = 10 : i32, message = "nbh,nhf->nbf"}> : () -> ()
      %cst_52 = arith.constant dense<0.000000e+00> : vector<3x2x64xf32>
      %102 = tpu.matmul %91, %4, %cst_52 {dimension_numbers = #tpu.dot_dimension_numbers<[2], [1], [1], [2], [0, 0, 0, 1, 1, 2], [0], [0]>} : vector<3x2x16xf32>, vector<3x16x64xf32>, vector<3x2x64xf32> -> vector<3x2x64xf32>
      "tpu.trace_stop"() : () -> ()
      %103 = arith.addf %101, %102 : vector<3x2x64xf32>
      %104 = vector.extract_strided_slice %103 {offsets = [0, 0, 0], sizes = [3, 2, 48], strides = [1, 1, 1]} : vector<3x2x64xf32> to vector<3x2x48xf32>
      %105 = arith.negf %104 : vector<3x2x48xf32>
      %106 = math.exp %105 : vector<3x2x48xf32>
      %cst_53 = arith.constant 1.000000e+00 : f32
      %107 = vector.broadcast %cst_53 : f32 to vector<3x2x48xf32>
      %108 = arith.addf %107, %106 : vector<3x2x48xf32>
      %109 = arith.divf %107, %108 : vector<3x2x48xf32>
      %110 = vector.extract_strided_slice %103 {offsets = [0, 0, 48], sizes = [3, 2, 16], strides = [1, 1, 1]} : vector<3x2x64xf32> to vector<3x2x16xf32>
      %111 = math.tanh %110 : vector<3x2x16xf32>
      %112 = vector.extract_strided_slice %109 {offsets = [0, 0, 0], sizes = [3, 2, 16], strides = [1, 1, 1]} : vector<3x2x48xf32> to vector<3x2x16xf32>
      %113 = vector.extract_strided_slice %109 {offsets = [0, 0, 16], sizes = [3, 2, 16], strides = [1, 1, 1]} : vector<3x2x48xf32> to vector<3x2x16xf32>
      %114 = vector.extract_strided_slice %109 {offsets = [0, 0, 32], sizes = [3, 2, 16], strides = [1, 1, 1]} : vector<3x2x48xf32> to vector<3x2x16xf32>
      %115 = arith.mulf %113, %89 : vector<3x2x16xf32>
      %116 = arith.mulf %112, %111 : vector<3x2x16xf32>
      %117 = arith.addf %115, %116 : vector<3x2x16xf32>
      %118 = math.tanh %117 : vector<3x2x16xf32>
      %119 = arith.mulf %114, %118 : vector<3x2x16xf32>
      %120 = arith.truncf %119 : vector<3x2x16xf32> to vector<3x2x16xbf16>
      %c0_54 = arith.constant 0 : index
      %121 = arith.index_cast %97 : i32 to index
      %c0_55 = arith.constant 0 : index
      %c0_56 = arith.constant 0 : index
      %c0_57 = arith.constant 0 : index
      %122 = vector.load %arg4[%c0_54, %121, %c0_55, %c0_56, %c0_57] : memref<1x4x3x2x16xbf16, #tpu.memory_space<vmem>>, vector<1x1x3x2x16xbf16>
      %123 = vector.shape_cast %122 : vector<1x1x3x2x16xbf16> to vector<3x2x16xbf16>
      %124 = vector.shape_cast %120 : vector<3x2x16xbf16> to vector<1x1x3x2x16xbf16>
      tpu.vector_store %arg4[%c0_54, %121, %c0_55, %c0_56, %c0_57], %124 {strides = array<i32>} : memref<1x4x3x2x16xbf16, #tpu.memory_space<vmem>>, vector<1x1x3x2x16xbf16>,
      %c4_i32 = arith.constant 4 : i32
      %c0_58 = arith.constant 0 : index
      %c0_59 = arith.constant 0 : index
      %c0_60 = arith.constant 0 : index
      %125 = vector.load %arg5[%c0_58, %c0_59, %c0_60] : memref<3x2x16xf32, #tpu.memory_space<vmem>>, vector<3x2x16xf32>
      tpu.vector_store %arg5[%c0_58, %c0_59, %c0_60], %119 {strides = array<i32>} : memref<3x2x16xf32, #tpu.memory_space<vmem>>, vector<3x2x16xf32>,
      %c0_61 = arith.constant 0 : index
      %c0_62 = arith.constant 0 : index
      %c0_63 = arith.constant 0 : index
      %126 = vector.load %arg6[%c0_61, %c0_62, %c0_63] : memref<3x2x16xf32, #tpu.memory_space<vmem>>, vector<3x2x16xf32>
      tpu.vector_store %arg6[%c0_61, %c0_62, %c0_63], %117 {strides = array<i32>} : memref<3x2x16xf32, #tpu.memory_space<vmem>>, vector<3x2x16xf32>,
    } else {
    }
    return
  }
  func.func @transform_0(%arg0: i32, %arg1: i32) -> (i32, i32, i32, i32, i32) {
    %c2_i32 = arith.constant 2 : i32
    %0 = arith.muli %c2_i32, %arg1 : i32
    %c1_i32 = arith.constant 1 : i32
    %1 = arith.subi %c1_i32, %0 : i32
    %2 = arith.muli %arg0, %1 : i32
    %3 = arith.addi %arg1, %2 : i32
    %c0_i32 = arith.constant 0 : i32
    %c0_i32_0 = arith.constant 0 : i32
    %c0_i32_1 = arith.constant 0 : i32
    %c0_i32_2 = arith.constant 0 : i32
    return %arg0, %3, %c0_i32, %c0_i32_0, %c0_i32_1 : i32, i32, i32, i32, i32
  }
  func.func @transform_1(%arg0: i32, %arg1: i32) -> (i32, i32, i32, i32) {
    %c0_i32 = arith.constant 0 : i32
    %c0_i32_0 = arith.constant 0 : i32
    %c0_i32_1 = arith.constant 0 : i32
    %c0_i32_2 = arith.constant 0 : i32
    return %arg0, %c0_i32, %c0_i32_0, %c0_i32_1 : i32, i32, i32, i32
  }
  func.func @transform_2(%arg0: i32, %arg1: i32) -> (i32, i32, i32, i32, i32) {
    %c2_i32 = arith.constant 2 : i32
    %0 = arith.muli %c2_i32, %arg1 : i32
    %c1_i32 = arith.constant 1 : i32
    %1 = arith.subi %c1_i32, %0 : i32
    %2 = arith.muli %arg0, %1 : i32
    %3 = arith.addi %arg1, %2 : i32
    %c0_i32 = arith.constant 0 : i32
    %c0_i32_0 = arith.constant 0 : i32
    %c0_i32_1 = arith.constant 0 : i32
    %c0_i32_2 = arith.constant 0 : i32
    return %arg0, %3, %c0_i32, %c0_i32_0, %c0_i32_1 : i32, i32, i32, i32, i32
  }
}

</mosaic_0001>

<llo_original>
// kernel: tpu_custom_call.1
$region0: #{tpu_custom_call.1}
  #allocation0 [shape = 'u32[]', space=smem, size = 0x4, offset = 0x4, fixed_abs, tag = 'smem constant byte address 0x4 - core index']
  #allocation1 [shape = 'u32[144,128]{1,0:T(1,128)}', space=vmem, size = 0x12000, scoped, tag = 'internal scratch']
  #allocation2 [shape = 'f32[3,2,16]{2,1,0:T(2,128)}', space=vmem, size = 0xc00, scoped, tag = 'scratch operand']
  #allocation3 [shape = 'f32[3,2,16]{2,1,0:T(2,128)}', space=vmem, size = 0xc00, scoped, tag = 'scratch operand']
  %s0 = inlined_call_operand.hbm [shape: bf16[2,8,3,2,64], index: 0, kind: input, shape index: {}]
  %s1 = inlined_call_operand.hbm [shape: f32[2,3,16,64], index: 1, kind: input, shape index: {}]
  %s2 = inlined_call_operand.hbm [shape: bf16[2,8,3,2,16], index: 2, kind: output, shape index: {}]
  %s3 = sld [smem:[#allocation0]]
  $region61: #{tpu_custom_call.1} parent=0
    _
  %s5 = ssub.s32 1, %s3
  %s6 = scalar_select 0, %s5, %s3
  $region1: #{tpu_custom_call.1} parent=0
    #allocation4 [shape = 'u8[12288]{0}', space=vmem, size = 0x3000, scoped, tag = 'input window, operand 0']
    #allocation5 [shape = 's32[2]{0}', space=sflag, size = 0x8, scoped, tag = 'scoped memory for tpu_custom_call.1']
    #allocation6 [shape = 's32[2]{0}', space=sflag, size = 0x8, scoped, tag = 'scoped memory for tpu_custom_call.1']
    #allocation7 [shape = 'u8[49152]{0}', space=vmem, size = 0xc000, scoped, tag = 'input window, operand 1']
    #allocation8 [shape = 's32[2]{0}', space=sflag, size = 0x8, scoped, tag = 'scoped memory for tpu_custom_call.1']
    #allocation9 [shape = 'u8[12288]{0}', space=vmem, size = 0x3000, scoped, tag = 'output window, operand 0']
    %7 = vsyncpa [#allocation5], 0
    %s8 = scalar_lea.sflag [#allocation5], 1
    %9 = vsyncpa %s8, 0
    %10 = vsyncpa [#allocation8], 0
    %s11 = scalar_lea.sflag [#allocation8], 1
    %12 = vsyncpa %s11, 0
    %13 = vsyncpa [#allocation6], 0
    %s14 = scalar_lea.sflag [#allocation6], 1
    %15 = vsyncpa %s14, 0
    loop: start=0, step=1, limit=6
    $region2: #{tpu_custom_call.1} parent=1 // loop_pre_header
      _
    $region3: #{tpu_custom_call.1} parent=1 // loop_header
      %s17 = sphi 0, %s21
      %p18 = scmp.ge.s32.totalorder %s17, 6
      %s24 = sphi 0, %s36
      %s25 = sphi 0, %s32
      %s26 = sphi 0, %s24
      %s27 = sphi 0, %s25
      %s28 = sphi 0, %s26
      %s29 = sphi 0, %s27
      %s49 = sphi 0, %s51
      %s52 = sphi 0, %s49
      %s53 = sphi 0, %s52
      %s69 = sphi 0, %s53
      %s75 = sphi 0, %s77
      %s78 = sphi 0, %s75
      %s79 = sphi 0, %s78
      %s95 = sphi 0, %s79
      %s111 = sphi 0, %s113
      %s114 = sphi 0, %s111
      %s115 = sphi 0, %s114
      %s131 = sphi 0, %s115
    $region4: #{tpu_custom_call.1} parent=1 // loop_header_branch
      %20 = sbr.rel (%p18) target = $region8
    $region5: #{tpu_custom_call.1} parent=1 // loop_body
      %s22 = ssub.s32 %s17, 1
      %s23 = ssub.s32 %s17, 2
      %s30 = sadd.s32 1, %s25
      %p31 = scmp.ge.s32.totalorder %s30, 2
      %s32 = scalar_select %p31, 0, %s30
      %s33 = sadd.s32 1, %s24
      %s34 = scalar_select %p31, %s33, %s24
      %p35 = scmp.ge.s32.totalorder %s34, 2
      %s36 = scalar_select %p35, 0, %s34
      %s37 = smul.u32 %s25, 2
      %s38 = ssub.s32 1, %s37
      %s39 = smul.u32 %s24, %s38
      %s40 = sadd.s32 %s25, %s39
      %s41 = smul.u32 %s32, 2
      %s42 = ssub.s32 1, %s41
      %s43 = smul.u32 %s36, %s42
      %s44 = sadd.s32 %s32, %s43
      %s45 = ssub.s32 %s24, %s36
      %s46 = ssub.s32 %s40, %s44
      %s47 = sor.u32 %s45, %s46
      %p48 = scmp.eq.s32.totalorder %s47, 0
      %s50 = sadd.s32 %s49, 1
      %s51 = scalar_select %p48, %s49, %s50
      %p54 = pneg %p48
      %p55 = scmp.eq.s32.totalorder %s17, 3
      %p56 = por %p54, %p55
      %p57 = scmp.ne.s32.totalorder %s49, %s52
      %p58 = scmp.eq.s32.totalorder %s17, 0
      %p59 = por %p57, %p58
      %p60 = scmp.ne.s32.totalorder %s49, %s52
      %p61 = scmp.eq.s32.totalorder %s22, 3
      %p62 = por %p60, %p61
      %p63 = scmp.ne.s32.totalorder %s52, %s53
      %p64 = scmp.eq.s32.totalorder %s22, 0
      %p65 = por %p63, %p64
      %p66 = scmp.ne.s32.totalorder %s52, %s53
      %p67 = scmp.eq.s32.totalorder %s23, 3
      %p68 = por %p66, %p67
      %p70 = scmp.ne.s32.totalorder %s53, %s69
      %p71 = scmp.eq.s32.totalorder %s23, 0
      %p72 = por %p70, %p71
      %s73 = ssub.s32 %s24, %s36
      %p74 = scmp.eq.s32.totalorder %s73, 0
      %s76 = sadd.s32 %s75, 1
      %s77 = scalar_select %p74, %s75, %s76
      %p80 = pneg %p74
      %p81 = scmp.eq.s32.totalorder %s17, 3
      %p82 = por %p80, %p81
      %p83 = scmp.ne.s32.totalorder %s75, %s78
      %p84 = scmp.eq.s32.totalorder %s17, 0
      %p85 = por %p83, %p84
      %p86 = scmp.ne.s32.totalorder %s75, %s78
      %p87 = scmp.eq.s32.totalorder %s22, 3
      %p88 = por %p86, %p87
      %p89 = scmp.ne.s32.totalorder %s78, %s79
      %p90 = scmp.eq.s32.totalorder %s22, 0
      %p91 = por %p89, %p90
      %p92 = scmp.ne.s32.totalorder %s78, %s79
      %p93 = scmp.eq.s32.totalorder %s23, 3
      %p94 = por %p92, %p93
      %p96 = scmp.ne.s32.totalorder %s79, %s95
      %p97 = scmp.eq.s32.totalorder %s23, 0
      %p98 = por %p96, %p97
      %s99 = smul.u32 %s25, 2
      %s100 = ssub.s32 1, %s99
      %s101 = smul.u32 %s24, %s100
      %s102 = sadd.s32 %s25, %s101
      %s103 = smul.u32 %s32, 2
      %s104 = ssub.s32 1, %s103
      %s105 = smul.u32 %s36, %s104
      %s106 = sadd.s32 %s32, %s105
      %s107 = ssub.s32 %s24, %s36
      %s108 = ssub.s32 %s102, %s106
      %s109 = sor.u32 %s107, %s108
      %p110 = scmp.eq.s32.totalorder %s109, 0
      %s112 = sadd.s32 %s111, 1
      %s113 = scalar_select %p110, %s111, %s112
      %p116 = pneg %p110
      %p117 = scmp.eq.s32.totalorder %s17, 3
      %p118 = por %p116, %p117
      %p119 = scmp.ne.s32.totalorder %s111, %s114
      %p120 = scmp.eq.s32.totalorder %s17, 0
      %p121 = por %p119, %p120
      %p122 = scmp.ne.s32.totalorder %s111, %s114
      %p123 = scmp.eq.s32.totalorder %s22, 3
      %p124 = por %p122, %p123
      %p125 = scmp.ne.s32.totalorder %s114, %s115
      %p126 = scmp.eq.s32.totalorder %s22, 0
      %p127 = por %p125, %p126
      %p128 = scmp.ne.s32.totalorder %s114, %s115
      %p129 = scmp.eq.s32.totalorder %s23, 3
      %p130 = por %p128, %p129
      %p132 = scmp.ne.s32.totalorder %s115, %s131
      %p133 = scmp.eq.s32.totalorder %s23, 0
      %p134 = por %p132, %p133
      %p135 = scmp.le.s32.totalorder 1, %s17
      %p136 = scmp.lt.s32.totalorder %s17, 5
      %p137 = pnand %p135, %p136
      %p138 = pneg %p137
      // Predicated region
      $region9: #{tpu_custom_call.1} parent=5 // pred_check
        _
      $region10: #{tpu_custom_call.1} parent=5 // pred_check_branch
        %140 = sbr.rel (%p137) target = $region12
      $region11: #{tpu_custom_call.1} parent=5 // pred_region
        %s141 = ssub.s32 %s17, 1
      $region12: #{tpu_custom_call.1} parent=5 // pred_fallthru
        _
      %p142 = scmp.lt.s32.totalorder %s17, 4
      // Predicated region
      $region13: #{tpu_custom_call.1} parent=5 // pred_check
        %p143 = pneg %p142
      $region14: #{tpu_custom_call.1} parent=5 // pred_check_branch
        %145 = sbr.rel (%p143) target = $region16
      $region15: #{tpu_custom_call.1} parent=5 // pred_region
        // Predicated region
        $region17: #{tpu_custom_call.1} parent=15 // pred_check
          %p146 = pneg %p59
        $region18: #{tpu_custom_call.1} parent=15 // pred_check_branch
          %148 = sbr.rel (%p146) target = $region20
        $region19: #{tpu_custom_call.1} parent=15 // pred_region
          %s149 = sand.u32 %s49, 1
          %s150 = scalar_lea.sflag [#allocation5], %s149
          %s151 = sand.u32 %s49, 1
          %s152 = smul.addr %s151, 12
          %s153 = scalar_lea.vmem [#allocation4], %s152
          %s154 = smul.u32 %s25, 2
          %s155 = ssub.s32 1, %s154
          %s156 = smul.u32 %s24, %s155
          %s157 = sadd.s32 %s25, %s156
          %s158 = smul.u32 4, %s157
          %s160 = ssub.s32 192, 192
          %161 = vsyncadd %s150, %s160
          %s162 = smul.addr %s158, 3
          %s163 = smul.addr %s24, 24
          %s164 = sadd.s32 %s162, %s163
          %s165 = smul.addr %s164, 16
          %s166 = scalar_lea.hbm %s0, %s165
          %s167 = sshll.u32 %s153, 4
          %s168 = int_to_ptr.vmem [resolvable:$true] %s167
          %173 = dma.hbm_to_vmem [thread:$0]  %s166, 192, %s168, %s150, 16, 16, 1
        $region20: #{tpu_custom_call.1} parent=15 // pred_fallthru
          _
        // Predicated region
        $region21: #{tpu_custom_call.1} parent=15 // pred_check
          %p174 = pneg %p85
        $region22: #{tpu_custom_call.1} parent=15 // pred_check_branch
          %176 = sbr.rel (%p174) target = $region24
        $region23: #{tpu_custom_call.1} parent=15 // pred_region
          %s177 = sand.u32 %s75, 1
          %s178 = scalar_lea.sflag [#allocation8], %s177
          %s179 = sand.u32 %s75, 1
          %s180 = smul.addr %s179, 48
          %s181 = scalar_lea.vmem [#allocation7], %s180
          %s183 = ssub.s32 768, 768
          %184 = vsyncadd %s178, %s183
          %s185 = smul.addr %s24, 6
          %s186 = smul.addr %s185, 128
          %s187 = scalar_lea.hbm %s1, %s186
          %s188 = sshll.u32 %s181, 4
          %s189 = int_to_ptr.vmem [resolvable:$true] %s188
          %194 = dma.hbm_to_vmem [thread:$0]  %s187, 768, %s189, %s178, 128, 128, 8
        $region24: #{tpu_custom_call.1} parent=15 // pred_fallthru
          _
      $region16: #{tpu_custom_call.1} parent=5 // pred_fallthru
        _
      %p195 = scmp.le.s32.totalorder 1, %s17
      %p196 = scmp.lt.s32.totalorder %s17, 5
      %p197 = pnand %p195, %p196
      %p198 = pneg %p197
      // Predicated region
      $region25: #{tpu_custom_call.1} parent=5 // pred_check
        _
      $region26: #{tpu_custom_call.1} parent=5 // pred_check_branch
        %200 = sbr.rel (%p197) target = $region28
      $region27: #{tpu_custom_call.1} parent=5 // pred_region
        %s201 = ssub.s32 %s17, 1
        %s202 = sand.u32 %s52, 1
        %s203 = scalar_lea.sflag [#allocation5], %s202
        %s204 = sand.u32 %s52, 1
        %s205 = smul.addr %s204, 12
        %s206 = scalar_lea.vmem [#allocation4], %s205
        // Predicated region
        $region29: #{tpu_custom_call.1} parent=27 // pred_check
          %p207 = pneg %p65
        $region30: #{tpu_custom_call.1} parent=27 // pred_check_branch
          %209 = sbr.rel (%p207) target = $region32
        $region31: #{tpu_custom_call.1} parent=27 // pred_region
          %210 = dma.done %s203, 192
        $region32: #{tpu_custom_call.1} parent=27 // pred_fallthru
          _
        %s211 = sand.u32 %s78, 1
        %s212 = scalar_lea.sflag [#allocation8], %s211
        %s213 = sand.u32 %s78, 1
        %s214 = smul.addr %s213, 48
        %s215 = scalar_lea.vmem [#allocation7], %s214
        // Predicated region
        $region33: #{tpu_custom_call.1} parent=27 // pred_check
          %p216 = pneg %p91
        $region34: #{tpu_custom_call.1} parent=27 // pred_check_branch
          %218 = sbr.rel (%p216) target = $region36
        $region35: #{tpu_custom_call.1} parent=27 // pred_region
          %219 = dma.done %s212, 768
        $region36: #{tpu_custom_call.1} parent=27 // pred_fallthru
          _
        %s220 = sand.u32 %s52, 1
        %s221 = scalar_lea.sflag [#allocation5], %s220
        %s222 = sand.u32 %s52, 1
        %s223 = smul.addr %s222, 12
        %s224 = scalar_lea.vmem [#allocation4], %s223
        %p225 = pneg %p65
        %p226 = pneg %p62
        %s227 = sand.u32 %s78, 1
        %s228 = scalar_lea.sflag [#allocation8], %s227
        %s229 = sand.u32 %s78, 1
        %s230 = smul.addr %s229, 48
        %s231 = scalar_lea.vmem [#allocation7], %s230
        %p232 = pneg %p91
        %p233 = pneg %p88
        %p234 = pneg %p127
        %p235 = pneg %p124
        %s236 = sand.u32 %s114, 1
        %s237 = scalar_lea.sflag [#allocation6], %s236
        %s238 = sand.u32 %s114, 1
        %s239 = smul.addr %s238, 12
        %s240 = scalar_lea.vmem [#allocation9], %s239
        %s241 = smul.u32 %s27, 2
        %s242 = ssub.s32 1, %s241
        %s243 = smul.u32 %s26, %s242
        %s244 = sadd.s32 %s27, %s243
        %s245 = smul.u32 4, %s244
        %s246 = smul.u32 %s27, 2
        %s247 = ssub.s32 1, %s246
        %s248 = smul.u32 %s26, %s247
        %s249 = sadd.s32 %s27, %s248
        %s250 = smul.u32 4, %s249
        %p251 = scmp.eq.s32.totalorder %s27, 0
        // Predicated region
        $region37: #{tpu_custom_call.1} parent=27 // pred_check
          %p252 = pneg %p251
        $region38: #{tpu_custom_call.1} parent=27 // pred_check_branch
          %254 = sbr.rel (%p252) target = $region40
        $region39: #{tpu_custom_call.1} parent=27 // pred_region
          %vm255 = vcmask 123904
          %256 = vst.msk [vmem:[#allocation2] sm:$0x3] %vm255, 0.0
          %257 = vst.msk [vmem:[#allocation2 + $0x2] sm:$0x3] %vm255, 0.0
          %258 = vst.msk [vmem:[#allocation2 + $0x4] sm:$0x3] %vm255, 0.0
          %259 = vst.msk [vmem:[#allocation3] sm:$0x3] %vm255, 0.0
          %260 = vst.msk [vmem:[#allocation3 + $0x2] sm:$0x3] %vm255, 0.0
          %261 = vst.msk [vmem:[#allocation3 + $0x4] sm:$0x3] %vm255, 0.0
        $region40: #{tpu_custom_call.1} parent=27 // pred_fallthru
          _
        %v262 = vld [vmem:[%s215] sm:$0xff]
        %v263 = vld [vmem:[%s215 + $0x8] sm:$0xff]
        %v264 = vld [vmem:[%s215 + $0x10] sm:$0xff]
        %v265 = vld [vmem:[%s215 + $0x18] sm:$0xff]
        %v266 = vld [vmem:[%s215 + $0x20] sm:$0xff]
        %v267 = vld [vmem:[%s215 + $0x28] sm:$0xff]
        %p268 = scmp.eq.s32.totalorder %s26, 0
        // Predicated region
        $region41: #{tpu_custom_call.1} parent=27 // pred_check
          %p269 = pneg %p268
        $region42: #{tpu_custom_call.1} parent=27 // pred_check_branch
          %271 = sbr.rel (%p269) target = $region44
        $region43: #{tpu_custom_call.1} parent=27 // pred_region
          %v272 = vld [vmem:[#allocation2] sm:$0x3]
          %v273 = vld [vmem:[#allocation2 + $0x2] sm:$0x3]
          %v274 = vld [vmem:[#allocation2 + $0x4] sm:$0x3]
          %v275 = vld [vmem:[#allocation3] sm:$0x3]
          %v276 = vld [vmem:[#allocation3 + $0x2] sm:$0x3]
          %v277 = vld [vmem:[#allocation3 + $0x4] sm:$0x3]
          %v278 = vld [vmem:[%s206] sm:$0x1]
          %v279 = vld [vmem:[%s206 + $0x1] sm:$0x1]
          %v280 = vld [vmem:[%s206 + $0x2] sm:$0x1]
          %v281 = vunpack.c.l.bf16 %v278
          %v282 = vunpack.c.l.bf16 %v279
          %v283 = vunpack.c.l.bf16 %v280
          %vm284 = vcmask 130048
          %v286 = vsel %vm284, %v272, 0
          %288 = vmatprep.subr.mxu0 0.0
          %289 = vmatpush1.msra.mxu0 0.0
          %290 = vmatprep.subr.mxu0 0.0
          %291 = vmatpush1.msra.mxu0 0.0
          %292 = vmatprep.subr.mxu0 0.0
          %293 = vmatpush1.msra.mxu0 0.0
          %294 = vmatprep.subr.mxu0 0.0
          %295 = vmatpush1.msra.mxu0 0.0
          %296 = vmatprep.subr.mxu0 0.0
          %297 = vmatpush1.msra.mxu0 0.0
          %298 = vmatprep.subr.mxu0 0.0
          %299 = vmatpush1.msra.mxu0 0.0
          %300 = vmatprep.subr.mxu0 0.0
          %301 = vmatpush1.msra.mxu0 0.0
          %302 = vmatprep.subr.mxu0 0.0
          %303 = vmatpush1.msra.mxu0 0.0
          %304 = vmatprep.subr.mxu0 0.0
          %305 = vmatpush1.msra.mxu0 0.0
          %306 = vmatprep.subr.mxu0 0.0
          %307 = vmatpush1.msra.mxu0 0.0
          %308 = vmatprep.subr.mxu0 0.0
          %309 = vmatpush1.msra.mxu0 0.0
          %310 = vmatprep.subr.mxu0 0.0
          %311 = vmatpush1.msra.mxu0 0.0
          %312 = vmatprep.subr.mxu0 0.0
          %313 = vmatpush1.msra.mxu0 0.0
          %314 = vmatprep.subr.mxu0 0.0
          %315 = vmatpush1.msra.mxu0 0.0
          %316 = vmatprep.subr.mxu0 0.0
          %317 = vmatpush1.msra.mxu0 %v263
          %318 = vmatprep.subr.mxu0 0.0
          %319 = vmatpush1.msra.mxu0 %v262
          %320 = vmatprep.subr.mxu0 0.0
          %321 = vmatpush2.msra.mxu0 0.0
          %322 = vmatprep.subr.mxu0 0.0
          %323 = vmatpush2.msra.mxu0 0.0
          %324 = vmatprep.subr.mxu0 0.0
          %325 = vmatpush2.msra.mxu0 0.0
          %326 = vmatprep.subr.mxu0 0.0
          %327 = vmatpush2.msra.mxu0 0.0
          %328 = vmatprep.subr.mxu0 0.0
          %329 = vmatpush2.msra.mxu0 0.0
          %330 = vmatprep.subr.mxu0 0.0
          %331 = vmatpush2.msra.mxu0 0.0
          %332 = vmatprep.subr.mxu0 0.0
          %333 = vmatpush2.msra.mxu0 0.0
          %334 = vmatprep.subr.mxu0 0.0
          %335 = vmatpush2.msra.mxu0 0.0
          %336 = vmatprep.subr.mxu0 0.0
          %337 = vmatpush2.msra.mxu0 0.0
          %338 = vmatprep.subr.mxu0 0.0
          %339 = vmatpush2.msra.mxu0 0.0
          %340 = vmatprep.subr.mxu0 0.0
          %341 = vmatpush2.msra.mxu0 0.0
          %342 = vmatprep.subr.mxu0 0.0
          %343 = vmatpush2.msra.mxu0 0.0
          %344 = vmatprep.subr.mxu0 0.0
          %345 = vmatpush2.msra.mxu0 0.0
          %346 = vmatprep.subr.mxu0 0.0
          %347 = vmatpush2.msra.mxu0 0.0
          %348 = vmatprep.subr.mxu0 0.0
          %349 = vmatpush2.msra.mxu0 0.0
          %350 = vmatprep.subr.mxu0 0.0
          %351 = vmatpush2.msra.mxu0 0.0
          %352 = vmatprep.mubr.f32.mxu0 0.0
          %353 = vmatmul.mubr.f32.gmra.mxu0 %v286
          %v354 = vpop.f32.mrf.mxu0
          %v355 = vadd.f32 0.0, %v354
          %v356 = vpop.f32.mrf.mxu0
          %357 = vdwg.mxu0
          %v359 = vsel %vm284, %v273, 0
          %361 = vmatprep.subr.mxu0 0.0
          %362 = vmatpush1.msra.mxu0 0.0
          %363 = vmatprep.subr.mxu0 0.0
          %364 = vmatpush1.msra.mxu0 0.0
          %365 = vmatprep.subr.mxu0 0.0
          %366 = vmatpush1.msra.mxu0 0.0
          %367 = vmatprep.subr.mxu0 0.0
          %368 = vmatpush1.msra.mxu0 0.0
          %369 = vmatprep.subr.mxu0 0.0
          %370 = vmatpush1.msra.mxu0 0.0
          %371 = vmatprep.subr.mxu0 0.0
          %372 = vmatpush1.msra.mxu0 0.0
          %373 = vmatprep.subr.mxu0 0.0
          %374 = vmatpush1.msra.mxu0 0.0
          %375 = vmatprep.subr.mxu0 0.0
          %376 = vmatpush1.msra.mxu0 0.0
          %377 = vmatprep.subr.mxu0 0.0
          %378 = vmatpush1.msra.mxu0 0.0
          %379 = vmatprep.subr.mxu0 0.0
          %380 = vmatpush1.msra.mxu0 0.0
          %381 = vmatprep.subr.mxu0 0.0
          %382 = vmatpush1.msra.mxu0 0.0
          %383 = vmatprep.subr.mxu0 0.0
          %384 = vmatpush1.msra.mxu0 0.0
          %385 = vmatprep.subr.mxu0 0.0
          %386 = vmatpush1.msra.mxu0 0.0
          %387 = vmatprep.subr.mxu0 0.0
          %388 = vmatpush1.msra.mxu0 0.0
          %389 = vmatprep.subr.mxu0 0.0
          %390 = vmatpush1.msra.mxu0 %v265
          %391 = vmatprep.subr.mxu0 0.0
          %392 = vmatpush1.msra.mxu0 %v264
          %393 = vmatprep.subr.mxu0 0.0
          %394 = vmatpush2.msra.mxu0 0.0
          %395 = vmatprep.subr.mxu0 0.0
          %396 = vmatpush2.msra.mxu0 0.0
          %397 = vmatprep.subr.mxu0 0.0
          %398 = vmatpush2.msra.mxu0 0.0
          %399 = vmatprep.subr.mxu0 0.0
          %400 = vmatpush2.msra.mxu0 0.0
          %401 = vmatprep.subr.mxu0 0.0
          %402 = vmatpush2.msra.mxu0 0.0
          %403 = vmatprep.subr.mxu0 0.0
          %404 = vmatpush2.msra.mxu0 0.0
          %405 = vmatprep.subr.mxu0 0.0
          %406 = vmatpush2.msra.mxu0 0.0
          %407 = vmatprep.subr.mxu0 0.0
          %408 = vmatpush2.msra.mxu0 0.0
          %409 = vmatprep.subr.mxu0 0.0
          %410 = vmatpush2.msra.mxu0 0.0
          %411 = vmatprep.subr.mxu0 0.0
          %412 = vmatpush2.msra.mxu0 0.0
          %413 = vmatprep.subr.mxu0 0.0
          %414 = vmatpush2.msra.mxu0 0.0
          %415 = vmatprep.subr.mxu0 0.0
          %416 = vmatpush2.msra.mxu0 0.0
          %417 = vmatprep.subr.mxu0 0.0
          %418 = vmatpush2.msra.mxu0 0.0
          %419 = vmatprep.subr.mxu0 0.0
          %420 = vmatpush2.msra.mxu0 0.0
          %421 = vmatprep.subr.mxu0 0.0
          %422 = vmatpush2.msra.mxu0 0.0
          %423 = vmatprep.subr.mxu0 0.0
          %424 = vmatpush2.msra.mxu0 0.0
          %425 = vmatprep.mubr.f32.mxu0 0.0
          %426 = vmatmul.mubr.f32.gmra.mxu0 %v359
          %v427 = vpop.f32.mrf.mxu0
          %v428 = vadd.f32 0.0, %v427
          %v429 = vpop.f32.mrf.mxu0
          %430 = vdwg.mxu0
          %v432 = vsel %vm284, %v274, 0
          %434 = vmatprep.subr.mxu0 0.0
          %435 = vmatpush1.msra.mxu0 0.0
          %436 = vmatprep.subr.mxu0 0.0
          %437 = vmatpush1.msra.mxu0 0.0
          %438 = vmatprep.subr.mxu0 0.0
          %439 = vmatpush1.msra.mxu0 0.0
          %440 = vmatprep.subr.mxu0 0.0
          %441 = vmatpush1.msra.mxu0 0.0
          %442 = vmatprep.subr.mxu0 0.0
          %443 = vmatpush1.msra.mxu0 0.0
          %444 = vmatprep.subr.mxu0 0.0
          %445 = vmatpush1.msra.mxu0 0.0
          %446 = vmatprep.subr.mxu0 0.0
          %447 = vmatpush1.msra.mxu0 0.0
          %448 = vmatprep.subr.mxu0 0.0
          %449 = vmatpush1.msra.mxu0 0.0
          %450 = vmatprep.subr.mxu0 0.0
          %451 = vmatpush1.msra.mxu0 0.0
          %452 = vmatprep.subr.mxu0 0.0
          %453 = vmatpush1.msra.mxu0 0.0
          %454 = vmatprep.subr.mxu0 0.0
          %455 = vmatpush1.msra.mxu0 0.0
          %456 = vmatprep.subr.mxu0 0.0
          %457 = vmatpush1.msra.mxu0 0.0
          %458 = vmatprep.subr.mxu0 0.0
          %459 = vmatpush1.msra.mxu0 0.0
          %460 = vmatprep.subr.mxu0 0.0
          %461 = vmatpush1.msra.mxu0 0.0
          %462 = vmatprep.subr.mxu0 0.0
          %463 = vmatpush1.msra.mxu0 %v267
          %464 = vmatprep.subr.mxu0 0.0
          %465 = vmatpush1.msra.mxu0 %v266
          %466 = vmatprep.subr.mxu0 0.0
          %467 = vmatpush2.msra.mxu0 0.0
          %468 = vmatprep.subr.mxu0 0.0
          %469 = vmatpush2.msra.mxu0 0.0
          %470 = vmatprep.subr.mxu0 0.0
          %471 = vmatpush2.msra.mxu0 0.0
          %472 = vmatprep.subr.mxu0 0.0
          %473 = vmatpush2.msra.mxu0 0.0
          %474 = vmatprep.subr.mxu0 0.0
          %475 = vmatpush2.msra.mxu0 0.0
          %476 = vmatprep.subr.mxu0 0.0
          %477 = vmatpush2.msra.mxu0 0.0
          %478 = vmatprep.subr.mxu0 0.0
          %479 = vmatpush2.msra.mxu0 0.0
          %480 = vmatprep.subr.mxu0 0.0
          %481 = vmatpush2.msra.mxu0 0.0
          %482 = vmatprep.subr.mxu0 0.0
          %483 = vmatpush2.msra.mxu0 0.0
          %484 = vmatprep.subr.mxu0 0.0
          %485 = vmatpush2.msra.mxu0 0.0
          %486 = vmatprep.subr.mxu0 0.0
          %487 = vmatpush2.msra.mxu0 0.0
          %488 = vmatprep.subr.mxu0 0.0
          %489 = vmatpush2.msra.mxu0 0.0
          %490 = vmatprep.subr.mxu0 0.0
          %491 = vmatpush2.msra.mxu0 0.0
          %492 = vmatprep.subr.mxu0 0.0
          %493 = vmatpush2.msra.mxu0 0.0
          %494 = vmatprep.subr.mxu0 0.0
          %495 = vmatpush2.msra.mxu0 0.0
          %496 = vmatprep.subr.mxu0 0.0
          %497 = vmatpush2.msra.mxu0 0.0
          %498 = vmatprep.mubr.f32.mxu0 0.0
          %499 = vmatmul.mubr.f32.gmra.mxu0 %v432
          %v500 = vpop.f32.mrf.mxu0
          %v501 = vadd.f32 0.0, %v500
          %v502 = vpop.f32.mrf.mxu0
          %503 = vdwg.mxu0
          %v504 = vadd.f32 %v281, %v355
          %v505 = vadd.f32 %v282, %v428
          %v506 = vadd.f32 %v283, %v501
          %v507 = vxor.u32 %v504, 2147483648
          %v508 = vxor.u32 %v505, 2147483648
          %v509 = vxor.u32 %v506, 2147483648
          %v510 = vmul.f32 %v507, 1.442695
          %v511 = vpow.pop %v510
          %v512 = vmul.f32 %v508, 1.442695
          %v513 = vpow.pop %v512
          %v514 = vmul.f32 %v509, 1.442695
          %v515 = vpow.pop %v514
          %v516 = vadd.f32 %v511, 1.0
          %v517 = vadd.f32 %v513, 1.0
          %v518 = vadd.f32 %v515, 1.0
          %v519 = vrcp.pop %v516
          %v520 = vmul.f32 1.0, %v519
          %v521 = vrcp.pop %v517
          %v522 = vmul.f32 1.0, %v521
          %v523 = vrcp.pop %v518
          %v524 = vmul.f32 1.0, %v523
          %v525 = vtanh.pop %v504
          %v526 = vtanh.pop %v505
          %v527 = vtanh.pop %v506
          %v532 = vunpack.c.l.s4 1983009808
          %v533 = vunpack.c.0.s8 %v532
          %v534 = vlaneseq
          %v535 = vshrl.u32 %v534, 7
          %v536 = vsub.s32 %v533, %v535
          %v537 = vrot.slane %v275, %v536
          %v539 = vunpack.c.l.s4 1983009808
          %v540 = vunpack.c.0.s8 %v539
          %v541 = vlaneseq
          %v542 = vshrl.u32 %v541, 7
          %v543 = vsub.s32 %v540, %v542
          %v544 = vrot.slane %v276, %v543
          %v546 = vunpack.c.l.s4 1983009808
          %v547 = vunpack.c.0.s8 %v546
          %v548 = vlaneseq
          %v549 = vshrl.u32 %v548, 7
          %v550 = vsub.s32 %v547, %v549
          %v551 = vrot.slane %v277, %v550
          %552 = vrot.lane.b32.xlu0 %v537, 16
          %v553 = vpop.permute.xlu0 %552
          %554 = vrot.lane.b32.xlu0 %v544, 16
          %v555 = vpop.permute.xlu0 %554
          %556 = vrot.lane.b32.xlu0 %v551, 16
          %v557 = vpop.permute.xlu0 %556
          %v561 = vmul.f32 %v520, %v553
          %v562 = vmul.f32 %v522, %v555
          %v563 = vmul.f32 %v524, %v557
          %567 = vrot.lane.b32.xlu0 %v525, 80
          %v568 = vpop.permute.xlu0 %567
          %569 = vrot.lane.b32.xlu0 %v526, 80
          %v570 = vpop.permute.xlu0 %569
          %571 = vrot.lane.b32.xlu0 %v527, 80
          %v572 = vpop.permute.xlu0 %571
          %v576 = vmul.f32 %v520, %v568
          %v577 = vmul.f32 %v522, %v570
          %v578 = vmul.f32 %v524, %v572
          %582 = vrot.lane.b32.xlu0 %v576, 16
          %v583 = vpop.permute.xlu0 %582
          %584 = vrot.lane.b32.xlu0 %v577, 16
          %v585 = vpop.permute.xlu0 %584
          %586 = vrot.lane.b32.xlu0 %v578, 16
          %v587 = vpop.permute.xlu0 %586
          %v591 = vadd.f32 %v561, %v583
          %v592 = vadd.f32 %v562, %v585
          %v593 = vadd.f32 %v563, %v587
          %v594 = vtanh.pop %v591
          %v595 = vtanh.pop %v592
          %v596 = vtanh.pop %v593
          %600 = vrot.lane.b32.xlu0 %v594, 16
          %v601 = vpop.permute.xlu0 %600
          %602 = vrot.lane.b32.xlu0 %v595, 16
          %v603 = vpop.permute.xlu0 %602
          %604 = vrot.lane.b32.xlu0 %v596, 16
          %v605 = vpop.permute.xlu0 %604
          %v609 = vmul.f32 %v520, %v601
          %v610 = vmul.f32 %v522, %v603
          %v611 = vmul.f32 %v524, %v605
          %v612 = vpack.c.bf16 %v609, %v609
          %v613 = vpack.c.bf16 %v610, %v610
          %v614 = vpack.c.bf16 %v611, %v611
          %v619 = vunpack.c.l.s4 1966171168
          %v620 = vunpack.c.0.s8 %v619
          %v621 = vlaneseq
          %v622 = vshrl.u32 %v621, 7
          %v623 = vsub.s32 %v620, %v622
          %v624 = vrot.slane %v612, %v623
          %v626 = vunpack.c.l.s4 1966171168
          %v627 = vunpack.c.0.s8 %v626
          %v628 = vlaneseq
          %v629 = vshrl.u32 %v628, 7
          %v630 = vsub.s32 %v627, %v629
          %v631 = vrot.slane %v624, %v630
          %v633 = vunpack.c.l.s4 1966171168
          %v634 = vunpack.c.0.s8 %v633
          %v635 = vlaneseq
          %v636 = vshrl.u32 %v635, 7
          %v637 = vsub.s32 %v634, %v636
          %v638 = vrot.slane %v613, %v637
          %v640 = vunpack.c.l.s4 1966171168
          %v641 = vunpack.c.0.s8 %v640
          %v642 = vlaneseq
          %v643 = vshrl.u32 %v642, 7
          %v644 = vsub.s32 %v641, %v643
          %v645 = vrot.slane %v638, %v644
          %v647 = vunpack.c.l.s4 1966171168
          %v648 = vunpack.c.0.s8 %v647
          %v649 = vlaneseq
          %v650 = vshrl.u32 %v649, 7
          %v651 = vsub.s32 %v648, %v650
          %v652 = vrot.slane %v614, %v651
          %v654 = vunpack.c.l.s4 1966171168
          %v655 = vunpack.c.0.s8 %v654
          %v656 = vlaneseq
          %v657 = vshrl.u32 %v656, 7
          %v658 = vsub.s32 %v655, %v657
          %v659 = vrot.slane %v652, %v658
          %660 = vrot.lane.b32.xlu0 %v631, 96
          %v661 = vpop.permute.xlu0 %660
          %662 = vrot.lane.b32.xlu0 %v645, 96
          %v663 = vpop.permute.xlu0 %662
          %664 = vrot.lane.b32.xlu0 %v659, 96
          %v665 = vpop.permute.xlu0 %664
          %vm669 = vcmask 122880
          %670 = vst.msk [vmem:[%s240] sm:$0x1] %vm669, %v661
          %671 = vst.msk [vmem:[%s240 + $0x1] sm:$0x1] %vm669, %v663
          %672 = vst.msk [vmem:[%s240 + $0x2] sm:$0x1] %vm669, %v665
          %s673 = scalar_lea.vmem %s206, 3 [#allocation4]
          %v674 = vld [vmem:[%s673] sm:$0x1]
          %v675 = vld [vmem:[%s673 + $0x1] sm:$0x1]
          %v676 = vld [vmem:[%s673 + $0x2] sm:$0x1]
          %v677 = vunpack.c.l.bf16 %v674
          %v678 = vunpack.c.l.bf16 %v675
          %v679 = vunpack.c.l.bf16 %v676
          %v682 = vunpack.c.l.s4 1983009808
          %v683 = vunpack.c.0.s8 %v682
          %v684 = vlaneseq
          %v685 = vshrl.u32 %v684, 7
          %v686 = vsub.s32 %v683, %v685
          %v687 = vrot.slane %v609, %v686
          %688 = vrot.lane.b32.xlu0 %v687, 96
          %v689 = vpop.permute.xlu0 %688
          %v690 = vsel %vm284, %v689, 0
          %692 = vmatprep.subr.mxu0 0.0
          %693 = vmatpush1.msra.mxu0 0.0
          %694 = vmatprep.subr.mxu0 0.0
          %695 = vmatpush1.msra.mxu0 0.0
          %696 = vmatprep.subr.mxu0 0.0
          %697 = vmatpush1.msra.mxu0 0.0
          %698 = vmatprep.subr.mxu0 0.0
          %699 = vmatpush1.msra.mxu0 0.0
          %700 = vmatprep.subr.mxu0 0.0
          %701 = vmatpush1.msra.mxu0 0.0
          %702 = vmatprep.subr.mxu0 0.0
          %703 = vmatpush1.msra.mxu0 0.0
          %704 = vmatprep.subr.mxu0 0.0
          %705 = vmatpush1.msra.mxu0 0.0
          %706 = vmatprep.subr.mxu0 0.0
          %707 = vmatpush1.msra.mxu0 0.0
          %708 = vmatprep.subr.mxu0 0.0
          %709 = vmatpush1.msra.mxu0 0.0
          %710 = vmatprep.subr.mxu0 0.0
          %711 = vmatpush1.msra.mxu0 0.0
          %712 = vmatprep.subr.mxu0 0.0
          %713 = vmatpush1.msra.mxu0 0.0
          %714 = vmatprep.subr.mxu0 0.0
          %715 = vmatpush1.msra.mxu0 0.0
          %716 = vmatprep.subr.mxu0 0.0
          %717 = vmatpush1.msra.mxu0 0.0
          %718 = vmatprep.subr.mxu0 0.0
          %719 = vmatpush1.msra.mxu0 0.0
          %720 = vmatprep.subr.mxu0 0.0
          %721 = vmatpush1.msra.mxu0 %v263
          %722 = vmatprep.subr.mxu0 0.0
          %723 = vmatpush1.msra.mxu0 %v262
          %724 = vmatprep.subr.mxu0 0.0
          %725 = vmatpush2.msra.mxu0 0.0
          %726 = vmatprep.subr.mxu0 0.0
          %727 = vmatpush2.msra.mxu0 0.0
          %728 = vmatprep.subr.mxu0 0.0
          %729 = vmatpush2.msra.mxu0 0.0
          %730 = vmatprep.subr.mxu0 0.0
          %731 = vmatpush2.msra.mxu0 0.0
          %732 = vmatprep.subr.mxu0 0.0
          %733 = vmatpush2.msra.mxu0 0.0
          %734 = vmatprep.subr.mxu0 0.0
          %735 = vmatpush2.msra.mxu0 0.0
          %736 = vmatprep.subr.mxu0 0.0
          %737 = vmatpush2.msra.mxu0 0.0
          %738 = vmatprep.subr.mxu0 0.0
          %739 = vmatpush2.msra.mxu0 0.0
          %740 = vmatprep.subr.mxu0 0.0
          %741 = vmatpush2.msra.mxu0 0.0
          %742 = vmatprep.subr.mxu0 0.0
          %743 = vmatpush2.msra.mxu0 0.0
          %744 = vmatprep.subr.mxu0 0.0
          %745 = vmatpush2.msra.mxu0 0.0
          %746 = vmatprep.subr.mxu0 0.0
          %747 = vmatpush2.msra.mxu0 0.0
          %748 = vmatprep.subr.mxu0 0.0
          %749 = vmatpush2.msra.mxu0 0.0
          %750 = vmatprep.subr.mxu0 0.0
          %751 = vmatpush2.msra.mxu0 0.0
          %752 = vmatprep.subr.mxu0 0.0
          %753 = vmatpush2.msra.mxu0 0.0
          %754 = vmatprep.subr.mxu0 0.0
          %755 = vmatpush2.msra.mxu0 0.0
          %756 = vmatprep.mubr.f32.mxu0 0.0
          %757 = vmatmul.mubr.f32.gmra.mxu0 %v690
          %v758 = vpop.f32.mrf.mxu0
          %v759 = vadd.f32 0.0, %v758
          %v760 = vpop.f32.mrf.mxu0
          %761 = vdwg.mxu0
          %v764 = vunpack.c.l.s4 1983009808
          %v765 = vunpack.c.0.s8 %v764
          %v766 = vlaneseq
          %v767 = vshrl.u32 %v766, 7
          %v768 = vsub.s32 %v765, %v767
          %v769 = vrot.slane %v610, %v768
          %770 = vrot.lane.b32.xlu0 %v769, 96
          %v771 = vpop.permute.xlu0 %770
          %v772 = vsel %vm284, %v771, 0
          %774 = vmatprep.subr.mxu0 0.0
          %775 = vmatpush1.msra.mxu0 0.0
          %776 = vmatprep.subr.mxu0 0.0
          %777 = vmatpush1.msra.mxu0 0.0
          %778 = vmatprep.subr.mxu0 0.0
          %779 = vmatpush1.msra.mxu0 0.0
          %780 = vmatprep.subr.mxu0 0.0
          %781 = vmatpush1.msra.mxu0 0.0
          %782 = vmatprep.subr.mxu0 0.0
          %783 = vmatpush1.msra.mxu0 0.0
          %784 = vmatprep.subr.mxu0 0.0
          %785 = vmatpush1.msra.mxu0 0.0
          %786 = vmatprep.subr.mxu0 0.0
          %787 = vmatpush1.msra.mxu0 0.0
          %788 = vmatprep.subr.mxu0 0.0
          %789 = vmatpush1.msra.mxu0 0.0
          %790 = vmatprep.subr.mxu0 0.0
          %791 = vmatpush1.msra.mxu0 0.0
          %792 = vmatprep.subr.mxu0 0.0
          %793 = vmatpush1.msra.mxu0 0.0
          %794 = vmatprep.subr.mxu0 0.0
          %795 = vmatpush1.msra.mxu0 0.0
          %796 = vmatprep.subr.mxu0 0.0
          %797 = vmatpush1.msra.mxu0 0.0
          %798 = vmatprep.subr.mxu0 0.0
          %799 = vmatpush1.msra.mxu0 0.0
          %800 = vmatprep.subr.mxu0 0.0
          %801 = vmatpush1.msra.mxu0 0.0
          %802 = vmatprep.subr.mxu0 0.0
          %803 = vmatpush1.msra.mxu0 %v265
          %804 = vmatprep.subr.mxu0 0.0
          %805 = vmatpush1.msra.mxu0 %v264
          %806 = vmatprep.subr.mxu0 0.0
          %807 = vmatpush2.msra.mxu0 0.0
          %808 = vmatprep.subr.mxu0 0.0
          %809 = vmatpush2.msra.mxu0 0.0
          %810 = vmatprep.subr.mxu0 0.0
          %811 = vmatpush2.msra.mxu0 0.0
          %812 = vmatprep.subr.mxu0 0.0
          %813 = vmatpush2.msra.mxu0 0.0
          %814 = vmatprep.subr.mxu0 0.0
          %815 = vmatpush2.msra.mxu0 0.0
          %816 = vmatprep.subr.mxu0 0.0
          %817 = vmatpush2.msra.mxu0 0.0
          %818 = vmatprep.subr.mxu0 0.0
          %819 = vmatpush2.msra.mxu0 0.0
          %820 = vmatprep.subr.mxu0 0.0
          %821 = vmatpush2.msra.mxu0 0.0
          %822 = vmatprep.subr.mxu0 0.0
          %823 = vmatpush2.msra.mxu0 0.0
          %824 = vmatprep.subr.mxu0 0.0
          %825 = vmatpush2.msra.mxu0 0.0
          %826 = vmatprep.subr.mxu0 0.0
          %827 = vmatpush2.msra.mxu0 0.0
          %828 = vmatprep.subr.mxu0 0.0
          %829 = vmatpush2.msra.mxu0 0.0
          %830 = vmatprep.subr.mxu0 0.0
          %831 = vmatpush2.msra.mxu0 0.0
          %832 = vmatprep.subr.mxu0 0.0
          %833 = vmatpush2.msra.mxu0 0.0
          %834 = vmatprep.subr.mxu0 0.0
          %835 = vmatpush2.msra.mxu0 0.0
          %836 = vmatprep.subr.mxu0 0.0
          %837 = vmatpush2.msra.mxu0 0.0
          %838 = vmatprep.mubr.f32.mxu0 0.0
          %839 = vmatmul.mubr.f32.gmra.mxu0 %v772
          %v840 = vpop.f32.mrf.mxu0
          %v841 = vadd.f32 0.0, %v840
          %v842 = vpop.f32.mrf.mxu0
          %843 = vdwg.mxu0
          %v846 = vunpack.c.l.s4 1983009808
          %v847 = vunpack.c.0.s8 %v846
          %v848 = vlaneseq
          %v849 = vshrl.u32 %v848, 7
          %v850 = vsub.s32 %v847, %v849
          %v851 = vrot.slane %v611, %v850
          %852 = vrot.lane.b32.xlu0 %v851, 96
          %v853 = vpop.permute.xlu0 %852
          %v854 = vsel %vm284, %v853, 0
          %856 = vmatprep.subr.mxu0 0.0
          %857 = vmatpush1.msra.mxu0 0.0
          %858 = vmatprep.subr.mxu0 0.0
          %859 = vmatpush1.msra.mxu0 0.0
          %860 = vmatprep.subr.mxu0 0.0
          %861 = vmatpush1.msra.mxu0 0.0
          %862 = vmatprep.subr.mxu0 0.0
          %863 = vmatpush1.msra.mxu0 0.0
          %864 = vmatprep.subr.mxu0 0.0
          %865 = vmatpush1.msra.mxu0 0.0
          %866 = vmatprep.subr.mxu0 0.0
          %867 = vmatpush1.msra.mxu0 0.0
          %868 = vmatprep.subr.mxu0 0.0
          %869 = vmatpush1.msra.mxu0 0.0
          %870 = vmatprep.subr.mxu0 0.0
          %871 = vmatpush1.msra.mxu0 0.0
          %872 = vmatprep.subr.mxu0 0.0
          %873 = vmatpush1.msra.mxu0 0.0
          %874 = vmatprep.subr.mxu0 0.0
          %875 = vmatpush1.msra.mxu0 0.0
          %876 = vmatprep.subr.mxu0 0.0
          %877 = vmatpush1.msra.mxu0 0.0
          %878 = vmatprep.subr.mxu0 0.0
          %879 = vmatpush1.msra.mxu0 0.0
          %880 = vmatprep.subr.mxu0 0.0
          %881 = vmatpush1.msra.mxu0 0.0
          %882 = vmatprep.subr.mxu0 0.0
          %883 = vmatpush1.msra.mxu0 0.0
          %884 = vmatprep.subr.mxu0 0.0
          %885 = vmatpush1.msra.mxu0 %v267
          %886 = vmatprep.subr.mxu0 0.0
          %887 = vmatpush1.msra.mxu0 %v266
          %888 = vmatprep.subr.mxu0 0.0
          %889 = vmatpush2.msra.mxu0 0.0
          %890 = vmatprep.subr.mxu0 0.0
          %891 = vmatpush2.msra.mxu0 0.0
          %892 = vmatprep.subr.mxu0 0.0
          %893 = vmatpush2.msra.mxu0 0.0
          %894 = vmatprep.subr.mxu0 0.0
          %895 = vmatpush2.msra.mxu0 0.0
          %896 = vmatprep.subr.mxu0 0.0
          %897 = vmatpush2.msra.mxu0 0.0
          %898 = vmatprep.subr.mxu0 0.0
          %899 = vmatpush2.msra.mxu0 0.0
          %900 = vmatprep.subr.mxu0 0.0
          %901 = vmatpush2.msra.mxu0 0.0
          %902 = vmatprep.subr.mxu0 0.0
          %903 = vmatpush2.msra.mxu0 0.0
          %904 = vmatprep.subr.mxu0 0.0
          %905 = vmatpush2.msra.mxu0 0.0
          %906 = vmatprep.subr.mxu0 0.0
          %907 = vmatpush2.msra.mxu0 0.0
          %908 = vmatprep.subr.mxu0 0.0
          %909 = vmatpush2.msra.mxu0 0.0
          %910 = vmatprep.subr.mxu0 0.0
          %911 = vmatpush2.msra.mxu0 0.0
          %912 = vmatprep.subr.mxu0 0.0
          %913 = vmatpush2.msra.mxu0 0.0
          %914 = vmatprep.subr.mxu0 0.0
          %915 = vmatpush2.msra.mxu0 0.0
          %916 = vmatprep.subr.mxu0 0.0
          %917 = vmatpush2.msra.mxu0 0.0
          %918 = vmatprep.subr.mxu0 0.0
          %919 = vmatpush2.msra.mxu0 0.0
          %920 = vmatprep.mubr.f32.mxu0 0.0
          %921 = vmatmul.mubr.f32.gmra.mxu0 %v854
          %v922 = vpop.f32.mrf.mxu0
          %v923 = vadd.f32 0.0, %v922
          %v924 = vpop.f32.mrf.mxu0
          %925 = vdwg.mxu0
          %v926 = vadd.f32 %v677, %v759
          %v927 = vadd.f32 %v678, %v841
          %v928 = vadd.f32 %v679, %v923
          %v929 = vxor.u32 %v926, 2147483648
          %v930 = vxor.u32 %v927, 2147483648
          %v931 = vxor.u32 %v928, 2147483648
          %v932 = vmul.f32 %v929, 1.442695
          %v933 = vpow.pop %v932
          %v934 = vmul.f32 %v930, 1.442695
          %v935 = vpow.pop %v934
          %v936 = vmul.f32 %v931, 1.442695
          %v937 = vpow.pop %v936
          %v938 = vadd.f32 %v933, 1.0
          %v939 = vadd.f32 %v935, 1.0
          %v940 = vadd.f32 %v937, 1.0
          %v941 = vrcp.pop %v938
          %v942 = vmul.f32 1.0, %v941
          %v943 = vrcp.pop %v939
          %v944 = vmul.f32 1.0, %v943
          %v945 = vrcp.pop %v940
          %v946 = vmul.f32 1.0, %v945
          %v947 = vtanh.pop %v926
          %v948 = vtanh.pop %v927
          %v949 = vtanh.pop %v928
          %v950 = vmul.f32 %v942, %v591
          %v951 = vmul.f32 %v944, %v592
          %v952 = vmul.f32 %v946, %v593
          %956 = vrot.lane.b32.xlu0 %v947, 80
          %v957 = vpop.permute.xlu0 %956
          %958 = vrot.lane.b32.xlu0 %v948, 80
          %v959 = vpop.permute.xlu0 %958
          %960 = vrot.lane.b32.xlu0 %v949, 80
          %v961 = vpop.permute.xlu0 %960
          %v965 = vmul.f32 %v942, %v957
          %v966 = vmul.f32 %v944, %v959
          %v967 = vmul.f32 %v946, %v961
          %971 = vrot.lane.b32.xlu0 %v965, 16
          %v972 = vpop.permute.xlu0 %971
          %973 = vrot.lane.b32.xlu0 %v966, 16
          %v974 = vpop.permute.xlu0 %973
          %975 = vrot.lane.b32.xlu0 %v967, 16
          %v976 = vpop.permute.xlu0 %975
          %v980 = vadd.f32 %v950, %v972
          %v981 = vadd.f32 %v951, %v974
          %v982 = vadd.f32 %v952, %v976
          %v983 = vtanh.pop %v980
          %v984 = vtanh.pop %v981
          %v985 = vtanh.pop %v982
          %989 = vrot.lane.b32.xlu0 %v983, 16
          %v990 = vpop.permute.xlu0 %989
          %991 = vrot.lane.b32.xlu0 %v984, 16
          %v992 = vpop.permute.xlu0 %991
          %993 = vrot.lane.b32.xlu0 %v985, 16
          %v994 = vpop.permute.xlu0 %993
          %v998 = vmul.f32 %v942, %v990
          %v999 = vmul.f32 %v944, %v992
          %v1000 = vmul.f32 %v946, %v994
          %v1001 = vpack.c.bf16 %v998, %v998
          %v1002 = vpack.c.bf16 %v999, %v999
          %v1003 = vpack.c.bf16 %v1000, %v1000
          %v1008 = vunpack.c.l.s4 1966171168
          %v1009 = vunpack.c.0.s8 %v1008
          %v1010 = vlaneseq
          %v1011 = vshrl.u32 %v1010, 7
          %v1012 = vsub.s32 %v1009, %v1011
          %v1013 = vrot.slane %v1001, %v1012
          %v1015 = vunpack.c.l.s4 1966171168
          %v1016 = vunpack.c.0.s8 %v1015
          %v1017 = vlaneseq
          %v1018 = vshrl.u32 %v1017, 7
          %v1019 = vsub.s32 %v1016, %v1018
          %v1020 = vrot.slane %v1013, %v1019
          %v1022 = vunpack.c.l.s4 1966171168
          %v1023 = vunpack.c.0.s8 %v1022
          %v1024 = vlaneseq
          %v1025 = vshrl.u32 %v1024, 7
          %v1026 = vsub.s32 %v1023, %v1025
          %v1027 = vrot.slane %v1002, %v1026
          %v1029 = vunpack.c.l.s4 1966171168
          %v1030 = vunpack.c.0.s8 %v1029
          %v1031 = vlaneseq
          %v1032 = vshrl.u32 %v1031, 7
          %v1033 = vsub.s32 %v1030, %v1032
          %v1034 = vrot.slane %v1027, %v1033
          %v1036 = vunpack.c.l.s4 1966171168
          %v1037 = vunpack.c.0.s8 %v1036
          %v1038 = vlaneseq
          %v1039 = vshrl.u32 %v1038, 7
          %v1040 = vsub.s32 %v1037, %v1039
          %v1041 = vrot.slane %v1003, %v1040
          %v1043 = vunpack.c.l.s4 1966171168
          %v1044 = vunpack.c.0.s8 %v1043
          %v1045 = vlaneseq
          %v1046 = vshrl.u32 %v1045, 7
          %v1047 = vsub.s32 %v1044, %v1046
          %v1048 = vrot.slane %v1041, %v1047
          %1049 = vrot.lane.b32.xlu0 %v1020, 96
          %v1050 = vpop.permute.xlu0 %1049
          %1051 = vrot.lane.b32.xlu0 %v1034, 96
          %v1052 = vpop.permute.xlu0 %1051
          %1053 = vrot.lane.b32.xlu0 %v1048, 96
          %v1054 = vpop.permute.xlu0 %1053
          %s1058 = scalar_lea.vmem %s240, 3 [#allocation9]
          %1059 = vst.msk [vmem:[%s1058] sm:$0x1] %vm669, %v1050
          %1060 = vst.msk [vmem:[%s1058 + $0x1] sm:$0x1] %vm669, %v1052
          %1061 = vst.msk [vmem:[%s1058 + $0x2] sm:$0x1] %vm669, %v1054
          %s1062 = scalar_lea.vmem %s206, 6 [#allocation4]
          %v1063 = vld [vmem:[%s1062] sm:$0x1]
          %v1064 = vld [vmem:[%s1062 + $0x1] sm:$0x1]
          %v1065 = vld [vmem:[%s1062 + $0x2] sm:$0x1]
          %v1066 = vunpack.c.l.bf16 %v1063
          %v1067 = vunpack.c.l.bf16 %v1064
          %v1068 = vunpack.c.l.bf16 %v1065
          %v1071 = vunpack.c.l.s4 1983009808
          %v1072 = vunpack.c.0.s8 %v1071
          %v1073 = vlaneseq
          %v1074 = vshrl.u32 %v1073, 7
          %v1075 = vsub.s32 %v1072, %v1074
          %v1076 = vrot.slane %v998, %v1075
          %1077 = vrot.lane.b32.xlu0 %v1076, 96
          %v1078 = vpop.permute.xlu0 %1077
          %v1079 = vsel %vm284, %v1078, 0
          %1081 = vmatprep.subr.mxu0 0.0
          %1082 = vmatpush1.msra.mxu0 0.0
          %1083 = vmatprep.subr.mxu0 0.0
          %1084 = vmatpush1.msra.mxu0 0.0
          %1085 = vmatprep.subr.mxu0 0.0
          %1086 = vmatpush1.msra.mxu0 0.0
          %1087 = vmatprep.subr.mxu0 0.0
          %1088 = vmatpush1.msra.mxu0 0.0
          %1089 = vmatprep.subr.mxu0 0.0
          %1090 = vmatpush1.msra.mxu0 0.0
          %1091 = vmatprep.subr.mxu0 0.0
          %1092 = vmatpush1.msra.mxu0 0.0
          %1093 = vmatprep.subr.mxu0 0.0
          %1094 = vmatpush1.msra.mxu0 0.0
          %1095 = vmatprep.subr.mxu0 0.0
          %1096 = vmatpush1.msra.mxu0 0.0
          %1097 = vmatprep.subr.mxu0 0.0
          %1098 = vmatpush1.msra.mxu0 0.0
          %1099 = vmatprep.subr.mxu0 0.0
          %1100 = vmatpush1.msra.mxu0 0.0
          %1101 = vmatprep.subr.mxu0 0.0
          %1102 = vmatpush1.msra.mxu0 0.0
          %1103 = vmatprep.subr.mxu0 0.0
          %1104 = vmatpush1.msra.mxu0 0.0
          %1105 = vmatprep.subr.mxu0 0.0
          %1106 = vmatpush1.msra.mxu0 0.0
          %1107 = vmatprep.subr.mxu0 0.0
          %1108 = vmatpush1.msra.mxu0 0.0
          %1109 = vmatprep.subr.mxu0 0.0
          %1110 = vmatpush1.msra.mxu0 %v263
          %1111 = vmatprep.subr.mxu0 0.0
          %1112 = vmatpush1.msra.mxu0 %v262
          %1113 = vmatprep.subr.mxu0 0.0
          %1114 = vmatpush2.msra.mxu0 0.0
          %1115 = vmatprep.subr.mxu0 0.0
          %1116 = vmatpush2.msra.mxu0 0.0
          %1117 = vmatprep.subr.mxu0 0.0
          %1118 = vmatpush2.msra.mxu0 0.0
          %1119 = vmatprep.subr.mxu0 0.0
          %1120 = vmatpush2.msra.mxu0 0.0
          %1121 = vmatprep.subr.mxu0 0.0
          %1122 = vmatpush2.msra.mxu0 0.0
          %1123 = vmatprep.subr.mxu0 0.0
          %1124 = vmatpush2.msra.mxu0 0.0
          %1125 = vmatprep.subr.mxu0 0.0
          %1126 = vmatpush2.msra.mxu0 0.0
          %1127 = vmatprep.subr.mxu0 0.0
          %1128 = vmatpush2.msra.mxu0 0.0
          %1129 = vmatprep.subr.mxu0 0.0
          %1130 = vmatpush2.msra.mxu0 0.0
          %1131 = vmatprep.subr.mxu0 0.0
          %1132 = vmatpush2.msra.mxu0 0.0
          %1133 = vmatprep.subr.mxu0 0.0
          %1134 = vmatpush2.msra.mxu0 0.0
          %1135 = vmatprep.subr.mxu0 0.0
          %1136 = vmatpush2.msra.mxu0 0.0
          %1137 = vmatprep.subr.mxu0 0.0
          %1138 = vmatpush2.msra.mxu0 0.0
          %1139 = vmatprep.subr.mxu0 0.0
          %1140 = vmatpush2.msra.mxu0 0.0
          %1141 = vmatprep.subr.mxu0 0.0
          %1142 = vmatpush2.msra.mxu0 0.0
          %1143 = vmatprep.subr.mxu0 0.0
          %1144 = vmatpush2.msra.mxu0 0.0
          %1145 = vmatprep.mubr.f32.mxu0 0.0
          %1146 = vmatmul.mubr.f32.gmra.mxu0 %v1079
          %v1147 = vpop.f32.mrf.mxu0
          %v1148 = vadd.f32 0.0, %v1147
          %v1149 = vpop.f32.mrf.mxu0
          %1150 = vdwg.mxu0
          %v1153 = vunpack.c.l.s4 1983009808
          %v1154 = vunpack.c.0.s8 %v1153
          %v1155 = vlaneseq
          %v1156 = vshrl.u32 %v1155, 7
          %v1157 = vsub.s32 %v1154, %v1156
          %v1158 = vrot.slane %v999, %v1157
          %1159 = vrot.lane.b32.xlu0 %v1158, 96
          %v1160 = vpop.permute.xlu0 %1159
          %v1161 = vsel %vm284, %v1160, 0
          %1163 = vmatprep.subr.mxu0 0.0
          %1164 = vmatpush1.msra.mxu0 0.0
          %1165 = vmatprep.subr.mxu0 0.0
          %1166 = vmatpush1.msra.mxu0 0.0
          %1167 = vmatprep.subr.mxu0 0.0
          %1168 = vmatpush1.msra.mxu0 0.0
          %1169 = vmatprep.subr.mxu0 0.0
          %1170 = vmatpush1.msra.mxu0 0.0
          %1171 = vmatprep.subr.mxu0 0.0
          %1172 = vmatpush1.msra.mxu0 0.0
          %1173 = vmatprep.subr.mxu0 0.0
          %1174 = vmatpush1.msra.mxu0 0.0
          %1175 = vmatprep.subr.mxu0 0.0
          %1176 = vmatpush1.msra.mxu0 0.0
          %1177 = vmatprep.subr.mxu0 0.0
          %1178 = vmatpush1.msra.mxu0 0.0
          %1179 = vmatprep.subr.mxu0 0.0
          %1180 = vmatpush1.msra.mxu0 0.0
          %1181 = vmatprep.subr.mxu0 0.0
          %1182 = vmatpush1.msra.mxu0 0.0
          %1183 = vmatprep.subr.mxu0 0.0
          %1184 = vmatpush1.msra.mxu0 0.0
          %1185 = vmatprep.subr.mxu0 0.0
          %1186 = vmatpush1.msra.mxu0 0.0
          %1187 = vmatprep.subr.mxu0 0.0
          %1188 = vmatpush1.msra.mxu0 0.0
          %1189 = vmatprep.subr.mxu0 0.0
          %1190 = vmatpush1.msra.mxu0 0.0
          %1191 = vmatprep.subr.mxu0 0.0
          %1192 = vmatpush1.msra.mxu0 %v265
          %1193 = vmatprep.subr.mxu0 0.0
          %1194 = vmatpush1.msra.mxu0 %v264
          %1195 = vmatprep.subr.mxu0 0.0
          %1196 = vmatpush2.msra.mxu0 0.0
          %1197 = vmatprep.subr.mxu0 0.0
          %1198 = vmatpush2.msra.mxu0 0.0
          %1199 = vmatprep.subr.mxu0 0.0
          %1200 = vmatpush2.msra.mxu0 0.0
          %1201 = vmatprep.subr.mxu0 0.0
          %1202 = vmatpush2.msra.mxu0 0.0
          %1203 = vmatprep.subr.mxu0 0.0
          %1204 = vmatpush2.msra.mxu0 0.0
          %1205 = vmatprep.subr.mxu0 0.0
          %1206 = vmatpush2.msra.mxu0 0.0
          %1207 = vmatprep.subr.mxu0 0.0
          %1208 = vmatpush2.msra.mxu0 0.0
          %1209 = vmatprep.subr.mxu0 0.0
          %1210 = vmatpush2.msra.mxu0 0.0
          %1211 = vmatprep.subr.mxu0 0.0
          %1212 = vmatpush2.msra.mxu0 0.0
          %1213 = vmatprep.subr.mxu0 0.0
          %1214 = vmatpush2.msra.mxu0 0.0
          %1215 = vmatprep.subr.mxu0 0.0
          %1216 = vmatpush2.msra.mxu0 0.0
          %1217 = vmatprep.subr.mxu0 0.0
          %1218 = vmatpush2.msra.mxu0 0.0
          %1219 = vmatprep.subr.mxu0 0.0
          %1220 = vmatpush2.msra.mxu0 0.0
          %1221 = vmatprep.subr.mxu0 0.0
          %1222 = vmatpush2.msra.mxu0 0.0
          %1223 = vmatprep.subr.mxu0 0.0
          %1224 = vmatpush2.msra.mxu0 0.0
          %1225 = vmatprep.subr.mxu0 0.0
          %1226 = vmatpush2.msra.mxu0 0.0
          %1227 = vmatprep.mubr.f32.mxu0 0.0
          %1228 = vmatmul.mubr.f32.gmra.mxu0 %v1161
          %v1229 = vpop.f32.mrf.mxu0
          %v1230 = vadd.f32 0.0, %v1229
          %v1231 = vpop.f32.mrf.mxu0
          %1232 = vdwg.mxu0
          %v1235 = vunpack.c.l.s4 1983009808
          %v1236 = vunpack.c.0.s8 %v1235
          %v1237 = vlaneseq
          %v1238 = vshrl.u32 %v1237, 7
          %v1239 = vsub.s32 %v1236, %v1238
          %v1240 = vrot.slane %v1000, %v1239
          %1241 = vrot.lane.b32.xlu0 %v1240, 96
          %v1242 = vpop.permute.xlu0 %1241
          %v1243 = vsel %vm284, %v1242, 0
          %1245 = vmatprep.subr.mxu0 0.0
          %1246 = vmatpush1.msra.mxu0 0.0
          %1247 = vmatprep.subr.mxu0 0.0
          %1248 = vmatpush1.msra.mxu0 0.0
          %1249 = vmatprep.subr.mxu0 0.0
          %1250 = vmatpush1.msra.mxu0 0.0
          %1251 = vmatprep.subr.mxu0 0.0
          %1252 = vmatpush1.msra.mxu0 0.0
          %1253 = vmatprep.subr.mxu0 0.0
          %1254 = vmatpush1.msra.mxu0 0.0
          %1255 = vmatprep.subr.mxu0 0.0
          %1256 = vmatpush1.msra.mxu0 0.0
          %1257 = vmatprep.subr.mxu0 0.0
          %1258 = vmatpush1.msra.mxu0 0.0
          %1259 = vmatprep.subr.mxu0 0.0
          %1260 = vmatpush1.msra.mxu0 0.0
          %1261 = vmatprep.subr.mxu0 0.0
          %1262 = vmatpush1.msra.mxu0 0.0
          %1263 = vmatprep.subr.mxu0 0.0
          %1264 = vmatpush1.msra.mxu0 0.0
          %1265 = vmatprep.subr.mxu0 0.0
          %1266 = vmatpush1.msra.mxu0 0.0
          %1267 = vmatprep.subr.mxu0 0.0
          %1268 = vmatpush1.msra.mxu0 0.0
          %1269 = vmatprep.subr.mxu0 0.0
          %1270 = vmatpush1.msra.mxu0 0.0
          %1271 = vmatprep.subr.mxu0 0.0
          %1272 = vmatpush1.msra.mxu0 0.0
          %1273 = vmatprep.subr.mxu0 0.0
          %1274 = vmatpush1.msra.mxu0 %v267
          %1275 = vmatprep.subr.mxu0 0.0
          %1276 = vmatpush1.msra.mxu0 %v266
          %1277 = vmatprep.subr.mxu0 0.0
          %1278 = vmatpush2.msra.mxu0 0.0
          %1279 = vmatprep.subr.mxu0 0.0
          %1280 = vmatpush2.msra.mxu0 0.0
          %1281 = vmatprep.subr.mxu0 0.0
          %1282 = vmatpush2.msra.mxu0 0.0
          %1283 = vmatprep.subr.mxu0 0.0
          %1284 = vmatpush2.msra.mxu0 0.0
          %1285 = vmatprep.subr.mxu0 0.0
          %1286 = vmatpush2.msra.mxu0 0.0
          %1287 = vmatprep.subr.mxu0 0.0
          %1288 = vmatpush2.msra.mxu0 0.0
          %1289 = vmatprep.subr.mxu0 0.0
          %1290 = vmatpush2.msra.mxu0 0.0
          %1291 = vmatprep.subr.mxu0 0.0
          %1292 = vmatpush2.msra.mxu0 0.0
          %1293 = vmatprep.subr.mxu0 0.0
          %1294 = vmatpush2.msra.mxu0 0.0
          %1295 = vmatprep.subr.mxu0 0.0
          %1296 = vmatpush2.msra.mxu0 0.0
          %1297 = vmatprep.subr.mxu0 0.0
          %1298 = vmatpush2.msra.mxu0 0.0
          %1299 = vmatprep.subr.mxu0 0.0
          %1300 = vmatpush2.msra.mxu0 0.0
          %1301 = vmatprep.subr.mxu0 0.0
          %1302 = vmatpush2.msra.mxu0 0.0
          %1303 = vmatprep.subr.mxu0 0.0
          %1304 = vmatpush2.msra.mxu0 0.0
          %1305 = vmatprep.subr.mxu0 0.0
          %1306 = vmatpush2.msra.mxu0 0.0
          %1307 = vmatprep.subr.mxu0 0.0
          %1308 = vmatpush2.msra.mxu0 0.0
          %1309 = vmatprep.mubr.f32.mxu0 0.0
          %1310 = vmatmul.mubr.f32.gmra.mxu0 %v1243
          %v1311 = vpop.f32.mrf.mxu0
          %v1312 = vadd.f32 0.0, %v1311
          %v1313 = vpop.f32.mrf.mxu0
          %1314 = vdwg.mxu0
          %v1315 = vadd.f32 %v1066, %v1148
          %v1316 = vadd.f32 %v1067, %v1230
          %v1317 = vadd.f32 %v1068, %v1312
          %v1318 = vxor.u32 %v1315, 2147483648
          %v1319 = vxor.u32 %v1316, 2147483648
          %v1320 = vxor.u32 %v1317, 2147483648
          %v1321 = vmul.f32 %v1318, 1.442695
          %v1322 = vpow.pop %v1321
          %v1323 = vmul.f32 %v1319, 1.442695
          %v1324 = vpow.pop %v1323
          %v1325 = vmul.f32 %v1320, 1.442695
          %v1326 = vpow.pop %v1325
          %v1327 = vadd.f32 %v1322, 1.0
          %v1328 = vadd.f32 %v1324, 1.0
          %v1329 = vadd.f32 %v1326, 1.0
          %v1330 = vrcp.pop %v1327
          %v1331 = vmul.f32 1.0, %v1330
          %v1332 = vrcp.pop %v1328
          %v1333 = vmul.f32 1.0, %v1332
          %v1334 = vrcp.pop %v1329
          %v1335 = vmul.f32 1.0, %v1334
          %v1336 = vtanh.pop %v1315
          %v1337 = vtanh.pop %v1316
          %v1338 = vtanh.pop %v1317
          %v1339 = vmul.f32 %v1331, %v980
          %v1340 = vmul.f32 %v1333, %v981
          %v1341 = vmul.f32 %v1335, %v982
          %1345 = vrot.lane.b32.xlu0 %v1336, 80
          %v1346 = vpop.permute.xlu0 %1345
          %1347 = vrot.lane.b32.xlu0 %v1337, 80
          %v1348 = vpop.permute.xlu0 %1347
          %1349 = vrot.lane.b32.xlu0 %v1338, 80
          %v1350 = vpop.permute.xlu0 %1349
          %v1354 = vmul.f32 %v1331, %v1346
          %v1355 = vmul.f32 %v1333, %v1348
          %v1356 = vmul.f32 %v1335, %v1350
          %1360 = vrot.lane.b32.xlu0 %v1354, 16
          %v1361 = vpop.permute.xlu0 %1360
          %1362 = vrot.lane.b32.xlu0 %v1355, 16
          %v1363 = vpop.permute.xlu0 %1362
          %1364 = vrot.lane.b32.xlu0 %v1356, 16
          %v1365 = vpop.permute.xlu0 %1364
          %v1369 = vadd.f32 %v1339, %v1361
          %v1370 = vadd.f32 %v1340, %v1363
          %v1371 = vadd.f32 %v1341, %v1365
          %v1372 = vtanh.pop %v1369
          %v1373 = vtanh.pop %v1370
          %v1374 = vtanh.pop %v1371
          %1378 = vrot.lane.b32.xlu0 %v1372, 16
          %v1379 = vpop.permute.xlu0 %1378
          %1380 = vrot.lane.b32.xlu0 %v1373, 16
          %v1381 = vpop.permute.xlu0 %1380
          %1382 = vrot.lane.b32.xlu0 %v1374, 16
          %v1383 = vpop.permute.xlu0 %1382
          %v1387 = vmul.f32 %v1331, %v1379
          %v1388 = vmul.f32 %v1333, %v1381
          %v1389 = vmul.f32 %v1335, %v1383
          %v1390 = vpack.c.bf16 %v1387, %v1387
          %v1391 = vpack.c.bf16 %v1388, %v1388
          %v1392 = vpack.c.bf16 %v1389, %v1389
          %v1397 = vunpack.c.l.s4 1966171168
          %v1398 = vunpack.c.0.s8 %v1397
          %v1399 = vlaneseq
          %v1400 = vshrl.u32 %v1399, 7
          %v1401 = vsub.s32 %v1398, %v1400
          %v1402 = vrot.slane %v1390, %v1401
          %v1404 = vunpack.c.l.s4 1966171168
          %v1405 = vunpack.c.0.s8 %v1404
          %v1406 = vlaneseq
          %v1407 = vshrl.u32 %v1406, 7
          %v1408 = vsub.s32 %v1405, %v1407
          %v1409 = vrot.slane %v1402, %v1408
          %v1411 = vunpack.c.l.s4 1966171168
          %v1412 = vunpack.c.0.s8 %v1411
          %v1413 = vlaneseq
          %v1414 = vshrl.u32 %v1413, 7
          %v1415 = vsub.s32 %v1412, %v1414
          %v1416 = vrot.slane %v1391, %v1415
          %v1418 = vunpack.c.l.s4 1966171168
          %v1419 = vunpack.c.0.s8 %v1418
          %v1420 = vlaneseq
          %v1421 = vshrl.u32 %v1420, 7
          %v1422 = vsub.s32 %v1419, %v1421
          %v1423 = vrot.slane %v1416, %v1422
          %v1425 = vunpack.c.l.s4 1966171168
          %v1426 = vunpack.c.0.s8 %v1425
          %v1427 = vlaneseq
          %v1428 = vshrl.u32 %v1427, 7
          %v1429 = vsub.s32 %v1426, %v1428
          %v1430 = vrot.slane %v1392, %v1429
          %v1432 = vunpack.c.l.s4 1966171168
          %v1433 = vunpack.c.0.s8 %v1432
          %v1434 = vlaneseq
          %v1435 = vshrl.u32 %v1434, 7
          %v1436 = vsub.s32 %v1433, %v1435
          %v1437 = vrot.slane %v1430, %v1436
          %1438 = vrot.lane.b32.xlu0 %v1409, 96
          %v1439 = vpop.permute.xlu0 %1438
          %1440 = vrot.lane.b32.xlu0 %v1423, 96
          %v1441 = vpop.permute.xlu0 %1440
          %1442 = vrot.lane.b32.xlu0 %v1437, 96
          %v1443 = vpop.permute.xlu0 %1442
          %s1447 = scalar_lea.vmem %s240, 6 [#allocation9]
          %1448 = vst.msk [vmem:[%s1447] sm:$0x1] %vm669, %v1439
          %1449 = vst.msk [vmem:[%s1447 + $0x1] sm:$0x1] %vm669, %v1441
          %1450 = vst.msk [vmem:[%s1447 + $0x2] sm:$0x1] %vm669, %v1443
          %s1451 = scalar_lea.vmem %s206, 9 [#allocation4]
          %v1452 = vld [vmem:[%s1451] sm:$0x1]
          %v1453 = vld [vmem:[%s1451 + $0x1] sm:$0x1]
          %v1454 = vld [vmem:[%s1451 + $0x2] sm:$0x1]
          %v1455 = vunpack.c.l.bf16 %v1452
          %v1456 = vunpack.c.l.bf16 %v1453
          %v1457 = vunpack.c.l.bf16 %v1454
          %v1460 = vunpack.c.l.s4 1983009808
          %v1461 = vunpack.c.0.s8 %v1460
          %v1462 = vlaneseq
          %v1463 = vshrl.u32 %v1462, 7
          %v1464 = vsub.s32 %v1461, %v1463
          %v1465 = vrot.slane %v1387, %v1464
          %1466 = vrot.lane.b32.xlu0 %v1465, 96
          %v1467 = vpop.permute.xlu0 %1466
          %v1468 = vsel %vm284, %v1467, 0
          %1470 = vmatprep.subr.mxu0 0.0
          %1471 = vmatpush1.msra.mxu0 0.0
          %1472 = vmatprep.subr.mxu0 0.0
          %1473 = vmatpush1.msra.mxu0 0.0
          %1474 = vmatprep.subr.mxu0 0.0
          %1475 = vmatpush1.msra.mxu0 0.0
          %1476 = vmatprep.subr.mxu0 0.0
          %1477 = vmatpush1.msra.mxu0 0.0
          %1478 = vmatprep.subr.mxu0 0.0
          %1479 = vmatpush1.msra.mxu0 0.0
          %1480 = vmatprep.subr.mxu0 0.0
          %1481 = vmatpush1.msra.mxu0 0.0
          %1482 = vmatprep.subr.mxu0 0.0
          %1483 = vmatpush1.msra.mxu0 0.0
          %1484 = vmatprep.subr.mxu0 0.0
          %1485 = vmatpush1.msra.mxu0 0.0
          %1486 = vmatprep.subr.mxu0 0.0
          %1487 = vmatpush1.msra.mxu0 0.0
          %1488 = vmatprep.subr.mxu0 0.0
          %1489 = vmatpush1.msra.mxu0 0.0
          %1490 = vmatprep.subr.mxu0 0.0
          %1491 = vmatpush1.msra.mxu0 0.0
          %1492 = vmatprep.subr.mxu0 0.0
          %1493 = vmatpush1.msra.mxu0 0.0
          %1494 = vmatprep.subr.mxu0 0.0
          %1495 = vmatpush1.msra.mxu0 0.0
          %1496 = vmatprep.subr.mxu0 0.0
          %1497 = vmatpush1.msra.mxu0 0.0
          %1498 = vmatprep.subr.mxu0 0.0
          %1499 = vmatpush1.msra.mxu0 %v263
          %1500 = vmatprep.subr.mxu0 0.0
          %1501 = vmatpush1.msra.mxu0 %v262
          %1502 = vmatprep.subr.mxu0 0.0
          %1503 = vmatpush2.msra.mxu0 0.0
          %1504 = vmatprep.subr.mxu0 0.0
          %1505 = vmatpush2.msra.mxu0 0.0
          %1506 = vmatprep.subr.mxu0 0.0
          %1507 = vmatpush2.msra.mxu0 0.0
          %1508 = vmatprep.subr.mxu0 0.0
          %1509 = vmatpush2.msra.mxu0 0.0
          %1510 = vmatprep.subr.mxu0 0.0
          %1511 = vmatpush2.msra.mxu0 0.0
          %1512 = vmatprep.subr.mxu0 0.0
          %1513 = vmatpush2.msra.mxu0 0.0
          %1514 = vmatprep.subr.mxu0 0.0
          %1515 = vmatpush2.msra.mxu0 0.0
          %1516 = vmatprep.subr.mxu0 0.0
          %1517 = vmatpush2.msra.mxu0 0.0
          %1518 = vmatprep.subr.mxu0 0.0
          %1519 = vmatpush2.msra.mxu0 0.0
          %1520 = vmatprep.subr.mxu0 0.0
          %1521 = vmatpush2.msra.mxu0 0.0
          %1522 = vmatprep.subr.mxu0 0.0
          %1523 = vmatpush2.msra.mxu0 0.0
          %1524 = vmatprep.subr.mxu0 0.0
          %1525 = vmatpush2.msra.mxu0 0.0
          %1526 = vmatprep.subr.mxu0 0.0
          %1527 = vmatpush2.msra.mxu0 0.0
          %1528 = vmatprep.subr.mxu0 0.0
          %1529 = vmatpush2.msra.mxu0 0.0
          %1530 = vmatprep.subr.mxu0 0.0
          %1531 = vmatpush2.msra.mxu0 0.0
          %1532 = vmatprep.subr.mxu0 0.0
          %1533 = vmatpush2.msra.mxu0 0.0
          %1534 = vmatprep.mubr.f32.mxu0 0.0
          %1535 = vmatmul.mubr.f32.gmra.mxu0 %v1468
          %v1536 = vpop.f32.mrf.mxu0
          %v1537 = vadd.f32 0.0, %v1536
          %v1538 = vpop.f32.mrf.mxu0
          %1539 = vdwg.mxu0
          %v1542 = vunpack.c.l.s4 1983009808
          %v1543 = vunpack.c.0.s8 %v1542
          %v1544 = vlaneseq
          %v1545 = vshrl.u32 %v1544, 7
          %v1546 = vsub.s32 %v1543, %v1545
          %v1547 = vrot.slane %v1388, %v1546
          %1548 = vrot.lane.b32.xlu0 %v1547, 96
          %v1549 = vpop.permute.xlu0 %1548
          %v1550 = vsel %vm284, %v1549, 0
          %1552 = vmatprep.subr.mxu0 0.0
          %1553 = vmatpush1.msra.mxu0 0.0
          %1554 = vmatprep.subr.mxu0 0.0
          %1555 = vmatpush1.msra.mxu0 0.0
          %1556 = vmatprep.subr.mxu0 0.0
          %1557 = vmatpush1.msra.mxu0 0.0
          %1558 = vmatprep.subr.mxu0 0.0
          %1559 = vmatpush1.msra.mxu0 0.0
          %1560 = vmatprep.subr.mxu0 0.0
          %1561 = vmatpush1.msra.mxu0 0.0
          %1562 = vmatprep.subr.mxu0 0.0
          %1563 = vmatpush1.msra.mxu0 0.0
          %1564 = vmatprep.subr.mxu0 0.0
          %1565 = vmatpush1.msra.mxu0 0.0
          %1566 = vmatprep.subr.mxu0 0.0
          %1567 = vmatpush1.msra.mxu0 0.0
          %1568 = vmatprep.subr.mxu0 0.0
          %1569 = vmatpush1.msra.mxu0 0.0
          %1570 = vmatprep.subr.mxu0 0.0
          %1571 = vmatpush1.msra.mxu0 0.0
          %1572 = vmatprep.subr.mxu0 0.0
          %1573 = vmatpush1.msra.mxu0 0.0
          %1574 = vmatprep.subr.mxu0 0.0
          %1575 = vmatpush1.msra.mxu0 0.0
          %1576 = vmatprep.subr.mxu0 0.0
          %1577 = vmatpush1.msra.mxu0 0.0
          %1578 = vmatprep.subr.mxu0 0.0
          %1579 = vmatpush1.msra.mxu0 0.0
          %1580 = vmatprep.subr.mxu0 0.0
          %1581 = vmatpush1.msra.mxu0 %v265
          %1582 = vmatprep.subr.mxu0 0.0
          %1583 = vmatpush1.msra.mxu0 %v264
          %1584 = vmatprep.subr.mxu0 0.0
          %1585 = vmatpush2.msra.mxu0 0.0
          %1586 = vmatprep.subr.mxu0 0.0
          %1587 = vmatpush2.msra.mxu0 0.0
          %1588 = vmatprep.subr.mxu0 0.0
          %1589 = vmatpush2.msra.mxu0 0.0
          %1590 = vmatprep.subr.mxu0 0.0
          %1591 = vmatpush2.msra.mxu0 0.0
          %1592 = vmatprep.subr.mxu0 0.0
          %1593 = vmatpush2.msra.mxu0 0.0
          %1594 = vmatprep.subr.mxu0 0.0
          %1595 = vmatpush2.msra.mxu0 0.0
          %1596 = vmatprep.subr.mxu0 0.0
          %1597 = vmatpush2.msra.mxu0 0.0
          %1598 = vmatprep.subr.mxu0 0.0
          %1599 = vmatpush2.msra.mxu0 0.0
          %1600 = vmatprep.subr.mxu0 0.0
          %1601 = vmatpush2.msra.mxu0 0.0
          %1602 = vmatprep.subr.mxu0 0.0
          %1603 = vmatpush2.msra.mxu0 0.0
          %1604 = vmatprep.subr.mxu0 0.0
          %1605 = vmatpush2.msra.mxu0 0.0
          %1606 = vmatprep.subr.mxu0 0.0
          %1607 = vmatpush2.msra.mxu0 0.0
          %1608 = vmatprep.subr.mxu0 0.0
          %1609 = vmatpush2.msra.mxu0 0.0
          %1610 = vmatprep.subr.mxu0 0.0
          %1611 = vmatpush2.msra.mxu0 0.0
          %1612 = vmatprep.subr.mxu0 0.0
          %1613 = vmatpush2.msra.mxu0 0.0
          %1614 = vmatprep.subr.mxu0 0.0
          %1615 = vmatpush2.msra.mxu0 0.0
          %1616 = vmatprep.mubr.f32.mxu0 0.0
          %1617 = vmatmul.mubr.f32.gmra.mxu0 %v1550
          %v1618 = vpop.f32.mrf.mxu0
          %v1619 = vadd.f32 0.0, %v1618
          %v1620 = vpop.f32.mrf.mxu0
          %1621 = vdwg.mxu0
          %v1624 = vunpack.c.l.s4 1983009808
          %v1625 = vunpack.c.0.s8 %v1624
          %v1626 = vlaneseq
          %v1627 = vshrl.u32 %v1626, 7
          %v1628 = vsub.s32 %v1625, %v1627
          %v1629 = vrot.slane %v1389, %v1628
          %1630 = vrot.lane.b32.xlu0 %v1629, 96
          %v1631 = vpop.permute.xlu0 %1630
          %v1632 = vsel %vm284, %v1631, 0
          %1634 = vmatprep.subr.mxu0 0.0
          %1635 = vmatpush1.msra.mxu0 0.0
          %1636 = vmatprep.subr.mxu0 0.0
          %1637 = vmatpush1.msra.mxu0 0.0
          %1638 = vmatprep.subr.mxu0 0.0
          %1639 = vmatpush1.msra.mxu0 0.0
          %1640 = vmatprep.subr.mxu0 0.0
          %1641 = vmatpush1.msra.mxu0 0.0
          %1642 = vmatprep.subr.mxu0 0.0
          %1643 = vmatpush1.msra.mxu0 0.0
          %1644 = vmatprep.subr.mxu0 0.0
          %1645 = vmatpush1.msra.mxu0 0.0
          %1646 = vmatprep.subr.mxu0 0.0
          %1647 = vmatpush1.msra.mxu0 0.0
          %1648 = vmatprep.subr.mxu0 0.0
          %1649 = vmatpush1.msra.mxu0 0.0
          %1650 = vmatprep.subr.mxu0 0.0
          %1651 = vmatpush1.msra.mxu0 0.0
          %1652 = vmatprep.subr.mxu0 0.0
          %1653 = vmatpush1.msra.mxu0 0.0
          %1654 = vmatprep.subr.mxu0 0.0
          %1655 = vmatpush1.msra.mxu0 0.0
          %1656 = vmatprep.subr.mxu0 0.0
          %1657 = vmatpush1.msra.mxu0 0.0
          %1658 = vmatprep.subr.mxu0 0.0
          %1659 = vmatpush1.msra.mxu0 0.0
          %1660 = vmatprep.subr.mxu0 0.0
          %1661 = vmatpush1.msra.mxu0 0.0
          %1662 = vmatprep.subr.mxu0 0.0
          %1663 = vmatpush1.msra.mxu0 %v267
          %1664 = vmatprep.subr.mxu0 0.0
          %1665 = vmatpush1.msra.mxu0 %v266
          %1666 = vmatprep.subr.mxu0 0.0
          %1667 = vmatpush2.msra.mxu0 0.0
          %1668 = vmatprep.subr.mxu0 0.0
          %1669 = vmatpush2.msra.mxu0 0.0
          %1670 = vmatprep.subr.mxu0 0.0
          %1671 = vmatpush2.msra.mxu0 0.0
          %1672 = vmatprep.subr.mxu0 0.0
          %1673 = vmatpush2.msra.mxu0 0.0
          %1674 = vmatprep.subr.mxu0 0.0
          %1675 = vmatpush2.msra.mxu0 0.0
          %1676 = vmatprep.subr.mxu0 0.0
          %1677 = vmatpush2.msra.mxu0 0.0
          %1678 = vmatprep.subr.mxu0 0.0
          %1679 = vmatpush2.msra.mxu0 0.0
          %1680 = vmatprep.subr.mxu0 0.0
          %1681 = vmatpush2.msra.mxu0 0.0
          %1682 = vmatprep.subr.mxu0 0.0
          %1683 = vmatpush2.msra.mxu0 0.0
          %1684 = vmatprep.subr.mxu0 0.0
          %1685 = vmatpush2.msra.mxu0 0.0
          %1686 = vmatprep.subr.mxu0 0.0
          %1687 = vmatpush2.msra.mxu0 0.0
          %1688 = vmatprep.subr.mxu0 0.0
          %1689 = vmatpush2.msra.mxu0 0.0
          %1690 = vmatprep.subr.mxu0 0.0
          %1691 = vmatpush2.msra.mxu0 0.0
          %1692 = vmatprep.subr.mxu0 0.0
          %1693 = vmatpush2.msra.mxu0 0.0
          %1694 = vmatprep.subr.mxu0 0.0
          %1695 = vmatpush2.msra.mxu0 0.0
          %1696 = vmatprep.subr.mxu0 0.0
          %1697 = vmatpush2.msra.mxu0 0.0
          %1698 = vmatprep.mubr.f32.mxu0 0.0
          %1699 = vmatmul.mubr.f32.gmra.mxu0 %v1632
          %v1700 = vpop.f32.mrf.mxu0
          %v1701 = vadd.f32 0.0, %v1700
          %v1702 = vpop.f32.mrf.mxu0
          %1703 = vdwg.mxu0
          %v1704 = vadd.f32 %v1455, %v1537
          %v1705 = vadd.f32 %v1456, %v1619
          %v1706 = vadd.f32 %v1457, %v1701
          %v1707 = vxor.u32 %v1704, 2147483648
          %v1708 = vxor.u32 %v1705, 2147483648
          %v1709 = vxor.u32 %v1706, 2147483648
          %v1710 = vmul.f32 %v1707, 1.442695
          %v1711 = vpow.pop %v1710
          %v1712 = vmul.f32 %v1708, 1.442695
          %v1713 = vpow.pop %v1712
          %v1714 = vmul.f32 %v1709, 1.442695
          %v1715 = vpow.pop %v1714
          %v1716 = vadd.f32 %v1711, 1.0
          %v1717 = vadd.f32 %v1713, 1.0
          %v1718 = vadd.f32 %v1715, 1.0
          %v1719 = vrcp.pop %v1716
          %v1720 = vmul.f32 1.0, %v1719
          %v1721 = vrcp.pop %v1717
          %v1722 = vmul.f32 1.0, %v1721
          %v1723 = vrcp.pop %v1718
          %v1724 = vmul.f32 1.0, %v1723
          %v1725 = vtanh.pop %v1704
          %v1726 = vtanh.pop %v1705
          %v1727 = vtanh.pop %v1706
          %v1728 = vmul.f32 %v1720, %v1369
          %v1729 = vmul.f32 %v1722, %v1370
          %v1730 = vmul.f32 %v1724, %v1371
          %1734 = vrot.lane.b32.xlu0 %v1725, 80
          %v1735 = vpop.permute.xlu0 %1734
          %1736 = vrot.lane.b32.xlu0 %v1726, 80
          %v1737 = vpop.permute.xlu0 %1736
          %1738 = vrot.lane.b32.xlu0 %v1727, 80
          %v1739 = vpop.permute.xlu0 %1738
          %v1743 = vmul.f32 %v1720, %v1735
          %v1744 = vmul.f32 %v1722, %v1737
          %v1745 = vmul.f32 %v1724, %v1739
          %1749 = vrot.lane.b32.xlu0 %v1743, 16
          %v1750 = vpop.permute.xlu0 %1749
          %1751 = vrot.lane.b32.xlu0 %v1744, 16
          %v1752 = vpop.permute.xlu0 %1751
          %1753 = vrot.lane.b32.xlu0 %v1745, 16
          %v1754 = vpop.permute.xlu0 %1753
          %v1758 = vadd.f32 %v1728, %v1750
          %v1759 = vadd.f32 %v1729, %v1752
          %v1760 = vadd.f32 %v1730, %v1754
          %v1761 = vtanh.pop %v1758
          %v1762 = vtanh.pop %v1759
          %v1763 = vtanh.pop %v1760
          %1767 = vrot.lane.b32.xlu0 %v1761, 16
          %v1768 = vpop.permute.xlu0 %1767
          %1769 = vrot.lane.b32.xlu0 %v1762, 16
          %v1770 = vpop.permute.xlu0 %1769
          %1771 = vrot.lane.b32.xlu0 %v1763, 16
          %v1772 = vpop.permute.xlu0 %1771
          %v1776 = vmul.f32 %v1720, %v1768
          %v1777 = vmul.f32 %v1722, %v1770
          %v1778 = vmul.f32 %v1724, %v1772
          %v1779 = vpack.c.bf16 %v1776, %v1776
          %v1780 = vpack.c.bf16 %v1777, %v1777
          %v1781 = vpack.c.bf16 %v1778, %v1778
          %v1786 = vunpack.c.l.s4 1966171168
          %v1787 = vunpack.c.0.s8 %v1786
          %v1788 = vlaneseq
          %v1789 = vshrl.u32 %v1788, 7
          %v1790 = vsub.s32 %v1787, %v1789
          %v1791 = vrot.slane %v1779, %v1790
          %v1793 = vunpack.c.l.s4 1966171168
          %v1794 = vunpack.c.0.s8 %v1793
          %v1795 = vlaneseq
          %v1796 = vshrl.u32 %v1795, 7
          %v1797 = vsub.s32 %v1794, %v1796
          %v1798 = vrot.slane %v1791, %v1797
          %v1800 = vunpack.c.l.s4 1966171168
          %v1801 = vunpack.c.0.s8 %v1800
          %v1802 = vlaneseq
          %v1803 = vshrl.u32 %v1802, 7
          %v1804 = vsub.s32 %v1801, %v1803
          %v1805 = vrot.slane %v1780, %v1804
          %v1807 = vunpack.c.l.s4 1966171168
          %v1808 = vunpack.c.0.s8 %v1807
          %v1809 = vlaneseq
          %v1810 = vshrl.u32 %v1809, 7
          %v1811 = vsub.s32 %v1808, %v1810
          %v1812 = vrot.slane %v1805, %v1811
          %v1814 = vunpack.c.l.s4 1966171168
          %v1815 = vunpack.c.0.s8 %v1814
          %v1816 = vlaneseq
          %v1817 = vshrl.u32 %v1816, 7
          %v1818 = vsub.s32 %v1815, %v1817
          %v1819 = vrot.slane %v1781, %v1818
          %v1821 = vunpack.c.l.s4 1966171168
          %v1822 = vunpack.c.0.s8 %v1821
          %v1823 = vlaneseq
          %v1824 = vshrl.u32 %v1823, 7
          %v1825 = vsub.s32 %v1822, %v1824
          %v1826 = vrot.slane %v1819, %v1825
          %1827 = vrot.lane.b32.xlu0 %v1798, 96
          %v1828 = vpop.permute.xlu0 %1827
          %1829 = vrot.lane.b32.xlu0 %v1812, 96
          %v1830 = vpop.permute.xlu0 %1829
          %1831 = vrot.lane.b32.xlu0 %v1826, 96
          %v1832 = vpop.permute.xlu0 %1831
          %s1836 = scalar_lea.vmem %s240, 9 [#allocation9]
          %1837 = vst.msk [vmem:[%s1836] sm:$0x1] %vm669, %v1828
          %1838 = vst.msk [vmem:[%s1836 + $0x1] sm:$0x1] %vm669, %v1830
          %1839 = vst.msk [vmem:[%s1836 + $0x2] sm:$0x1] %vm669, %v1832
          %v1844 = vunpack.c.l.s4 1983009808
          %v1845 = vunpack.c.0.s8 %v1844
          %v1846 = vlaneseq
          %v1847 = vshrl.u32 %v1846, 7
          %v1848 = vsub.s32 %v1845, %v1847
          %v1849 = vrot.slane %v1776, %v1848
          %v1851 = vunpack.c.l.s4 1983009808
          %v1852 = vunpack.c.0.s8 %v1851
          %v1853 = vlaneseq
          %v1854 = vshrl.u32 %v1853, 7
          %v1855 = vsub.s32 %v1852, %v1854
          %v1856 = vrot.slane %v1777, %v1855
          %v1858 = vunpack.c.l.s4 1983009808
          %v1859 = vunpack.c.0.s8 %v1858
          %v1860 = vlaneseq
          %v1861 = vshrl.u32 %v1860, 7
          %v1862 = vsub.s32 %v1859, %v1861
          %v1863 = vrot.slane %v1778, %v1862
          %1864 = vrot.lane.b32.xlu0 %v1849, 96
          %v1865 = vpop.permute.xlu0 %1864
          %1866 = vrot.lane.b32.xlu0 %v1856, 96
          %v1867 = vpop.permute.xlu0 %1866
          %1868 = vrot.lane.b32.xlu0 %v1863, 96
          %v1869 = vpop.permute.xlu0 %1868
          %vm1873 = vcmask 123904
          %1874 = vst.msk [vmem:[#allocation2] sm:$0x3] %vm1873, %v1865
          %1875 = vst.msk [vmem:[#allocation2 + $0x2] sm:$0x3] %vm1873, %v1867
          %1876 = vst.msk [vmem:[#allocation2 + $0x4] sm:$0x3] %vm1873, %v1869
          %v1881 = vunpack.c.l.s4 1983009808
          %v1882 = vunpack.c.0.s8 %v1881
          %v1883 = vlaneseq
          %v1884 = vshrl.u32 %v1883, 7
          %v1885 = vsub.s32 %v1882, %v1884
          %v1886 = vrot.slane %v1758, %v1885
          %v1888 = vunpack.c.l.s4 1983009808
          %v1889 = vunpack.c.0.s8 %v1888
          %v1890 = vlaneseq
          %v1891 = vshrl.u32 %v1890, 7
          %v1892 = vsub.s32 %v1889, %v1891
          %v1893 = vrot.slane %v1759, %v1892
          %v1895 = vunpack.c.l.s4 1983009808
          %v1896 = vunpack.c.0.s8 %v1895
          %v1897 = vlaneseq
          %v1898 = vshrl.u32 %v1897, 7
          %v1899 = vsub.s32 %v1896, %v1898
          %v1900 = vrot.slane %v1760, %v1899
          %1901 = vrot.lane.b32.xlu0 %v1886, 112
          %v1902 = vpop.permute.xlu0 %1901
          %1903 = vrot.lane.b32.xlu0 %v1893, 112
          %v1904 = vpop.permute.xlu0 %1903
          %1905 = vrot.lane.b32.xlu0 %v1900, 112
          %v1906 = vpop.permute.xlu0 %1905
          %1910 = vst.msk [vmem:[#allocation3] sm:$0x3] %vm1873, %v1902
          %1911 = vst.msk [vmem:[#allocation3 + $0x2] sm:$0x3] %vm1873, %v1904
          %1912 = vst.msk [vmem:[#allocation3 + $0x4] sm:$0x3] %vm1873, %v1906
        $region44: #{tpu_custom_call.1} parent=27 // pred_fallthru
          _
        %p1913 = scmp.eq.s32.totalorder %s26, 1
        // Predicated region
        $region45: #{tpu_custom_call.1} parent=27 // pred_check
          %p1914 = pneg %p1913
        $region46: #{tpu_custom_call.1} parent=27 // pred_check_branch
          %1916 = sbr.rel (%p1914) target = $region48
        $region47: #{tpu_custom_call.1} parent=27 // pred_region
          %v1917 = vld [vmem:[#allocation2] sm:$0x3]
          %v1918 = vld [vmem:[#allocation2 + $0x2] sm:$0x3]
          %v1919 = vld [vmem:[#allocation2 + $0x4] sm:$0x3]
          %v1920 = vld [vmem:[#allocation3] sm:$0x3]
          %v1921 = vld [vmem:[#allocation3 + $0x2] sm:$0x3]
          %v1922 = vld [vmem:[#allocation3 + $0x4] sm:$0x3]
          %s1923 = scalar_lea.vmem %s206, 9 [#allocation4]
          %v1924 = vld [vmem:[%s1923] sm:$0x1]
          %v1925 = vld [vmem:[%s1923 + $0x1] sm:$0x1]
          %v1926 = vld [vmem:[%s1923 + $0x2] sm:$0x1]
          %v1927 = vunpack.c.l.bf16 %v1924
          %v1928 = vunpack.c.l.bf16 %v1925
          %v1929 = vunpack.c.l.bf16 %v1926
          %vm1930 = vcmask 130048
          %v1932 = vsel %vm1930, %v1917, 0
          %1934 = vmatprep.subr.mxu0 0.0
          %1935 = vmatpush1.msra.mxu0 0.0
          %1936 = vmatprep.subr.mxu0 0.0
          %1937 = vmatpush1.msra.mxu0 0.0
          %1938 = vmatprep.subr.mxu0 0.0
          %1939 = vmatpush1.msra.mxu0 0.0
          %1940 = vmatprep.subr.mxu0 0.0
          %1941 = vmatpush1.msra.mxu0 0.0
          %1942 = vmatprep.subr.mxu0 0.0
          %1943 = vmatpush1.msra.mxu0 0.0
          %1944 = vmatprep.subr.mxu0 0.0
          %1945 = vmatpush1.msra.mxu0 0.0
          %1946 = vmatprep.subr.mxu0 0.0
          %1947 = vmatpush1.msra.mxu0 0.0
          %1948 = vmatprep.subr.mxu0 0.0
          %1949 = vmatpush1.msra.mxu0 0.0
          %1950 = vmatprep.subr.mxu0 0.0
          %1951 = vmatpush1.msra.mxu0 0.0
          %1952 = vmatprep.subr.mxu0 0.0
          %1953 = vmatpush1.msra.mxu0 0.0
          %1954 = vmatprep.subr.mxu0 0.0
          %1955 = vmatpush1.msra.mxu0 0.0
          %1956 = vmatprep.subr.mxu0 0.0
          %1957 = vmatpush1.msra.mxu0 0.0
          %1958 = vmatprep.subr.mxu0 0.0
          %1959 = vmatpush1.msra.mxu0 0.0
          %1960 = vmatprep.subr.mxu0 0.0
          %1961 = vmatpush1.msra.mxu0 0.0
          %1962 = vmatprep.subr.mxu0 0.0
          %1963 = vmatpush1.msra.mxu0 %v263
          %1964 = vmatprep.subr.mxu0 0.0
          %1965 = vmatpush1.msra.mxu0 %v262
          %1966 = vmatprep.subr.mxu0 0.0
          %1967 = vmatpush2.msra.mxu0 0.0
          %1968 = vmatprep.subr.mxu0 0.0
          %1969 = vmatpush2.msra.mxu0 0.0
          %1970 = vmatprep.subr.mxu0 0.0
          %1971 = vmatpush2.msra.mxu0 0.0
          %1972 = vmatprep.subr.mxu0 0.0
          %1973 = vmatpush2.msra.mxu0 0.0
          %1974 = vmatprep.subr.mxu0 0.0
          %1975 = vmatpush2.msra.mxu0 0.0
          %1976 = vmatprep.subr.mxu0 0.0
          %1977 = vmatpush2.msra.mxu0 0.0
          %1978 = vmatprep.subr.mxu0 0.0
          %1979 = vmatpush2.msra.mxu0 0.0
          %1980 = vmatprep.subr.mxu0 0.0
          %1981 = vmatpush2.msra.mxu0 0.0
          %1982 = vmatprep.subr.mxu0 0.0
          %1983 = vmatpush2.msra.mxu0 0.0
          %1984 = vmatprep.subr.mxu0 0.0
          %1985 = vmatpush2.msra.mxu0 0.0
          %1986 = vmatprep.subr.mxu0 0.0
          %1987 = vmatpush2.msra.mxu0 0.0
          %1988 = vmatprep.subr.mxu0 0.0
          %1989 = vmatpush2.msra.mxu0 0.0
          %1990 = vmatprep.subr.mxu0 0.0
          %1991 = vmatpush2.msra.mxu0 0.0
          %1992 = vmatprep.subr.mxu0 0.0
          %1993 = vmatpush2.msra.mxu0 0.0
          %1994 = vmatprep.subr.mxu0 0.0
          %1995 = vmatpush2.msra.mxu0 0.0
          %1996 = vmatprep.subr.mxu0 0.0
          %1997 = vmatpush2.msra.mxu0 0.0
          %1998 = vmatprep.mubr.f32.mxu0 0.0
          %1999 = vmatmul.mubr.f32.gmra.mxu0 %v1932
          %v2000 = vpop.f32.mrf.mxu0
          %v2001 = vadd.f32 0.0, %v2000
          %v2002 = vpop.f32.mrf.mxu0
          %2003 = vdwg.mxu0
          %v2005 = vsel %vm1930, %v1918, 0
          %2007 = vmatprep.subr.mxu0 0.0
          %2008 = vmatpush1.msra.mxu0 0.0
          %2009 = vmatprep.subr.mxu0 0.0
          %2010 = vmatpush1.msra.mxu0 0.0
          %2011 = vmatprep.subr.mxu0 0.0
          %2012 = vmatpush1.msra.mxu0 0.0
          %2013 = vmatprep.subr.mxu0 0.0
          %2014 = vmatpush1.msra.mxu0 0.0
          %2015 = vmatprep.subr.mxu0 0.0
          %2016 = vmatpush1.msra.mxu0 0.0
          %2017 = vmatprep.subr.mxu0 0.0
          %2018 = vmatpush1.msra.mxu0 0.0
          %2019 = vmatprep.subr.mxu0 0.0
          %2020 = vmatpush1.msra.mxu0 0.0
          %2021 = vmatprep.subr.mxu0 0.0
          %2022 = vmatpush1.msra.mxu0 0.0
          %2023 = vmatprep.subr.mxu0 0.0
          %2024 = vmatpush1.msra.mxu0 0.0
          %2025 = vmatprep.subr.mxu0 0.0
          %2026 = vmatpush1.msra.mxu0 0.0
          %2027 = vmatprep.subr.mxu0 0.0
          %2028 = vmatpush1.msra.mxu0 0.0
          %2029 = vmatprep.subr.mxu0 0.0
          %2030 = vmatpush1.msra.mxu0 0.0
          %2031 = vmatprep.subr.mxu0 0.0
          %2032 = vmatpush1.msra.mxu0 0.0
          %2033 = vmatprep.subr.mxu0 0.0
          %2034 = vmatpush1.msra.mxu0 0.0
          %2035 = vmatprep.subr.mxu0 0.0
          %2036 = vmatpush1.msra.mxu0 %v265
          %2037 = vmatprep.subr.mxu0 0.0
          %2038 = vmatpush1.msra.mxu0 %v264
          %2039 = vmatprep.subr.mxu0 0.0
          %2040 = vmatpush2.msra.mxu0 0.0
          %2041 = vmatprep.subr.mxu0 0.0
          %2042 = vmatpush2.msra.mxu0 0.0
          %2043 = vmatprep.subr.mxu0 0.0
          %2044 = vmatpush2.msra.mxu0 0.0
          %2045 = vmatprep.subr.mxu0 0.0
          %2046 = vmatpush2.msra.mxu0 0.0
          %2047 = vmatprep.subr.mxu0 0.0
          %2048 = vmatpush2.msra.mxu0 0.0
          %2049 = vmatprep.subr.mxu0 0.0
          %2050 = vmatpush2.msra.mxu0 0.0
          %2051 = vmatprep.subr.mxu0 0.0
          %2052 = vmatpush2.msra.mxu0 0.0
          %2053 = vmatprep.subr.mxu0 0.0
          %2054 = vmatpush2.msra.mxu0 0.0
          %2055 = vmatprep.subr.mxu0 0.0
          %2056 = vmatpush2.msra.mxu0 0.0
          %2057 = vmatprep.subr.mxu0 0.0
          %2058 = vmatpush2.msra.mxu0 0.0
          %2059 = vmatprep.subr.mxu0 0.0
          %2060 = vmatpush2.msra.mxu0 0.0
          %2061 = vmatprep.subr.mxu0 0.0
          %2062 = vmatpush2.msra.mxu0 0.0
          %2063 = vmatprep.subr.mxu0 0.0
          %2064 = vmatpush2.msra.mxu0 0.0
          %2065 = vmatprep.subr.mxu0 0.0
          %2066 = vmatpush2.msra.mxu0 0.0
          %2067 = vmatprep.subr.mxu0 0.0
          %2068 = vmatpush2.msra.mxu0 0.0
          %2069 = vmatprep.subr.mxu0 0.0
          %2070 = vmatpush2.msra.mxu0 0.0
          %2071 = vmatprep.mubr.f32.mxu0 0.0
          %2072 = vmatmul.mubr.f32.gmra.mxu0 %v2005
          %v2073 = vpop.f32.mrf.mxu0
          %v2074 = vadd.f32 0.0, %v2073
          %v2075 = vpop.f32.mrf.mxu0
          %2076 = vdwg.mxu0
          %v2078 = vsel %vm1930, %v1919, 0
          %2080 = vmatprep.subr.mxu0 0.0
          %2081 = vmatpush1.msra.mxu0 0.0
          %2082 = vmatprep.subr.mxu0 0.0
          %2083 = vmatpush1.msra.mxu0 0.0
          %2084 = vmatprep.subr.mxu0 0.0
          %2085 = vmatpush1.msra.mxu0 0.0
          %2086 = vmatprep.subr.mxu0 0.0
          %2087 = vmatpush1.msra.mxu0 0.0
          %2088 = vmatprep.subr.mxu0 0.0
          %2089 = vmatpush1.msra.mxu0 0.0
          %2090 = vmatprep.subr.mxu0 0.0
          %2091 = vmatpush1.msra.mxu0 0.0
          %2092 = vmatprep.subr.mxu0 0.0
          %2093 = vmatpush1.msra.mxu0 0.0
          %2094 = vmatprep.subr.mxu0 0.0
          %2095 = vmatpush1.msra.mxu0 0.0
          %2096 = vmatprep.subr.mxu0 0.0
          %2097 = vmatpush1.msra.mxu0 0.0
          %2098 = vmatprep.subr.mxu0 0.0
          %2099 = vmatpush1.msra.mxu0 0.0
          %2100 = vmatprep.subr.mxu0 0.0
          %2101 = vmatpush1.msra.mxu0 0.0
          %2102 = vmatprep.subr.mxu0 0.0
          %2103 = vmatpush1.msra.mxu0 0.0
          %2104 = vmatprep.subr.mxu0 0.0
          %2105 = vmatpush1.msra.mxu0 0.0
          %2106 = vmatprep.subr.mxu0 0.0
          %2107 = vmatpush1.msra.mxu0 0.0
          %2108 = vmatprep.subr.mxu0 0.0
          %2109 = vmatpush1.msra.mxu0 %v267
          %2110 = vmatprep.subr.mxu0 0.0
          %2111 = vmatpush1.msra.mxu0 %v266
          %2112 = vmatprep.subr.mxu0 0.0
          %2113 = vmatpush2.msra.mxu0 0.0
          %2114 = vmatprep.subr.mxu0 0.0
          %2115 = vmatpush2.msra.mxu0 0.0
          %2116 = vmatprep.subr.mxu0 0.0
          %2117 = vmatpush2.msra.mxu0 0.0
          %2118 = vmatprep.subr.mxu0 0.0
          %2119 = vmatpush2.msra.mxu0 0.0
          %2120 = vmatprep.subr.mxu0 0.0
          %2121 = vmatpush2.msra.mxu0 0.0
          %2122 = vmatprep.subr.mxu0 0.0
          %2123 = vmatpush2.msra.mxu0 0.0
          %2124 = vmatprep.subr.mxu0 0.0
          %2125 = vmatpush2.msra.mxu0 0.0
          %2126 = vmatprep.subr.mxu0 0.0
          %2127 = vmatpush2.msra.mxu0 0.0
          %2128 = vmatprep.subr.mxu0 0.0
          %2129 = vmatpush2.msra.mxu0 0.0
          %2130 = vmatprep.subr.mxu0 0.0
          %2131 = vmatpush2.msra.mxu0 0.0
          %2132 = vmatprep.subr.mxu0 0.0
          %2133 = vmatpush2.msra.mxu0 0.0
          %2134 = vmatprep.subr.mxu0 0.0
          %2135 = vmatpush2.msra.mxu0 0.0
          %2136 = vmatprep.subr.mxu0 0.0
          %2137 = vmatpush2.msra.mxu0 0.0
          %2138 = vmatprep.subr.mxu0 0.0
          %2139 = vmatpush2.msra.mxu0 0.0
          %2140 = vmatprep.subr.mxu0 0.0
          %2141 = vmatpush2.msra.mxu0 0.0
          %2142 = vmatprep.subr.mxu0 0.0
          %2143 = vmatpush2.msra.mxu0 0.0
          %2144 = vmatprep.mubr.f32.mxu0 0.0
          %2145 = vmatmul.mubr.f32.gmra.mxu0 %v2078
          %v2146 = vpop.f32.mrf.mxu0
          %v2147 = vadd.f32 0.0, %v2146
          %v2148 = vpop.f32.mrf.mxu0
          %2149 = vdwg.mxu0
          %v2150 = vadd.f32 %v1927, %v2001
          %v2151 = vadd.f32 %v1928, %v2074
          %v2152 = vadd.f32 %v1929, %v2147
          %v2153 = vxor.u32 %v2150, 2147483648
          %v2154 = vxor.u32 %v2151, 2147483648
          %v2155 = vxor.u32 %v2152, 2147483648
          %v2156 = vmul.f32 %v2153, 1.442695
          %v2157 = vpow.pop %v2156
          %v2158 = vmul.f32 %v2154, 1.442695
          %v2159 = vpow.pop %v2158
          %v2160 = vmul.f32 %v2155, 1.442695
          %v2161 = vpow.pop %v2160
          %v2162 = vadd.f32 %v2157, 1.0
          %v2163 = vadd.f32 %v2159, 1.0
          %v2164 = vadd.f32 %v2161, 1.0
          %v2165 = vrcp.pop %v2162
          %v2166 = vmul.f32 1.0, %v2165
          %v2167 = vrcp.pop %v2163
          %v2168 = vmul.f32 1.0, %v2167
          %v2169 = vrcp.pop %v2164
          %v2170 = vmul.f32 1.0, %v2169
          %v2171 = vtanh.pop %v2150
          %v2172 = vtanh.pop %v2151
          %v2173 = vtanh.pop %v2152
          %v2178 = vunpack.c.l.s4 1983009808
          %v2179 = vunpack.c.0.s8 %v2178
          %v2180 = vlaneseq
          %v2181 = vshrl.u32 %v2180, 7
          %v2182 = vsub.s32 %v2179, %v2181
          %v2183 = vrot.slane %v1920, %v2182
          %v2185 = vunpack.c.l.s4 1983009808
          %v2186 = vunpack.c.0.s8 %v2185
          %v2187 = vlaneseq
          %v2188 = vshrl.u32 %v2187, 7
          %v2189 = vsub.s32 %v2186, %v2188
          %v2190 = vrot.slane %v1921, %v2189
          %v2192 = vunpack.c.l.s4 1983009808
          %v2193 = vunpack.c.0.s8 %v2192
          %v2194 = vlaneseq
          %v2195 = vshrl.u32 %v2194, 7
          %v2196 = vsub.s32 %v2193, %v2195
          %v2197 = vrot.slane %v1922, %v2196
          %2198 = vrot.lane.b32.xlu0 %v2183, 16
          %v2199 = vpop.permute.xlu0 %2198
          %2200 = vrot.lane.b32.xlu0 %v2190, 16
          %v2201 = vpop.permute.xlu0 %2200
          %2202 = vrot.lane.b32.xlu0 %v2197, 16
          %v2203 = vpop.permute.xlu0 %2202
          %v2207 = vmul.f32 %v2166, %v2199
          %v2208 = vmul.f32 %v2168, %v2201
          %v2209 = vmul.f32 %v2170, %v2203
          %2213 = vrot.lane.b32.xlu0 %v2171, 80
          %v2214 = vpop.permute.xlu0 %2213
          %2215 = vrot.lane.b32.xlu0 %v2172, 80
          %v2216 = vpop.permute.xlu0 %2215
          %2217 = vrot.lane.b32.xlu0 %v2173, 80
          %v2218 = vpop.permute.xlu0 %2217
          %v2222 = vmul.f32 %v2166, %v2214
          %v2223 = vmul.f32 %v2168, %v2216
          %v2224 = vmul.f32 %v2170, %v2218
          %2228 = vrot.lane.b32.xlu0 %v2222, 16
          %v2229 = vpop.permute.xlu0 %2228
          %2230 = vrot.lane.b32.xlu0 %v2223, 16
          %v2231 = vpop.permute.xlu0 %2230
          %2232 = vrot.lane.b32.xlu0 %v2224, 16
          %v2233 = vpop.permute.xlu0 %2232
          %v2237 = vadd.f32 %v2207, %v2229
          %v2238 = vadd.f32 %v2208, %v2231
          %v2239 = vadd.f32 %v2209, %v2233
          %v2240 = vtanh.pop %v2237
          %v2241 = vtanh.pop %v2238
          %v2242 = vtanh.pop %v2239
          %2246 = vrot.lane.b32.xlu0 %v2240, 16
          %v2247 = vpop.permute.xlu0 %2246
          %2248 = vrot.lane.b32.xlu0 %v2241, 16
          %v2249 = vpop.permute.xlu0 %2248
          %2250 = vrot.lane.b32.xlu0 %v2242, 16
          %v2251 = vpop.permute.xlu0 %2250
          %v2255 = vmul.f32 %v2166, %v2247
          %v2256 = vmul.f32 %v2168, %v2249
          %v2257 = vmul.f32 %v2170, %v2251
          %v2258 = vpack.c.bf16 %v2255, %v2255
          %v2259 = vpack.c.bf16 %v2256, %v2256
          %v2260 = vpack.c.bf16 %v2257, %v2257
          %v2265 = vunpack.c.l.s4 1966171168
          %v2266 = vunpack.c.0.s8 %v2265
          %v2267 = vlaneseq
          %v2268 = vshrl.u32 %v2267, 7
          %v2269 = vsub.s32 %v2266, %v2268
          %v2270 = vrot.slane %v2258, %v2269
          %v2272 = vunpack.c.l.s4 1966171168
          %v2273 = vunpack.c.0.s8 %v2272
          %v2274 = vlaneseq
          %v2275 = vshrl.u32 %v2274, 7
          %v2276 = vsub.s32 %v2273, %v2275
          %v2277 = vrot.slane %v2270, %v2276
          %v2279 = vunpack.c.l.s4 1966171168
          %v2280 = vunpack.c.0.s8 %v2279
          %v2281 = vlaneseq
          %v2282 = vshrl.u32 %v2281, 7
          %v2283 = vsub.s32 %v2280, %v2282
          %v2284 = vrot.slane %v2259, %v2283
          %v2286 = vunpack.c.l.s4 1966171168
          %v2287 = vunpack.c.0.s8 %v2286
          %v2288 = vlaneseq
          %v2289 = vshrl.u32 %v2288, 7
          %v2290 = vsub.s32 %v2287, %v2289
          %v2291 = vrot.slane %v2284, %v2290
          %v2293 = vunpack.c.l.s4 1966171168
          %v2294 = vunpack.c.0.s8 %v2293
          %v2295 = vlaneseq
          %v2296 = vshrl.u32 %v2295, 7
          %v2297 = vsub.s32 %v2294, %v2296
          %v2298 = vrot.slane %v2260, %v2297
          %v2300 = vunpack.c.l.s4 1966171168
          %v2301 = vunpack.c.0.s8 %v2300
          %v2302 = vlaneseq
          %v2303 = vshrl.u32 %v2302, 7
          %v2304 = vsub.s32 %v2301, %v2303
          %v2305 = vrot.slane %v2298, %v2304
          %2306 = vrot.lane.b32.xlu0 %v2277, 96
          %v2307 = vpop.permute.xlu0 %2306
          %2308 = vrot.lane.b32.xlu0 %v2291, 96
          %v2309 = vpop.permute.xlu0 %2308
          %2310 = vrot.lane.b32.xlu0 %v2305, 96
          %v2311 = vpop.permute.xlu0 %2310
          %s2315 = scalar_lea.vmem %s240, 9 [#allocation9]
          %vm2316 = vcmask 122880
          %2317 = vst.msk [vmem:[%s2315] sm:$0x1] %vm2316, %v2307
          %2318 = vst.msk [vmem:[%s2315 + $0x1] sm:$0x1] %vm2316, %v2309
          %2319 = vst.msk [vmem:[%s2315 + $0x2] sm:$0x1] %vm2316, %v2311
          %s2320 = scalar_lea.vmem %s206, 6 [#allocation4]
          %v2321 = vld [vmem:[%s2320] sm:$0x1]
          %v2322 = vld [vmem:[%s2320 + $0x1] sm:$0x1]
          %v2323 = vld [vmem:[%s2320 + $0x2] sm:$0x1]
          %v2324 = vunpack.c.l.bf16 %v2321
          %v2325 = vunpack.c.l.bf16 %v2322
          %v2326 = vunpack.c.l.bf16 %v2323
          %v2329 = vunpack.c.l.s4 1983009808
          %v2330 = vunpack.c.0.s8 %v2329
          %v2331 = vlaneseq
          %v2332 = vshrl.u32 %v2331, 7
          %v2333 = vsub.s32 %v2330, %v2332
          %v2334 = vrot.slane %v2255, %v2333
          %2335 = vrot.lane.b32.xlu0 %v2334, 96
          %v2336 = vpop.permute.xlu0 %2335
          %v2337 = vsel %vm1930, %v2336, 0
          %2339 = vmatprep.subr.mxu0 0.0
          %2340 = vmatpush1.msra.mxu0 0.0
          %2341 = vmatprep.subr.mxu0 0.0
          %2342 = vmatpush1.msra.mxu0 0.0
          %2343 = vmatprep.subr.mxu0 0.0
          %2344 = vmatpush1.msra.mxu0 0.0
          %2345 = vmatprep.subr.mxu0 0.0
          %2346 = vmatpush1.msra.mxu0 0.0
          %2347 = vmatprep.subr.mxu0 0.0
          %2348 = vmatpush1.msra.mxu0 0.0
          %2349 = vmatprep.subr.mxu0 0.0
          %2350 = vmatpush1.msra.mxu0 0.0
          %2351 = vmatprep.subr.mxu0 0.0
          %2352 = vmatpush1.msra.mxu0 0.0
          %2353 = vmatprep.subr.mxu0 0.0
          %2354 = vmatpush1.msra.mxu0 0.0
          %2355 = vmatprep.subr.mxu0 0.0
          %2356 = vmatpush1.msra.mxu0 0.0
          %2357 = vmatprep.subr.mxu0 0.0
          %2358 = vmatpush1.msra.mxu0 0.0
          %2359 = vmatprep.subr.mxu0 0.0
          %2360 = vmatpush1.msra.mxu0 0.0
          %2361 = vmatprep.subr.mxu0 0.0
          %2362 = vmatpush1.msra.mxu0 0.0
          %2363 = vmatprep.subr.mxu0 0.0
          %2364 = vmatpush1.msra.mxu0 0.0
          %2365 = vmatprep.subr.mxu0 0.0
          %2366 = vmatpush1.msra.mxu0 0.0
          %2367 = vmatprep.subr.mxu0 0.0
          %2368 = vmatpush1.msra.mxu0 %v263
          %2369 = vmatprep.subr.mxu0 0.0
          %2370 = vmatpush1.msra.mxu0 %v262
          %2371 = vmatprep.subr.mxu0 0.0
          %2372 = vmatpush2.msra.mxu0 0.0
          %2373 = vmatprep.subr.mxu0 0.0
          %2374 = vmatpush2.msra.mxu0 0.0
          %2375 = vmatprep.subr.mxu0 0.0
          %2376 = vmatpush2.msra.mxu0 0.0
          %2377 = vmatprep.subr.mxu0 0.0
          %2378 = vmatpush2.msra.mxu0 0.0
          %2379 = vmatprep.subr.mxu0 0.0
          %2380 = vmatpush2.msra.mxu0 0.0
          %2381 = vmatprep.subr.mxu0 0.0
          %2382 = vmatpush2.msra.mxu0 0.0
          %2383 = vmatprep.subr.mxu0 0.0
          %2384 = vmatpush2.msra.mxu0 0.0
          %2385 = vmatprep.subr.mxu0 0.0
          %2386 = vmatpush2.msra.mxu0 0.0
          %2387 = vmatprep.subr.mxu0 0.0
          %2388 = vmatpush2.msra.mxu0 0.0
          %2389 = vmatprep.subr.mxu0 0.0
          %2390 = vmatpush2.msra.mxu0 0.0
          %2391 = vmatprep.subr.mxu0 0.0
          %2392 = vmatpush2.msra.mxu0 0.0
          %2393 = vmatprep.subr.mxu0 0.0
          %2394 = vmatpush2.msra.mxu0 0.0
          %2395 = vmatprep.subr.mxu0 0.0
          %2396 = vmatpush2.msra.mxu0 0.0
          %2397 = vmatprep.subr.mxu0 0.0
          %2398 = vmatpush2.msra.mxu0 0.0
          %2399 = vmatprep.subr.mxu0 0.0
          %2400 = vmatpush2.msra.mxu0 0.0
          %2401 = vmatprep.subr.mxu0 0.0
          %2402 = vmatpush2.msra.mxu0 0.0
          %2403 = vmatprep.mubr.f32.mxu0 0.0
          %2404 = vmatmul.mubr.f32.gmra.mxu0 %v2337
          %v2405 = vpop.f32.mrf.mxu0
          %v2406 = vadd.f32 0.0, %v2405
          %v2407 = vpop.f32.mrf.mxu0
          %2408 = vdwg.mxu0
          %v2411 = vunpack.c.l.s4 1983009808
          %v2412 = vunpack.c.0.s8 %v2411
          %v2413 = vlaneseq
          %v2414 = vshrl.u32 %v2413, 7
          %v2415 = vsub.s32 %v2412, %v2414
          %v2416 = vrot.slane %v2256, %v2415
          %2417 = vrot.lane.b32.xlu0 %v2416, 96
          %v2418 = vpop.permute.xlu0 %2417
          %v2419 = vsel %vm1930, %v2418, 0
          %2421 = vmatprep.subr.mxu0 0.0
          %2422 = vmatpush1.msra.mxu0 0.0
          %2423 = vmatprep.subr.mxu0 0.0
          %2424 = vmatpush1.msra.mxu0 0.0
          %2425 = vmatprep.subr.mxu0 0.0
          %2426 = vmatpush1.msra.mxu0 0.0
          %2427 = vmatprep.subr.mxu0 0.0
          %2428 = vmatpush1.msra.mxu0 0.0
          %2429 = vmatprep.subr.mxu0 0.0
          %2430 = vmatpush1.msra.mxu0 0.0
          %2431 = vmatprep.subr.mxu0 0.0
          %2432 = vmatpush1.msra.mxu0 0.0
          %2433 = vmatprep.subr.mxu0 0.0
          %2434 = vmatpush1.msra.mxu0 0.0
          %2435 = vmatprep.subr.mxu0 0.0
          %2436 = vmatpush1.msra.mxu0 0.0
          %2437 = vmatprep.subr.mxu0 0.0
          %2438 = vmatpush1.msra.mxu0 0.0
          %2439 = vmatprep.subr.mxu0 0.0
          %2440 = vmatpush1.msra.mxu0 0.0
          %2441 = vmatprep.subr.mxu0 0.0
          %2442 = vmatpush1.msra.mxu0 0.0
          %2443 = vmatprep.subr.mxu0 0.0
          %2444 = vmatpush1.msra.mxu0 0.0
          %2445 = vmatprep.subr.mxu0 0.0
          %2446 = vmatpush1.msra.mxu0 0.0
          %2447 = vmatprep.subr.mxu0 0.0
          %2448 = vmatpush1.msra.mxu0 0.0
          %2449 = vmatprep.subr.mxu0 0.0
          %2450 = vmatpush1.msra.mxu0 %v265
          %2451 = vmatprep.subr.mxu0 0.0
          %2452 = vmatpush1.msra.mxu0 %v264
          %2453 = vmatprep.subr.mxu0 0.0
          %2454 = vmatpush2.msra.mxu0 0.0
          %2455 = vmatprep.subr.mxu0 0.0
          %2456 = vmatpush2.msra.mxu0 0.0
          %2457 = vmatprep.subr.mxu0 0.0
          %2458 = vmatpush2.msra.mxu0 0.0
          %2459 = vmatprep.subr.mxu0 0.0
          %2460 = vmatpush2.msra.mxu0 0.0
          %2461 = vmatprep.subr.mxu0 0.0
          %2462 = vmatpush2.msra.mxu0 0.0
          %2463 = vmatprep.subr.mxu0 0.0
          %2464 = vmatpush2.msra.mxu0 0.0
          %2465 = vmatprep.subr.mxu0 0.0
          %2466 = vmatpush2.msra.mxu0 0.0
          %2467 = vmatprep.subr.mxu0 0.0
          %2468 = vmatpush2.msra.mxu0 0.0
          %2469 = vmatprep.subr.mxu0 0.0
          %2470 = vmatpush2.msra.mxu0 0.0
          %2471 = vmatprep.subr.mxu0 0.0
          %2472 = vmatpush2.msra.mxu0 0.0
          %2473 = vmatprep.subr.mxu0 0.0
          %2474 = vmatpush2.msra.mxu0 0.0
          %2475 = vmatprep.subr.mxu0 0.0
          %2476 = vmatpush2.msra.mxu0 0.0
          %2477 = vmatprep.subr.mxu0 0.0
          %2478 = vmatpush2.msra.mxu0 0.0
          %2479 = vmatprep.subr.mxu0 0.0
          %2480 = vmatpush2.msra.mxu0 0.0
          %2481 = vmatprep.subr.mxu0 0.0
          %2482 = vmatpush2.msra.mxu0 0.0
          %2483 = vmatprep.subr.mxu0 0.0
          %2484 = vmatpush2.msra.mxu0 0.0
          %2485 = vmatprep.mubr.f32.mxu0 0.0
          %2486 = vmatmul.mubr.f32.gmra.mxu0 %v2419
          %v2487 = vpop.f32.mrf.mxu0
          %v2488 = vadd.f32 0.0, %v2487
          %v2489 = vpop.f32.mrf.mxu0
          %2490 = vdwg.mxu0
          %v2493 = vunpack.c.l.s4 1983009808
          %v2494 = vunpack.c.0.s8 %v2493
          %v2495 = vlaneseq
          %v2496 = vshrl.u32 %v2495, 7
          %v2497 = vsub.s32 %v2494, %v2496
          %v2498 = vrot.slane %v2257, %v2497
          %2499 = vrot.lane.b32.xlu0 %v2498, 96
          %v2500 = vpop.permute.xlu0 %2499
          %v2501 = vsel %vm1930, %v2500, 0
          %2503 = vmatprep.subr.mxu0 0.0
          %2504 = vmatpush1.msra.mxu0 0.0
          %2505 = vmatprep.subr.mxu0 0.0
          %2506 = vmatpush1.msra.mxu0 0.0
          %2507 = vmatprep.subr.mxu0 0.0
          %2508 = vmatpush1.msra.mxu0 0.0
          %2509 = vmatprep.subr.mxu0 0.0
          %2510 = vmatpush1.msra.mxu0 0.0
          %2511 = vmatprep.subr.mxu0 0.0
          %2512 = vmatpush1.msra.mxu0 0.0
          %2513 = vmatprep.subr.mxu0 0.0
          %2514 = vmatpush1.msra.mxu0 0.0
          %2515 = vmatprep.subr.mxu0 0.0
          %2516 = vmatpush1.msra.mxu0 0.0
          %2517 = vmatprep.subr.mxu0 0.0
          %2518 = vmatpush1.msra.mxu0 0.0
          %2519 = vmatprep.subr.mxu0 0.0
          %2520 = vmatpush1.msra.mxu0 0.0
          %2521 = vmatprep.subr.mxu0 0.0
          %2522 = vmatpush1.msra.mxu0 0.0
          %2523 = vmatprep.subr.mxu0 0.0
          %2524 = vmatpush1.msra.mxu0 0.0
          %2525 = vmatprep.subr.mxu0 0.0
          %2526 = vmatpush1.msra.mxu0 0.0
          %2527 = vmatprep.subr.mxu0 0.0
          %2528 = vmatpush1.msra.mxu0 0.0
          %2529 = vmatprep.subr.mxu0 0.0
          %2530 = vmatpush1.msra.mxu0 0.0
          %2531 = vmatprep.subr.mxu0 0.0
          %2532 = vmatpush1.msra.mxu0 %v267
          %2533 = vmatprep.subr.mxu0 0.0
          %2534 = vmatpush1.msra.mxu0 %v266
          %2535 = vmatprep.subr.mxu0 0.0
          %2536 = vmatpush2.msra.mxu0 0.0
          %2537 = vmatprep.subr.mxu0 0.0
          %2538 = vmatpush2.msra.mxu0 0.0
          %2539 = vmatprep.subr.mxu0 0.0
          %2540 = vmatpush2.msra.mxu0 0.0
          %2541 = vmatprep.subr.mxu0 0.0
          %2542 = vmatpush2.msra.mxu0 0.0
          %2543 = vmatprep.subr.mxu0 0.0
          %2544 = vmatpush2.msra.mxu0 0.0
          %2545 = vmatprep.subr.mxu0 0.0
          %2546 = vmatpush2.msra.mxu0 0.0
          %2547 = vmatprep.subr.mxu0 0.0
          %2548 = vmatpush2.msra.mxu0 0.0
          %2549 = vmatprep.subr.mxu0 0.0
          %2550 = vmatpush2.msra.mxu0 0.0
          %2551 = vmatprep.subr.mxu0 0.0
          %2552 = vmatpush2.msra.mxu0 0.0
          %2553 = vmatprep.subr.mxu0 0.0
          %2554 = vmatpush2.msra.mxu0 0.0
          %2555 = vmatprep.subr.mxu0 0.0
          %2556 = vmatpush2.msra.mxu0 0.0
          %2557 = vmatprep.subr.mxu0 0.0
          %2558 = vmatpush2.msra.mxu0 0.0
          %2559 = vmatprep.subr.mxu0 0.0
          %2560 = vmatpush2.msra.mxu0 0.0
          %2561 = vmatprep.subr.mxu0 0.0
          %2562 = vmatpush2.msra.mxu0 0.0
          %2563 = vmatprep.subr.mxu0 0.0
          %2564 = vmatpush2.msra.mxu0 0.0
          %2565 = vmatprep.subr.mxu0 0.0
          %2566 = vmatpush2.msra.mxu0 0.0
          %2567 = vmatprep.mubr.f32.mxu0 0.0
          %2568 = vmatmul.mubr.f32.gmra.mxu0 %v2501
          %v2569 = vpop.f32.mrf.mxu0
          %v2570 = vadd.f32 0.0, %v2569
          %v2571 = vpop.f32.mrf.mxu0
          %2572 = vdwg.mxu0
          %v2573 = vadd.f32 %v2324, %v2406
          %v2574 = vadd.f32 %v2325, %v2488
          %v2575 = vadd.f32 %v2326, %v2570
          %v2576 = vxor.u32 %v2573, 2147483648
          %v2577 = vxor.u32 %v2574, 2147483648
          %v2578 = vxor.u32 %v2575, 2147483648
          %v2579 = vmul.f32 %v2576, 1.442695
          %v2580 = vpow.pop %v2579
          %v2581 = vmul.f32 %v2577, 1.442695
          %v2582 = vpow.pop %v2581
          %v2583 = vmul.f32 %v2578, 1.442695
          %v2584 = vpow.pop %v2583
          %v2585 = vadd.f32 %v2580, 1.0
          %v2586 = vadd.f32 %v2582, 1.0
          %v2587 = vadd.f32 %v2584, 1.0
          %v2588 = vrcp.pop %v2585
          %v2589 = vmul.f32 1.0, %v2588
          %v2590 = vrcp.pop %v2586
          %v2591 = vmul.f32 1.0, %v2590
          %v2592 = vrcp.pop %v2587
          %v2593 = vmul.f32 1.0, %v2592
          %v2594 = vtanh.pop %v2573
          %v2595 = vtanh.pop %v2574
          %v2596 = vtanh.pop %v2575
          %v2597 = vmul.f32 %v2589, %v2237
          %v2598 = vmul.f32 %v2591, %v2238
          %v2599 = vmul.f32 %v2593, %v2239
          %2603 = vrot.lane.b32.xlu0 %v2594, 80
          %v2604 = vpop.permute.xlu0 %2603
          %2605 = vrot.lane.b32.xlu0 %v2595, 80
          %v2606 = vpop.permute.xlu0 %2605
          %2607 = vrot.lane.b32.xlu0 %v2596, 80
          %v2608 = vpop.permute.xlu0 %2607
          %v2612 = vmul.f32 %v2589, %v2604
          %v2613 = vmul.f32 %v2591, %v2606
          %v2614 = vmul.f32 %v2593, %v2608
          %2618 = vrot.lane.b32.xlu0 %v2612, 16
          %v2619 = vpop.permute.xlu0 %2618
          %2620 = vrot.lane.b32.xlu0 %v2613, 16
          %v2621 = vpop.permute.xlu0 %2620
          %2622 = vrot.lane.b32.xlu0 %v2614, 16
          %v2623 = vpop.permute.xlu0 %2622
          %v2627 = vadd.f32 %v2597, %v2619
          %v2628 = vadd.f32 %v2598, %v2621
          %v2629 = vadd.f32 %v2599, %v2623
          %v2630 = vtanh.pop %v2627
          %v2631 = vtanh.pop %v2628
          %v2632 = vtanh.pop %v2629
          %2636 = vrot.lane.b32.xlu0 %v2630, 16
          %v2637 = vpop.permute.xlu0 %2636
          %2638 = vrot.lane.b32.xlu0 %v2631, 16
          %v2639 = vpop.permute.xlu0 %2638
          %2640 = vrot.lane.b32.xlu0 %v2632, 16
          %v2641 = vpop.permute.xlu0 %2640
          %v2645 = vmul.f32 %v2589, %v2637
          %v2646 = vmul.f32 %v2591, %v2639
          %v2647 = vmul.f32 %v2593, %v2641
          %v2648 = vpack.c.bf16 %v2645, %v2645
          %v2649 = vpack.c.bf16 %v2646, %v2646
          %v2650 = vpack.c.bf16 %v2647, %v2647
          %v2655 = vunpack.c.l.s4 1966171168
          %v2656 = vunpack.c.0.s8 %v2655
          %v2657 = vlaneseq
          %v2658 = vshrl.u32 %v2657, 7
          %v2659 = vsub.s32 %v2656, %v2658
          %v2660 = vrot.slane %v2648, %v2659
          %v2662 = vunpack.c.l.s4 1966171168
          %v2663 = vunpack.c.0.s8 %v2662
          %v2664 = vlaneseq
          %v2665 = vshrl.u32 %v2664, 7
          %v2666 = vsub.s32 %v2663, %v2665
          %v2667 = vrot.slane %v2660, %v2666
          %v2669 = vunpack.c.l.s4 1966171168
          %v2670 = vunpack.c.0.s8 %v2669
          %v2671 = vlaneseq
          %v2672 = vshrl.u32 %v2671, 7
          %v2673 = vsub.s32 %v2670, %v2672
          %v2674 = vrot.slane %v2649, %v2673
          %v2676 = vunpack.c.l.s4 1966171168
          %v2677 = vunpack.c.0.s8 %v2676
          %v2678 = vlaneseq
          %v2679 = vshrl.u32 %v2678, 7
          %v2680 = vsub.s32 %v2677, %v2679
          %v2681 = vrot.slane %v2674, %v2680
          %v2683 = vunpack.c.l.s4 1966171168
          %v2684 = vunpack.c.0.s8 %v2683
          %v2685 = vlaneseq
          %v2686 = vshrl.u32 %v2685, 7
          %v2687 = vsub.s32 %v2684, %v2686
          %v2688 = vrot.slane %v2650, %v2687
          %v2690 = vunpack.c.l.s4 1966171168
          %v2691 = vunpack.c.0.s8 %v2690
          %v2692 = vlaneseq
          %v2693 = vshrl.u32 %v2692, 7
          %v2694 = vsub.s32 %v2691, %v2693
          %v2695 = vrot.slane %v2688, %v2694
          %2696 = vrot.lane.b32.xlu0 %v2667, 96
          %v2697 = vpop.permute.xlu0 %2696
          %2698 = vrot.lane.b32.xlu0 %v2681, 96
          %v2699 = vpop.permute.xlu0 %2698
          %2700 = vrot.lane.b32.xlu0 %v2695, 96
          %v2701 = vpop.permute.xlu0 %2700
          %s2705 = scalar_lea.vmem %s240, 6 [#allocation9]
          %2706 = vst.msk [vmem:[%s2705] sm:$0x1] %vm2316, %v2697
          %2707 = vst.msk [vmem:[%s2705 + $0x1] sm:$0x1] %vm2316, %v2699
          %2708 = vst.msk [vmem:[%s2705 + $0x2] sm:$0x1] %vm2316, %v2701
          %s2709 = scalar_lea.vmem %s206, 3 [#allocation4]
          %v2710 = vld [vmem:[%s2709] sm:$0x1]
          %v2711 = vld [vmem:[%s2709 + $0x1] sm:$0x1]
          %v2712 = vld [vmem:[%s2709 + $0x2] sm:$0x1]
          %v2713 = vunpack.c.l.bf16 %v2710
          %v2714 = vunpack.c.l.bf16 %v2711
          %v2715 = vunpack.c.l.bf16 %v2712
          %v2718 = vunpack.c.l.s4 1983009808
          %v2719 = vunpack.c.0.s8 %v2718
          %v2720 = vlaneseq
          %v2721 = vshrl.u32 %v2720, 7
          %v2722 = vsub.s32 %v2719, %v2721
          %v2723 = vrot.slane %v2645, %v2722
          %2724 = vrot.lane.b32.xlu0 %v2723, 96
          %v2725 = vpop.permute.xlu0 %2724
          %v2726 = vsel %vm1930, %v2725, 0
          %2728 = vmatprep.subr.mxu0 0.0
          %2729 = vmatpush1.msra.mxu0 0.0
          %2730 = vmatprep.subr.mxu0 0.0
          %2731 = vmatpush1.msra.mxu0 0.0
          %2732 = vmatprep.subr.mxu0 0.0
          %2733 = vmatpush1.msra.mxu0 0.0
          %2734 = vmatprep.subr.mxu0 0.0
          %2735 = vmatpush1.msra.mxu0 0.0
          %2736 = vmatprep.subr.mxu0 0.0
          %2737 = vmatpush1.msra.mxu0 0.0
          %2738 = vmatprep.subr.mxu0 0.0
          %2739 = vmatpush1.msra.mxu0 0.0
          %2740 = vmatprep.subr.mxu0 0.0
          %2741 = vmatpush1.msra.mxu0 0.0
          %2742 = vmatprep.subr.mxu0 0.0
          %2743 = vmatpush1.msra.mxu0 0.0
          %2744 = vmatprep.subr.mxu0 0.0
          %2745 = vmatpush1.msra.mxu0 0.0
          %2746 = vmatprep.subr.mxu0 0.0
          %2747 = vmatpush1.msra.mxu0 0.0
          %2748 = vmatprep.subr.mxu0 0.0
          %2749 = vmatpush1.msra.mxu0 0.0
          %2750 = vmatprep.subr.mxu0 0.0
          %2751 = vmatpush1.msra.mxu0 0.0
          %2752 = vmatprep.subr.mxu0 0.0
          %2753 = vmatpush1.msra.mxu0 0.0
          %2754 = vmatprep.subr.mxu0 0.0
          %2755 = vmatpush1.msra.mxu0 0.0
          %2756 = vmatprep.subr.mxu0 0.0
          %2757 = vmatpush1.msra.mxu0 %v263
          %2758 = vmatprep.subr.mxu0 0.0
          %2759 = vmatpush1.msra.mxu0 %v262
          %2760 = vmatprep.subr.mxu0 0.0
          %2761 = vmatpush2.msra.mxu0 0.0
          %2762 = vmatprep.subr.mxu0 0.0
          %2763 = vmatpush2.msra.mxu0 0.0
          %2764 = vmatprep.subr.mxu0 0.0
          %2765 = vmatpush2.msra.mxu0 0.0
          %2766 = vmatprep.subr.mxu0 0.0
          %2767 = vmatpush2.msra.mxu0 0.0
          %2768 = vmatprep.subr.mxu0 0.0
          %2769 = vmatpush2.msra.mxu0 0.0
          %2770 = vmatprep.subr.mxu0 0.0
          %2771 = vmatpush2.msra.mxu0 0.0
          %2772 = vmatprep.subr.mxu0 0.0
          %2773 = vmatpush2.msra.mxu0 0.0
          %2774 = vmatprep.subr.mxu0 0.0
          %2775 = vmatpush2.msra.mxu0 0.0
          %2776 = vmatprep.subr.mxu0 0.0
          %2777 = vmatpush2.msra.mxu0 0.0
          %2778 = vmatprep.subr.mxu0 0.0
          %2779 = vmatpush2.msra.mxu0 0.0
          %2780 = vmatprep.subr.mxu0 0.0
          %2781 = vmatpush2.msra.mxu0 0.0
          %2782 = vmatprep.subr.mxu0 0.0
          %2783 = vmatpush2.msra.mxu0 0.0
          %2784 = vmatprep.subr.mxu0 0.0
          %2785 = vmatpush2.msra.mxu0 0.0
          %2786 = vmatprep.subr.mxu0 0.0
          %2787 = vmatpush2.msra.mxu0 0.0
          %2788 = vmatprep.subr.mxu0 0.0
          %2789 = vmatpush2.msra.mxu0 0.0
          %2790 = vmatprep.subr.mxu0 0.0
          %2791 = vmatpush2.msra.mxu0 0.0
          %2792 = vmatprep.mubr.f32.mxu0 0.0
          %2793 = vmatmul.mubr.f32.gmra.mxu0 %v2726
          %v2794 = vpop.f32.mrf.mxu0
          %v2795 = vadd.f32 0.0, %v2794
          %v2796 = vpop.f32.mrf.mxu0
          %2797 = vdwg.mxu0
          %v2800 = vunpack.c.l.s4 1983009808
          %v2801 = vunpack.c.0.s8 %v2800
          %v2802 = vlaneseq
          %v2803 = vshrl.u32 %v2802, 7
          %v2804 = vsub.s32 %v2801, %v2803
          %v2805 = vrot.slane %v2646, %v2804
          %2806 = vrot.lane.b32.xlu0 %v2805, 96
          %v2807 = vpop.permute.xlu0 %2806
          %v2808 = vsel %vm1930, %v2807, 0
          %2810 = vmatprep.subr.mxu0 0.0
          %2811 = vmatpush1.msra.mxu0 0.0
          %2812 = vmatprep.subr.mxu0 0.0
          %2813 = vmatpush1.msra.mxu0 0.0
          %2814 = vmatprep.subr.mxu0 0.0
          %2815 = vmatpush1.msra.mxu0 0.0
          %2816 = vmatprep.subr.mxu0 0.0
          %2817 = vmatpush1.msra.mxu0 0.0
          %2818 = vmatprep.subr.mxu0 0.0
          %2819 = vmatpush1.msra.mxu0 0.0
          %2820 = vmatprep.subr.mxu0 0.0
          %2821 = vmatpush1.msra.mxu0 0.0
          %2822 = vmatprep.subr.mxu0 0.0
          %2823 = vmatpush1.msra.mxu0 0.0
          %2824 = vmatprep.subr.mxu0 0.0
          %2825 = vmatpush1.msra.mxu0 0.0
          %2826 = vmatprep.subr.mxu0 0.0
          %2827 = vmatpush1.msra.mxu0 0.0
          %2828 = vmatprep.subr.mxu0 0.0
          %2829 = vmatpush1.msra.mxu0 0.0
          %2830 = vmatprep.subr.mxu0 0.0
          %2831 = vmatpush1.msra.mxu0 0.0
          %2832 = vmatprep.subr.mxu0 0.0
          %2833 = vmatpush1.msra.mxu0 0.0
          %2834 = vmatprep.subr.mxu0 0.0
          %2835 = vmatpush1.msra.mxu0 0.0
          %2836 = vmatprep.subr.mxu0 0.0
          %2837 = vmatpush1.msra.mxu0 0.0
          %2838 = vmatprep.subr.mxu0 0.0
          %2839 = vmatpush1.msra.mxu0 %v265
          %2840 = vmatprep.subr.mxu0 0.0
          %2841 = vmatpush1.msra.mxu0 %v264
          %2842 = vmatprep.subr.mxu0 0.0
          %2843 = vmatpush2.msra.mxu0 0.0
          %2844 = vmatprep.subr.mxu0 0.0
          %2845 = vmatpush2.msra.mxu0 0.0
          %2846 = vmatprep.subr.mxu0 0.0
          %2847 = vmatpush2.msra.mxu0 0.0
          %2848 = vmatprep.subr.mxu0 0.0
          %2849 = vmatpush2.msra.mxu0 0.0
          %2850 = vmatprep.subr.mxu0 0.0
          %2851 = vmatpush2.msra.mxu0 0.0
          %2852 = vmatprep.subr.mxu0 0.0
          %2853 = vmatpush2.msra.mxu0 0.0
          %2854 = vmatprep.subr.mxu0 0.0
          %2855 = vmatpush2.msra.mxu0 0.0
          %2856 = vmatprep.subr.mxu0 0.0
          %2857 = vmatpush2.msra.mxu0 0.0
          %2858 = vmatprep.subr.mxu0 0.0
          %2859 = vmatpush2.msra.mxu0 0.0
          %2860 = vmatprep.subr.mxu0 0.0
          %2861 = vmatpush2.msra.mxu0 0.0
          %2862 = vmatprep.subr.mxu0 0.0
          %2863 = vmatpush2.msra.mxu0 0.0
          %2864 = vmatprep.subr.mxu0 0.0
          %2865 = vmatpush2.msra.mxu0 0.0
          %2866 = vmatprep.subr.mxu0 0.0
          %2867 = vmatpush2.msra.mxu0 0.0
          %2868 = vmatprep.subr.mxu0 0.0
          %2869 = vmatpush2.msra.mxu0 0.0
          %2870 = vmatprep.subr.mxu0 0.0
          %2871 = vmatpush2.msra.mxu0 0.0
          %2872 = vmatprep.subr.mxu0 0.0
          %2873 = vmatpush2.msra.mxu0 0.0
          %2874 = vmatprep.mubr.f32.mxu0 0.0
          %2875 = vmatmul.mubr.f32.gmra.mxu0 %v2808
          %v2876 = vpop.f32.mrf.mxu0
          %v2877 = vadd.f32 0.0, %v2876
          %v2878 = vpop.f32.mrf.mxu0
          %2879 = vdwg.mxu0
          %v2882 = vunpack.c.l.s4 1983009808
          %v2883 = vunpack.c.0.s8 %v2882
          %v2884 = vlaneseq
          %v2885 = vshrl.u32 %v2884, 7
          %v2886 = vsub.s32 %v2883, %v2885
          %v2887 = vrot.slane %v2647, %v2886
          %2888 = vrot.lane.b32.xlu0 %v2887, 96
          %v2889 = vpop.permute.xlu0 %2888
          %v2890 = vsel %vm1930, %v2889, 0
          %2892 = vmatprep.subr.mxu0 0.0
          %2893 = vmatpush1.msra.mxu0 0.0
          %2894 = vmatprep.subr.mxu0 0.0
          %2895 = vmatpush1.msra.mxu0 0.0
          %2896 = vmatprep.subr.mxu0 0.0
          %2897 = vmatpush1.msra.mxu0 0.0
          %2898 = vmatprep.subr.mxu0 0.0
          %2899 = vmatpush1.msra.mxu0 0.0
          %2900 = vmatprep.subr.mxu0 0.0
          %2901 = vmatpush1.msra.mxu0 0.0
          %2902 = vmatprep.subr.mxu0 0.0
          %2903 = vmatpush1.msra.mxu0 0.0
          %2904 = vmatprep.subr.mxu0 0.0
          %2905 = vmatpush1.msra.mxu0 0.0
          %2906 = vmatprep.subr.mxu0 0.0
          %2907 = vmatpush1.msra.mxu0 0.0
          %2908 = vmatprep.subr.mxu0 0.0
          %2909 = vmatpush1.msra.mxu0 0.0
          %2910 = vmatprep.subr.mxu0 0.0
          %2911 = vmatpush1.msra.mxu0 0.0
          %2912 = vmatprep.subr.mxu0 0.0
          %2913 = vmatpush1.msra.mxu0 0.0
          %2914 = vmatprep.subr.mxu0 0.0
          %2915 = vmatpush1.msra.mxu0 0.0
          %2916 = vmatprep.subr.mxu0 0.0
          %2917 = vmatpush1.msra.mxu0 0.0
          %2918 = vmatprep.subr.mxu0 0.0
          %2919 = vmatpush1.msra.mxu0 0.0
          %2920 = vmatprep.subr.mxu0 0.0
          %2921 = vmatpush1.msra.mxu0 %v267
          %2922 = vmatprep.subr.mxu0 0.0
          %2923 = vmatpush1.msra.mxu0 %v266
          %2924 = vmatprep.subr.mxu0 0.0
          %2925 = vmatpush2.msra.mxu0 0.0
          %2926 = vmatprep.subr.mxu0 0.0
          %2927 = vmatpush2.msra.mxu0 0.0
          %2928 = vmatprep.subr.mxu0 0.0
          %2929 = vmatpush2.msra.mxu0 0.0
          %2930 = vmatprep.subr.mxu0 0.0
          %2931 = vmatpush2.msra.mxu0 0.0
          %2932 = vmatprep.subr.mxu0 0.0
          %2933 = vmatpush2.msra.mxu0 0.0
          %2934 = vmatprep.subr.mxu0 0.0
          %2935 = vmatpush2.msra.mxu0 0.0
          %2936 = vmatprep.subr.mxu0 0.0
          %2937 = vmatpush2.msra.mxu0 0.0
          %2938 = vmatprep.subr.mxu0 0.0
          %2939 = vmatpush2.msra.mxu0 0.0
          %2940 = vmatprep.subr.mxu0 0.0
          %2941 = vmatpush2.msra.mxu0 0.0
          %2942 = vmatprep.subr.mxu0 0.0
          %2943 = vmatpush2.msra.mxu0 0.0
          %2944 = vmatprep.subr.mxu0 0.0
          %2945 = vmatpush2.msra.mxu0 0.0
          %2946 = vmatprep.subr.mxu0 0.0
          %2947 = vmatpush2.msra.mxu0 0.0
          %2948 = vmatprep.subr.mxu0 0.0
          %2949 = vmatpush2.msra.mxu0 0.0
          %2950 = vmatprep.subr.mxu0 0.0
          %2951 = vmatpush2.msra.mxu0 0.0
          %2952 = vmatprep.subr.mxu0 0.0
          %2953 = vmatpush2.msra.mxu0 0.0
          %2954 = vmatprep.subr.mxu0 0.0
          %2955 = vmatpush2.msra.mxu0 0.0
          %2956 = vmatprep.mubr.f32.mxu0 0.0
          %2957 = vmatmul.mubr.f32.gmra.mxu0 %v2890
          %v2958 = vpop.f32.mrf.mxu0
          %v2959 = vadd.f32 0.0, %v2958
          %v2960 = vpop.f32.mrf.mxu0
          %2961 = vdwg.mxu0
          %v2962 = vadd.f32 %v2713, %v2795
          %v2963 = vadd.f32 %v2714, %v2877
          %v2964 = vadd.f32 %v2715, %v2959
          %v2965 = vxor.u32 %v2962, 2147483648
          %v2966 = vxor.u32 %v2963, 2147483648
          %v2967 = vxor.u32 %v2964, 2147483648
          %v2968 = vmul.f32 %v2965, 1.442695
          %v2969 = vpow.pop %v2968
          %v2970 = vmul.f32 %v2966, 1.442695
          %v2971 = vpow.pop %v2970
          %v2972 = vmul.f32 %v2967, 1.442695
          %v2973 = vpow.pop %v2972
          %v2974 = vadd.f32 %v2969, 1.0
          %v2975 = vadd.f32 %v2971, 1.0
          %v2976 = vadd.f32 %v2973, 1.0
          %v2977 = vrcp.pop %v2974
          %v2978 = vmul.f32 1.0, %v2977
          %v2979 = vrcp.pop %v2975
          %v2980 = vmul.f32 1.0, %v2979
          %v2981 = vrcp.pop %v2976
          %v2982 = vmul.f32 1.0, %v2981
          %v2983 = vtanh.pop %v2962
          %v2984 = vtanh.pop %v2963
          %v2985 = vtanh.pop %v2964
          %v2986 = vmul.f32 %v2978, %v2627
          %v2987 = vmul.f32 %v2980, %v2628
          %v2988 = vmul.f32 %v2982, %v2629
          %2992 = vrot.lane.b32.xlu0 %v2983, 80
          %v2993 = vpop.permute.xlu0 %2992
          %2994 = vrot.lane.b32.xlu0 %v2984, 80
          %v2995 = vpop.permute.xlu0 %2994
          %2996 = vrot.lane.b32.xlu0 %v2985, 80
          %v2997 = vpop.permute.xlu0 %2996
          %v3001 = vmul.f32 %v2978, %v2993
          %v3002 = vmul.f32 %v2980, %v2995
          %v3003 = vmul.f32 %v2982, %v2997
          %3007 = vrot.lane.b32.xlu0 %v3001, 16
          %v3008 = vpop.permute.xlu0 %3007
          %3009 = vrot.lane.b32.xlu0 %v3002, 16
          %v3010 = vpop.permute.xlu0 %3009
          %3011 = vrot.lane.b32.xlu0 %v3003, 16
          %v3012 = vpop.permute.xlu0 %3011
          %v3016 = vadd.f32 %v2986, %v3008
          %v3017 = vadd.f32 %v2987, %v3010
          %v3018 = vadd.f32 %v2988, %v3012
          %v3019 = vtanh.pop %v3016
          %v3020 = vtanh.pop %v3017
          %v3021 = vtanh.pop %v3018
          %3025 = vrot.lane.b32.xlu0 %v3019, 16
          %v3026 = vpop.permute.xlu0 %3025
          %3027 = vrot.lane.b32.xlu0 %v3020, 16
          %v3028 = vpop.permute.xlu0 %3027
          %3029 = vrot.lane.b32.xlu0 %v3021, 16
          %v3030 = vpop.permute.xlu0 %3029
          %v3034 = vmul.f32 %v2978, %v3026
          %v3035 = vmul.f32 %v2980, %v3028
          %v3036 = vmul.f32 %v2982, %v3030
          %v3037 = vpack.c.bf16 %v3034, %v3034
          %v3038 = vpack.c.bf16 %v3035, %v3035
          %v3039 = vpack.c.bf16 %v3036, %v3036
          %v3044 = vunpack.c.l.s4 1966171168
          %v3045 = vunpack.c.0.s8 %v3044
          %v3046 = vlaneseq
          %v3047 = vshrl.u32 %v3046, 7
          %v3048 = vsub.s32 %v3045, %v3047
          %v3049 = vrot.slane %v3037, %v3048
          %v3051 = vunpack.c.l.s4 1966171168
          %v3052 = vunpack.c.0.s8 %v3051
          %v3053 = vlaneseq
          %v3054 = vshrl.u32 %v3053, 7
          %v3055 = vsub.s32 %v3052, %v3054
          %v3056 = vrot.slane %v3049, %v3055
          %v3058 = vunpack.c.l.s4 1966171168
          %v3059 = vunpack.c.0.s8 %v3058
          %v3060 = vlaneseq
          %v3061 = vshrl.u32 %v3060, 7
          %v3062 = vsub.s32 %v3059, %v3061
          %v3063 = vrot.slane %v3038, %v3062
          %v3065 = vunpack.c.l.s4 1966171168
          %v3066 = vunpack.c.0.s8 %v3065
          %v3067 = vlaneseq
          %v3068 = vshrl.u32 %v3067, 7
          %v3069 = vsub.s32 %v3066, %v3068
          %v3070 = vrot.slane %v3063, %v3069
          %v3072 = vunpack.c.l.s4 1966171168
          %v3073 = vunpack.c.0.s8 %v3072
          %v3074 = vlaneseq
          %v3075 = vshrl.u32 %v3074, 7
          %v3076 = vsub.s32 %v3073, %v3075
          %v3077 = vrot.slane %v3039, %v3076
          %v3079 = vunpack.c.l.s4 1966171168
          %v3080 = vunpack.c.0.s8 %v3079
          %v3081 = vlaneseq
          %v3082 = vshrl.u32 %v3081, 7
          %v3083 = vsub.s32 %v3080, %v3082
          %v3084 = vrot.slane %v3077, %v3083
          %3085 = vrot.lane.b32.xlu0 %v3056, 96
          %v3086 = vpop.permute.xlu0 %3085
          %3087 = vrot.lane.b32.xlu0 %v3070, 96
          %v3088 = vpop.permute.xlu0 %3087
          %3089 = vrot.lane.b32.xlu0 %v3084, 96
          %v3090 = vpop.permute.xlu0 %3089
          %s3094 = scalar_lea.vmem %s240, 3 [#allocation9]
          %3095 = vst.msk [vmem:[%s3094] sm:$0x1] %vm2316, %v3086
          %3096 = vst.msk [vmem:[%s3094 + $0x1] sm:$0x1] %vm2316, %v3088
          %3097 = vst.msk [vmem:[%s3094 + $0x2] sm:$0x1] %vm2316, %v3090
          %v3098 = vld [vmem:[%s206] sm:$0x1]
          %v3099 = vld [vmem:[%s206 + $0x1] sm:$0x1]
          %v3100 = vld [vmem:[%s206 + $0x2] sm:$0x1]
          %v3101 = vunpack.c.l.bf16 %v3098
          %v3102 = vunpack.c.l.bf16 %v3099
          %v3103 = vunpack.c.l.bf16 %v3100
          %v3106 = vunpack.c.l.s4 1983009808
          %v3107 = vunpack.c.0.s8 %v3106
          %v3108 = vlaneseq
          %v3109 = vshrl.u32 %v3108, 7
          %v3110 = vsub.s32 %v3107, %v3109
          %v3111 = vrot.slane %v3034, %v3110
          %3112 = vrot.lane.b32.xlu0 %v3111, 96
          %v3113 = vpop.permute.xlu0 %3112
          %v3114 = vsel %vm1930, %v3113, 0
          %3116 = vmatprep.subr.mxu0 0.0
          %3117 = vmatpush1.msra.mxu0 0.0
          %3118 = vmatprep.subr.mxu0 0.0
          %3119 = vmatpush1.msra.mxu0 0.0
          %3120 = vmatprep.subr.mxu0 0.0
          %3121 = vmatpush1.msra.mxu0 0.0
          %3122 = vmatprep.subr.mxu0 0.0
          %3123 = vmatpush1.msra.mxu0 0.0
          %3124 = vmatprep.subr.mxu0 0.0
          %3125 = vmatpush1.msra.mxu0 0.0
          %3126 = vmatprep.subr.mxu0 0.0
          %3127 = vmatpush1.msra.mxu0 0.0
          %3128 = vmatprep.subr.mxu0 0.0
          %3129 = vmatpush1.msra.mxu0 0.0
          %3130 = vmatprep.subr.mxu0 0.0
          %3131 = vmatpush1.msra.mxu0 0.0
          %3132 = vmatprep.subr.mxu0 0.0
          %3133 = vmatpush1.msra.mxu0 0.0
          %3134 = vmatprep.subr.mxu0 0.0
          %3135 = vmatpush1.msra.mxu0 0.0
          %3136 = vmatprep.subr.mxu0 0.0
          %3137 = vmatpush1.msra.mxu0 0.0
          %3138 = vmatprep.subr.mxu0 0.0
          %3139 = vmatpush1.msra.mxu0 0.0
          %3140 = vmatprep.subr.mxu0 0.0
          %3141 = vmatpush1.msra.mxu0 0.0
          %3142 = vmatprep.subr.mxu0 0.0
          %3143 = vmatpush1.msra.mxu0 0.0
          %3144 = vmatprep.subr.mxu0 0.0
          %3145 = vmatpush1.msra.mxu0 %v263
          %3146 = vmatprep.subr.mxu0 0.0
          %3147 = vmatpush1.msra.mxu0 %v262
          %3148 = vmatprep.subr.mxu0 0.0
          %3149 = vmatpush2.msra.mxu0 0.0
          %3150 = vmatprep.subr.mxu0 0.0
          %3151 = vmatpush2.msra.mxu0 0.0
          %3152 = vmatprep.subr.mxu0 0.0
          %3153 = vmatpush2.msra.mxu0 0.0
          %3154 = vmatprep.subr.mxu0 0.0
          %3155 = vmatpush2.msra.mxu0 0.0
          %3156 = vmatprep.subr.mxu0 0.0
          %3157 = vmatpush2.msra.mxu0 0.0
          %3158 = vmatprep.subr.mxu0 0.0
          %3159 = vmatpush2.msra.mxu0 0.0
          %3160 = vmatprep.subr.mxu0 0.0
          %3161 = vmatpush2.msra.mxu0 0.0
          %3162 = vmatprep.subr.mxu0 0.0
          %3163 = vmatpush2.msra.mxu0 0.0
          %3164 = vmatprep.subr.mxu0 0.0
          %3165 = vmatpush2.msra.mxu0 0.0
          %3166 = vmatprep.subr.mxu0 0.0
          %3167 = vmatpush2.msra.mxu0 0.0
          %3168 = vmatprep.subr.mxu0 0.0
          %3169 = vmatpush2.msra.mxu0 0.0
          %3170 = vmatprep.subr.mxu0 0.0
          %3171 = vmatpush2.msra.mxu0 0.0
          %3172 = vmatprep.subr.mxu0 0.0
          %3173 = vmatpush2.msra.mxu0 0.0
          %3174 = vmatprep.subr.mxu0 0.0
          %3175 = vmatpush2.msra.mxu0 0.0
          %3176 = vmatprep.subr.mxu0 0.0
          %3177 = vmatpush2.msra.mxu0 0.0
          %3178 = vmatprep.subr.mxu0 0.0
          %3179 = vmatpush2.msra.mxu0 0.0
          %3180 = vmatprep.mubr.f32.mxu0 0.0
          %3181 = vmatmul.mubr.f32.gmra.mxu0 %v3114
          %v3182 = vpop.f32.mrf.mxu0
          %v3183 = vadd.f32 0.0, %v3182
          %v3184 = vpop.f32.mrf.mxu0
          %3185 = vdwg.mxu0
          %v3188 = vunpack.c.l.s4 1983009808
          %v3189 = vunpack.c.0.s8 %v3188
          %v3190 = vlaneseq
          %v3191 = vshrl.u32 %v3190, 7
          %v3192 = vsub.s32 %v3189, %v3191
          %v3193 = vrot.slane %v3035, %v3192
          %3194 = vrot.lane.b32.xlu0 %v3193, 96
          %v3195 = vpop.permute.xlu0 %3194
          %v3196 = vsel %vm1930, %v3195, 0
          %3198 = vmatprep.subr.mxu0 0.0
          %3199 = vmatpush1.msra.mxu0 0.0
          %3200 = vmatprep.subr.mxu0 0.0
          %3201 = vmatpush1.msra.mxu0 0.0
          %3202 = vmatprep.subr.mxu0 0.0
          %3203 = vmatpush1.msra.mxu0 0.0
          %3204 = vmatprep.subr.mxu0 0.0
          %3205 = vmatpush1.msra.mxu0 0.0
          %3206 = vmatprep.subr.mxu0 0.0
          %3207 = vmatpush1.msra.mxu0 0.0
          %3208 = vmatprep.subr.mxu0 0.0
          %3209 = vmatpush1.msra.mxu0 0.0
          %3210 = vmatprep.subr.mxu0 0.0
          %3211 = vmatpush1.msra.mxu0 0.0
          %3212 = vmatprep.subr.mxu0 0.0
          %3213 = vmatpush1.msra.mxu0 0.0
          %3214 = vmatprep.subr.mxu0 0.0
          %3215 = vmatpush1.msra.mxu0 0.0
          %3216 = vmatprep.subr.mxu0 0.0
          %3217 = vmatpush1.msra.mxu0 0.0
          %3218 = vmatprep.subr.mxu0 0.0
          %3219 = vmatpush1.msra.mxu0 0.0
          %3220 = vmatprep.subr.mxu0 0.0
          %3221 = vmatpush1.msra.mxu0 0.0
          %3222 = vmatprep.subr.mxu0 0.0
          %3223 = vmatpush1.msra.mxu0 0.0
          %3224 = vmatprep.subr.mxu0 0.0
          %3225 = vmatpush1.msra.mxu0 0.0
          %3226 = vmatprep.subr.mxu0 0.0
          %3227 = vmatpush1.msra.mxu0 %v265
          %3228 = vmatprep.subr.mxu0 0.0
          %3229 = vmatpush1.msra.mxu0 %v264
          %3230 = vmatprep.subr.mxu0 0.0
          %3231 = vmatpush2.msra.mxu0 0.0
          %3232 = vmatprep.subr.mxu0 0.0
          %3233 = vmatpush2.msra.mxu0 0.0
          %3234 = vmatprep.subr.mxu0 0.0
          %3235 = vmatpush2.msra.mxu0 0.0
          %3236 = vmatprep.subr.mxu0 0.0
          %3237 = vmatpush2.msra.mxu0 0.0
          %3238 = vmatprep.subr.mxu0 0.0
          %3239 = vmatpush2.msra.mxu0 0.0
          %3240 = vmatprep.subr.mxu0 0.0
          %3241 = vmatpush2.msra.mxu0 0.0
          %3242 = vmatprep.subr.mxu0 0.0
          %3243 = vmatpush2.msra.mxu0 0.0
          %3244 = vmatprep.subr.mxu0 0.0
          %3245 = vmatpush2.msra.mxu0 0.0
          %3246 = vmatprep.subr.mxu0 0.0
          %3247 = vmatpush2.msra.mxu0 0.0
          %3248 = vmatprep.subr.mxu0 0.0
          %3249 = vmatpush2.msra.mxu0 0.0
          %3250 = vmatprep.subr.mxu0 0.0
          %3251 = vmatpush2.msra.mxu0 0.0
          %3252 = vmatprep.subr.mxu0 0.0
          %3253 = vmatpush2.msra.mxu0 0.0
          %3254 = vmatprep.subr.mxu0 0.0
          %3255 = vmatpush2.msra.mxu0 0.0
          %3256 = vmatprep.subr.mxu0 0.0
          %3257 = vmatpush2.msra.mxu0 0.0
          %3258 = vmatprep.subr.mxu0 0.0
          %3259 = vmatpush2.msra.mxu0 0.0
          %3260 = vmatprep.subr.mxu0 0.0
          %3261 = vmatpush2.msra.mxu0 0.0
          %3262 = vmatprep.mubr.f32.mxu0 0.0
          %3263 = vmatmul.mubr.f32.gmra.mxu0 %v3196
          %v3264 = vpop.f32.mrf.mxu0
          %v3265 = vadd.f32 0.0, %v3264
          %v3266 = vpop.f32.mrf.mxu0
          %3267 = vdwg.mxu0
          %v3270 = vunpack.c.l.s4 1983009808
          %v3271 = vunpack.c.0.s8 %v3270
          %v3272 = vlaneseq
          %v3273 = vshrl.u32 %v3272, 7
          %v3274 = vsub.s32 %v3271, %v3273
          %v3275 = vrot.slane %v3036, %v3274
          %3276 = vrot.lane.b32.xlu0 %v3275, 96
          %v3277 = vpop.permute.xlu0 %3276
          %v3278 = vsel %vm1930, %v3277, 0
          %3280 = vmatprep.subr.mxu0 0.0
          %3281 = vmatpush1.msra.mxu0 0.0
          %3282 = vmatprep.subr.mxu0 0.0
          %3283 = vmatpush1.msra.mxu0 0.0
          %3284 = vmatprep.subr.mxu0 0.0
          %3285 = vmatpush1.msra.mxu0 0.0
          %3286 = vmatprep.subr.mxu0 0.0
          %3287 = vmatpush1.msra.mxu0 0.0
          %3288 = vmatprep.subr.mxu0 0.0
          %3289 = vmatpush1.msra.mxu0 0.0
          %3290 = vmatprep.subr.mxu0 0.0
          %3291 = vmatpush1.msra.mxu0 0.0
          %3292 = vmatprep.subr.mxu0 0.0
          %3293 = vmatpush1.msra.mxu0 0.0
          %3294 = vmatprep.subr.mxu0 0.0
          %3295 = vmatpush1.msra.mxu0 0.0
          %3296 = vmatprep.subr.mxu0 0.0
          %3297 = vmatpush1.msra.mxu0 0.0
          %3298 = vmatprep.subr.mxu0 0.0
          %3299 = vmatpush1.msra.mxu0 0.0
          %3300 = vmatprep.subr.mxu0 0.0
          %3301 = vmatpush1.msra.mxu0 0.0
          %3302 = vmatprep.subr.mxu0 0.0
          %3303 = vmatpush1.msra.mxu0 0.0
          %3304 = vmatprep.subr.mxu0 0.0
          %3305 = vmatpush1.msra.mxu0 0.0
          %3306 = vmatprep.subr.mxu0 0.0
          %3307 = vmatpush1.msra.mxu0 0.0
          %3308 = vmatprep.subr.mxu0 0.0
          %3309 = vmatpush1.msra.mxu0 %v267
          %3310 = vmatprep.subr.mxu0 0.0
          %3311 = vmatpush1.msra.mxu0 %v266
          %3312 = vmatprep.subr.mxu0 0.0
          %3313 = vmatpush2.msra.mxu0 0.0
          %3314 = vmatprep.subr.mxu0 0.0
          %3315 = vmatpush2.msra.mxu0 0.0
          %3316 = vmatprep.subr.mxu0 0.0
          %3317 = vmatpush2.msra.mxu0 0.0
          %3318 = vmatprep.subr.mxu0 0.0
          %3319 = vmatpush2.msra.mxu0 0.0
          %3320 = vmatprep.subr.mxu0 0.0
          %3321 = vmatpush2.msra.mxu0 0.0
          %3322 = vmatprep.subr.mxu0 0.0
          %3323 = vmatpush2.msra.mxu0 0.0
          %3324 = vmatprep.subr.mxu0 0.0
          %3325 = vmatpush2.msra.mxu0 0.0
          %3326 = vmatprep.subr.mxu0 0.0
          %3327 = vmatpush2.msra.mxu0 0.0
          %3328 = vmatprep.subr.mxu0 0.0
          %3329 = vmatpush2.msra.mxu0 0.0
          %3330 = vmatprep.subr.mxu0 0.0
          %3331 = vmatpush2.msra.mxu0 0.0
          %3332 = vmatprep.subr.mxu0 0.0
          %3333 = vmatpush2.msra.mxu0 0.0
          %3334 = vmatprep.subr.mxu0 0.0
          %3335 = vmatpush2.msra.mxu0 0.0
          %3336 = vmatprep.subr.mxu0 0.0
          %3337 = vmatpush2.msra.mxu0 0.0
          %3338 = vmatprep.subr.mxu0 0.0
          %3339 = vmatpush2.msra.mxu0 0.0
          %3340 = vmatprep.subr.mxu0 0.0
          %3341 = vmatpush2.msra.mxu0 0.0
          %3342 = vmatprep.subr.mxu0 0.0
          %3343 = vmatpush2.msra.mxu0 0.0
          %3344 = vmatprep.mubr.f32.mxu0 0.0
          %3345 = vmatmul.mubr.f32.gmra.mxu0 %v3278
          %v3346 = vpop.f32.mrf.mxu0
          %v3347 = vadd.f32 0.0, %v3346
          %v3348 = vpop.f32.mrf.mxu0
          %3349 = vdwg.mxu0
          %v3350 = vadd.f32 %v3101, %v3183
          %v3351 = vadd.f32 %v3102, %v3265
          %v3352 = vadd.f32 %v3103, %v3347
          %v3353 = vxor.u32 %v3350, 2147483648
          %v3354 = vxor.u32 %v3351, 2147483648
          %v3355 = vxor.u32 %v3352, 2147483648
          %v3356 = vmul.f32 %v3353, 1.442695
          %v3357 = vpow.pop %v3356
          %v3358 = vmul.f32 %v3354, 1.442695
          %v3359 = vpow.pop %v3358
          %v3360 = vmul.f32 %v3355, 1.442695
          %v3361 = vpow.pop %v3360
          %v3362 = vadd.f32 %v3357, 1.0
          %v3363 = vadd.f32 %v3359, 1.0
          %v3364 = vadd.f32 %v3361, 1.0
          %v3365 = vrcp.pop %v3362
          %v3366 = vmul.f32 1.0, %v3365
          %v3367 = vrcp.pop %v3363
          %v3368 = vmul.f32 1.0, %v3367
          %v3369 = vrcp.pop %v3364
          %v3370 = vmul.f32 1.0, %v3369
          %v3371 = vtanh.pop %v3350
          %v3372 = vtanh.pop %v3351
          %v3373 = vtanh.pop %v3352
          %v3374 = vmul.f32 %v3366, %v3016
          %v3375 = vmul.f32 %v3368, %v3017
          %v3376 = vmul.f32 %v3370, %v3018
          %3380 = vrot.lane.b32.xlu0 %v3371, 80
          %v3381 = vpop.permute.xlu0 %3380
          %3382 = vrot.lane.b32.xlu0 %v3372, 80
          %v3383 = vpop.permute.xlu0 %3382
          %3384 = vrot.lane.b32.xlu0 %v3373, 80
          %v3385 = vpop.permute.xlu0 %3384
          %v3389 = vmul.f32 %v3366, %v3381
          %v3390 = vmul.f32 %v3368, %v3383
          %v3391 = vmul.f32 %v3370, %v3385
          %3395 = vrot.lane.b32.xlu0 %v3389, 16
          %v3396 = vpop.permute.xlu0 %3395
          %3397 = vrot.lane.b32.xlu0 %v3390, 16
          %v3398 = vpop.permute.xlu0 %3397
          %3399 = vrot.lane.b32.xlu0 %v3391, 16
          %v3400 = vpop.permute.xlu0 %3399
          %v3404 = vadd.f32 %v3374, %v3396
          %v3405 = vadd.f32 %v3375, %v3398
          %v3406 = vadd.f32 %v3376, %v3400
          %v3407 = vtanh.pop %v3404
          %v3408 = vtanh.pop %v3405
          %v3409 = vtanh.pop %v3406
          %3413 = vrot.lane.b32.xlu0 %v3407, 16
          %v3414 = vpop.permute.xlu0 %3413
          %3415 = vrot.lane.b32.xlu0 %v3408, 16
          %v3416 = vpop.permute.xlu0 %3415
          %3417 = vrot.lane.b32.xlu0 %v3409, 16
          %v3418 = vpop.permute.xlu0 %3417
          %v3422 = vmul.f32 %v3366, %v3414
          %v3423 = vmul.f32 %v3368, %v3416
          %v3424 = vmul.f32 %v3370, %v3418
          %v3425 = vpack.c.bf16 %v3422, %v3422
          %v3426 = vpack.c.bf16 %v3423, %v3423
          %v3427 = vpack.c.bf16 %v3424, %v3424
          %v3432 = vunpack.c.l.s4 1966171168
          %v3433 = vunpack.c.0.s8 %v3432
          %v3434 = vlaneseq
          %v3435 = vshrl.u32 %v3434, 7
          %v3436 = vsub.s32 %v3433, %v3435
          %v3437 = vrot.slane %v3425, %v3436
          %v3439 = vunpack.c.l.s4 1966171168
          %v3440 = vunpack.c.0.s8 %v3439
          %v3441 = vlaneseq
          %v3442 = vshrl.u32 %v3441, 7
          %v3443 = vsub.s32 %v3440, %v3442
          %v3444 = vrot.slane %v3437, %v3443
          %v3446 = vunpack.c.l.s4 1966171168
          %v3447 = vunpack.c.0.s8 %v3446
          %v3448 = vlaneseq
          %v3449 = vshrl.u32 %v3448, 7
          %v3450 = vsub.s32 %v3447, %v3449
          %v3451 = vrot.slane %v3426, %v3450
          %v3453 = vunpack.c.l.s4 1966171168
          %v3454 = vunpack.c.0.s8 %v3453
          %v3455 = vlaneseq
          %v3456 = vshrl.u32 %v3455, 7
          %v3457 = vsub.s32 %v3454, %v3456
          %v3458 = vrot.slane %v3451, %v3457
          %v3460 = vunpack.c.l.s4 1966171168
          %v3461 = vunpack.c.0.s8 %v3460
          %v3462 = vlaneseq
          %v3463 = vshrl.u32 %v3462, 7
          %v3464 = vsub.s32 %v3461, %v3463
          %v3465 = vrot.slane %v3427, %v3464
          %v3467 = vunpack.c.l.s4 1966171168
          %v3468 = vunpack.c.0.s8 %v3467
          %v3469 = vlaneseq
          %v3470 = vshrl.u32 %v3469, 7
          %v3471 = vsub.s32 %v3468, %v3470
          %v3472 = vrot.slane %v3465, %v3471
          %3473 = vrot.lane.b32.xlu0 %v3444, 96
          %v3474 = vpop.permute.xlu0 %3473
          %3475 = vrot.lane.b32.xlu0 %v3458, 96
          %v3476 = vpop.permute.xlu0 %3475
          %3477 = vrot.lane.b32.xlu0 %v3472, 96
          %v3478 = vpop.permute.xlu0 %3477
          %3482 = vst.msk [vmem:[%s240] sm:$0x1] %vm2316, %v3474
          %3483 = vst.msk [vmem:[%s240 + $0x1] sm:$0x1] %vm2316, %v3476
          %3484 = vst.msk [vmem:[%s240 + $0x2] sm:$0x1] %vm2316, %v3478
          %v3489 = vunpack.c.l.s4 1983009808
          %v3490 = vunpack.c.0.s8 %v3489
          %v3491 = vlaneseq
          %v3492 = vshrl.u32 %v3491, 7
          %v3493 = vsub.s32 %v3490, %v3492
          %v3494 = vrot.slane %v3422, %v3493
          %v3496 = vunpack.c.l.s4 1983009808
          %v3497 = vunpack.c.0.s8 %v3496
          %v3498 = vlaneseq
          %v3499 = vshrl.u32 %v3498, 7
          %v3500 = vsub.s32 %v3497, %v3499
          %v3501 = vrot.slane %v3423, %v3500
          %v3503 = vunpack.c.l.s4 1983009808
          %v3504 = vunpack.c.0.s8 %v3503
          %v3505 = vlaneseq
          %v3506 = vshrl.u32 %v3505, 7
          %v3507 = vsub.s32 %v3504, %v3506
          %v3508 = vrot.slane %v3424, %v3507
          %3509 = vrot.lane.b32.xlu0 %v3494, 96
          %v3510 = vpop.permute.xlu0 %3509
          %3511 = vrot.lane.b32.xlu0 %v3501, 96
          %v3512 = vpop.permute.xlu0 %3511
          %3513 = vrot.lane.b32.xlu0 %v3508, 96
          %v3514 = vpop.permute.xlu0 %3513
          %vm3518 = vcmask 123904
          %3519 = vst.msk [vmem:[#allocation2] sm:$0x3] %vm3518, %v3510
          %3520 = vst.msk [vmem:[#allocation2 + $0x2] sm:$0x3] %vm3518, %v3512
          %3521 = vst.msk [vmem:[#allocation2 + $0x4] sm:$0x3] %vm3518, %v3514
          %v3526 = vunpack.c.l.s4 1983009808
          %v3527 = vunpack.c.0.s8 %v3526
          %v3528 = vlaneseq
          %v3529 = vshrl.u32 %v3528, 7
          %v3530 = vsub.s32 %v3527, %v3529
          %v3531 = vrot.slane %v3404, %v3530
          %v3533 = vunpack.c.l.s4 1983009808
          %v3534 = vunpack.c.0.s8 %v3533
          %v3535 = vlaneseq
          %v3536 = vshrl.u32 %v3535, 7
          %v3537 = vsub.s32 %v3534, %v3536
          %v3538 = vrot.slane %v3405, %v3537
          %v3540 = vunpack.c.l.s4 1983009808
          %v3541 = vunpack.c.0.s8 %v3540
          %v3542 = vlaneseq
          %v3543 = vshrl.u32 %v3542, 7
          %v3544 = vsub.s32 %v3541, %v3543
          %v3545 = vrot.slane %v3406, %v3544
          %3546 = vrot.lane.b32.xlu0 %v3531, 112
          %v3547 = vpop.permute.xlu0 %3546
          %3548 = vrot.lane.b32.xlu0 %v3538, 112
          %v3549 = vpop.permute.xlu0 %3548
          %3550 = vrot.lane.b32.xlu0 %v3545, 112
          %v3551 = vpop.permute.xlu0 %3550
          %3555 = vst.msk [vmem:[#allocation3] sm:$0x3] %vm3518, %v3547
          %3556 = vst.msk [vmem:[#allocation3 + $0x2] sm:$0x3] %vm3518, %v3549
          %3557 = vst.msk [vmem:[#allocation3 + $0x4] sm:$0x3] %vm3518, %v3551
        $region48: #{tpu_custom_call.1} parent=27 // pred_fallthru
          _
        %s3558 = sand.u32 %s114, 1
        %s3559 = scalar_lea.sflag [#allocation6], %s3558
        %s3560 = sand.u32 %s114, 1
        %s3561 = smul.addr %s3560, 12
        %s3562 = scalar_lea.vmem [#allocation9], %s3561
        // Predicated region
        $region49: #{tpu_custom_call.1} parent=27 // pred_check
          %p3563 = pneg %p124
        $region50: #{tpu_custom_call.1} parent=27 // pred_check_branch
          %3565 = sbr.rel (%p3563) target = $region52
        $region51: #{tpu_custom_call.1} parent=27 // pred_region
          %s3566 = smul.u32 %s27, 2
          %s3567 = ssub.s32 1, %s3566
          %s3568 = smul.u32 %s26, %s3567
          %s3569 = sadd.s32 %s27, %s3568
          %s3570 = smul.u32 4, %s3569
          %s3572 = ssub.s32 192, 192
          %3573 = vsyncadd %s3559, %s3572
          %s3574 = smul.addr %s3570, 3
          %s3575 = smul.addr %s26, 24
          %s3576 = sadd.s32 %s3574, %s3575
          %s3577 = smul.addr %s3576, 16
          %s3578 = scalar_lea.hbm %s2, %s3577
          %s3579 = sshll.u32 %s3562, 4
          %s3580 = int_to_ptr.vmem [resolvable:$true] %s3579
          %3585 = dma.vmem_to_hbm [thread:$0]  %s3580, 192, %s3578, %s3559, 16, 16, 1
        $region52: #{tpu_custom_call.1} parent=27 // pred_fallthru
          _
      $region28: #{tpu_custom_call.1} parent=5 // pred_fallthru
        _
      %p3586 = scmp.le.s32.totalorder 2, %s17
      // Predicated region
      $region53: #{tpu_custom_call.1} parent=5 // pred_check
        %p3587 = pneg %p3586
      $region54: #{tpu_custom_call.1} parent=5 // pred_check_branch
        %3589 = sbr.rel (%p3587) target = $region56
      $region55: #{tpu_custom_call.1} parent=5 // pred_region
        %s3590 = ssub.s32 %s17, 2
        // Predicated region
        $region57: #{tpu_custom_call.1} parent=55 // pred_check
          %p3591 = pneg %p130
        $region58: #{tpu_custom_call.1} parent=55 // pred_check_branch
          %3593 = sbr.rel (%p3591) target = $region60
        $region59: #{tpu_custom_call.1} parent=55 // pred_region
          %s3594 = sand.u32 %s115, 1
          %s3595 = scalar_lea.sflag [#allocation6], %s3594
          %s3596 = sand.u32 %s115, 1
          %s3597 = smul.addr %s3596, 12
          %s3598 = scalar_lea.vmem [#allocation9], %s3597
          %3599 = dma.done %s3595, 192
        $region60: #{tpu_custom_call.1} parent=55 // pred_fallthru
          _
      $region56: #{tpu_custom_call.1} parent=5 // pred_fallthru
        _
    $region6: #{tpu_custom_call.1} parent=1 // loop_footer
      %s21 = sadd.s32 1, %s17
    $region7: #{tpu_custom_call.1} parent=1 // loop_footer_branch
      %16 = sbr.rel target = $region3
    $region8: #{tpu_custom_call.1} parent=1 // loop_exit
      _
    %3600 = vsyncpa [#allocation5], 1
    %s3601 = scalar_lea.sflag [#allocation5], 1
    %3602 = vsyncpa %s3601, 1
    %3603 = vsyncpa [#allocation8], 1
    %s3604 = scalar_lea.sflag [#allocation8], 1
    %3605 = vsyncpa %s3604, 1
    %3606 = vsyncpa [#allocation6], 1
    %s3607 = scalar_lea.sflag [#allocation6], 1
    %3608 = vsyncpa %s3607, 1

</llo_original>
